<compile_context>
chip_gen: v7x
topology: tpu7x:2x2x1
jax: 0.10.0
libtpu: 0.0.40
codegen_flags: <defaults>
</compile_context>

<pallas_src>
import functools

import jax
import jax.numpy as jnp
from jax.experimental import pallas as pl
from jax.experimental.pallas import tpu as pltpu


def _vmem_capacity_bytes():
    """Best-effort VMEM capacity (64 MiB on v7x, 128 MiB on v5e/v6e)."""
    try:
        return int(pltpu.get_tpu_info().vmem_capacity_bytes)
    except Exception:
        return 64 * 1024 * 1024  # conservative: assume v7x


def _block_toeplitz(w_hwio, W, compute_dtype):
    """HWIO (3, 3, C, C) -> (3, W*C, W*C) block-tridiagonal weights.

    For each dy tap kh:  T[kh][w_in*C + ci, w_out*C + co] = w[kh, kw, ci, co]
    where w_in = w_out + kw - 1 (out-of-range dx taps simply absent -> SAME
    zero padding in W is handled by the matmul itself).  Folding dx into the
    weight keeps the conv matmul lane-dense (N = W*C >= 128) and removes all
    dx shifts / channel concats from the kernel.
    """
    mats = []
    for kh in range(3):
        t = sum(jnp.kron(jnp.eye(W, k=1 - kw, dtype=w_hwio.dtype), w_hwio[kh, kw])
                for kw in range(3))
        mats.append(t)
    return jnp.stack(mats).astype(compute_dtype)


def resblock_kernel(x_ref, t1_ref, b1_ref, t2_ref, b2_ref, out_ref,
                    *, H, R, compute_dtype):
    """One grid step processes NB whole images as an (R, W*C) lane-dense slab.

    x_ref  : (R, W*C)      input block, R = NB*H rows (also the residual)
    t1/t2  : (3, W*C, W*C) block-Toeplitz conv weights (one per dy tap), bf16
    b1/b2  : (1, W*C)      f32 biases tiled over W
    out_ref: (R, W*C)
    """
    x_f32 = x_ref[...].astype(jnp.float32)                      # residual, read once
    # Row index within each image, for zero-padding masks at the dy halos.
    row = jax.lax.broadcasted_iota(jnp.int32, (R, 1), 0) % H

    def conv3x3(inp, t_ref, b_ref):
        # inp: (R, W*C) in compute_dtype.  dy taps via static row rotations +
        # image-boundary masks (cheap sublane shuffles / VPU selects); dx taps
        # live inside the Toeplitz weights.  f32 accumulation on the MXU.
        up = jnp.where(row == 0, 0, jnp.roll(inp, 1, axis=0))        # x[h-1]
        dn = jnp.where(row == H - 1, 0, jnp.roll(inp, -1, axis=0))   # x[h+1]
        acc = jnp.dot(up, t_ref[0], preferred_element_type=jnp.float32)
        acc += jnp.dot(inp, t_ref[1], preferred_element_type=jnp.float32)
        acc += jnp.dot(dn, t_ref[2], preferred_element_type=jnp.float32)
        return acc + b_ref[...]                                  # (R, WC) + (1, WC)

    y = conv3x3(x_f32.astype(compute_dtype), t1_ref, b1_ref)     # conv1 (bf16 in)
    y = jnp.maximum(y, 0.0)                                      # ReLU in f32 (VPU)
    y = conv3x3(y.astype(compute_dtype), t2_ref, b2_ref)         # conv2

    out_ref[...] = (x_f32 + y).astype(out_ref.dtype)             # residual add


def resblock_forward(x_nchw, w1, b1, w2, b2, *, batch_block=None,
                     compute_dtype=jnp.bfloat16):
    """x_nchw: (N, C, H, W) float32. Weights HWIO (3, 3, C, C), biases (C,)."""
    N, C, H, W = x_nchw.shape
    WC = W * C

    # NCHW -> NHWC -> lane-dense (N*H, W*C) view for the kernel.
    x = jnp.transpose(x_nchw, (0, 2, 3, 1)).reshape(N * H, WC)

    # Block-Toeplitz weights (bf16 MXU operands) and W-tiled f32 biases.
    # TODO(synk): the Toeplitz weight is O((W*C)^2) VMEM; for large W, tile the
    # W axis (or use per-dx lane rolls) instead of a single (W*C, W*C) matrix.
    t1 = _block_toeplitz(w1, W, compute_dtype)                   # (3, WC, WC)
    t2 = _block_toeplitz(w2, W, compute_dtype)
    b1m = jnp.tile(b1.astype(jnp.float32), W).reshape(1, WC)
    b2m = jnp.tile(b2.astype(jnp.float32), W).reshape(1, WC)

    # --- generation-aware block / VMEM budget -------------------------------
    vmem_cap = _vmem_capacity_bytes()                            # 64 MiB v7x / 128 MiB v5e,v6e
    vmem_limit = min((vmem_cap * 3) // 4, 64 * 1024 * 1024)      # 48 MiB v7x, 64 MiB v5e/v6e
    weight_bytes = 2 * 3 * WC * WC * jnp.dtype(compute_dtype).itemsize
    img_bytes = H * WC * 4
    # Per-step working set ~8x the f32 input block (x/out double-buffered, bf16
    # copy + two rolled taps, f32 accumulator), plus the resident weights.
    block_budget = max(img_bytes, (vmem_limit - weight_bytes) // 8)

    if batch_block is None:
        nb = max(1, min(N, block_budget // img_bytes))
        # Force >= 2 grid steps (both v7x TCs busy + DMA/compute overlap),
        # >= 4 when the batch allows (amortize ~0.35 us per-step overhead).
        if N >= 4:
            nb = min(nb, N // 4)
        elif N >= 2:
            nb = min(nb, N // 2)
        nb = max(1, nb)
        while N % nb:
            nb -= 1
        batch_block = nb
    # TODO(synk): for N < 2 or very large H*W, additionally block over H
    # (recomputing the 2 halo rows per block) to keep >= 2 steps / bound VMEM.
    NB = batch_block
    assert N % NB == 0, "batch_block must divide N"
    R = NB * H
    grid = (N // NB,)

    kernel = functools.partial(resblock_kernel, H=H, R=R,
                               compute_dtype=compute_dtype)

    out = pl.pallas_call(
        kernel,
        out_shape=jax.ShapeDtypeStruct((N * H, WC), x.dtype),
        grid_spec=pltpu.PrefetchScalarGridSpec(
            num_scalar_prefetch=0,
            grid=grid,
            in_specs=[
                pl.BlockSpec((R, WC), lambda i: (i, 0)),         # lane-dense x
                pl.BlockSpec((3, WC, WC), lambda i: (0, 0, 0)),  # resident weights
                pl.BlockSpec((1, WC), lambda i: (0, 0)),
                pl.BlockSpec((3, WC, WC), lambda i: (0, 0, 0)),
                pl.BlockSpec((1, WC), lambda i: (0, 0)),
            ],
            out_specs=pl.BlockSpec((R, WC), lambda i: (i, 0)),   # lane-dense out
        ),
        compiler_params=pltpu.CompilerParams(
            # No cross-step accumulation -> safe to shard across v7x's 2 TCs.
            dimension_semantics=("parallel",),
            vmem_limit_bytes=int(vmem_limit),
        ),
    )(x, t1, b1m, t2, b2m)

    return jnp.transpose(out.reshape(N, H, W, C), (0, 3, 1, 2))  # back to NCHW


def reference_forward(x_nchw, w1, b1, w2, b2):
    """Pure-JAX reference (NHWC conv) for verification."""
    x = jnp.transpose(x_nchw, (0, 2, 3, 1))
    dn = jax.lax.conv_dimension_numbers(x.shape, w1.shape, ('NHWC', 'HWIO', 'NHWC'))
    y = jax.lax.conv_general_dilated(x, w1, (1, 1), 'SAME', dimension_numbers=dn) + b1
    y = jnp.maximum(y, 0.0)
    y = jax.lax.conv_general_dilated(y, w2, (1, 1), 'SAME', dimension_numbers=dn) + b2
    out = x + y
    return jnp.transpose(out, (0, 3, 1, 2))


if __name__ == "__main__":
    # in_planes = out_planes = 32 (module defaults), batch = 2, spatial = 16x16.
    N, C, H, W = 2, 32, 16, 16
    key = jax.random.PRNGKey(0)
    kx, k1, kb1, k2, kb2 = jax.random.split(key, 5)

    x = jax.random.normal(kx, (N, C, H, W), jnp.float32)
    # Deterministic synthetic parameters (PyTorch Conv2d params expressed in HWIO).
    w1 = jax.random.normal(k1, (3, 3, C, C), jnp.float32) * 0.05
    b1 = jax.random.normal(kb1, (C,), jnp.float32) * 0.05
    w2 = jax.random.normal(k2, (3, 3, C, C), jnp.float32) * 0.05
    b2 = jax.random.normal(kb2, (C,), jnp.float32) * 0.05

    out = jax.block_until_ready(resblock_forward(x, w1, b1, w2, b2))
    ref = jax.block_until_ready(reference_forward(x, w1, b1, w2, b2))

    assert out.shape == (N, C, H, W)
    err = float(jnp.max(jnp.abs(out - ref)))
    # bf16 MXU operands with f32 accumulation vs. the f32 JAX reference conv:
    # allow bf16-grade tolerance (K_effective = 288 per conv, two convs).
    assert err < 2e-2, f"mismatch vs. JAX reference: max abs err = {err}"

    print("KERNEL_OK")
</pallas_src>

<mosaic_0001>
module attributes {stable_mosaic.version = 11 : i64} {
  func.func @resblock_kernel(%arg0: i32, %arg1: memref<16x512xf32, #tpu.memory_space<vmem>>, %arg2: memref<3x512x512xbf16, #tpu.memory_space<vmem>>, %arg3: memref<1x512xf32, #tpu.memory_space<vmem>>, %arg4: memref<3x512x512xbf16, #tpu.memory_space<vmem>>, %arg5: memref<1x512xf32, #tpu.memory_space<vmem>>, %arg6: memref<16x512xf32, #tpu.memory_space<vmem>>) attributes {dimension_semantics = [#tpu.dimension_semantics<parallel>], iteration_bounds = array<i64: 2>, scalar_prefetch = 0 : i64, scratch_operands = 0 : i64, tpu.core_type = #tpu.core_type<tc>, window_params = [{transform_indices = @transform_0, window_bounds = array<i64: 16, 512>}, {pipeline_mode = #tpu.pipeline_mode<synchronous>, transform_indices = @transform_1, window_bounds = array<i64: 3, 512, 512>}, {pipeline_mode = #tpu.pipeline_mode<synchronous>, transform_indices = @transform_2, window_bounds = array<i64: 1, 512>}, {pipeline_mode = #tpu.pipeline_mode<synchronous>, transform_indices = @transform_3, window_bounds = array<i64: 3, 512, 512>}, {pipeline_mode = #tpu.pipeline_mode<synchronous>, transform_indices = @transform_4, window_bounds = array<i64: 1, 512>}, {transform_indices = @transform_5, window_bounds = array<i64: 16, 512>}]} {
    %c0 = arith.constant 0 : index
    %c0_0 = arith.constant 0 : index
    %0 = vector.load %arg1[%c0, %c0_0] : memref<16x512xf32, #tpu.memory_space<vmem>>, vector<16x512xf32>
    %1 = tpu.iota {dimensions = array<i32: 0>} : vector<16x1xi32>
    %c16_i32 = arith.constant 16 : i32
    %c0_i32 = arith.constant 0 : i32
    %2 = arith.cmpi eq, %c16_i32, %c0_i32 : i32
    %c1_i32 = arith.constant 1 : i32
    %3 = arith.select %2, %c1_i32, %c16_i32 : i32
    %4 = vector.broadcast %3 : i32 to vector<16x1xi32>
    %5 = arith.remsi %1, %4 : vector<16x1xi32>
    %c0_i32_1 = arith.constant 0 : i32
    %6 = vector.broadcast %c0_i32_1 : i32 to vector<16x1xi32>
    %7 = arith.cmpi ne, %5, %6 : vector<16x1xi32>
    %c0_i32_2 = arith.constant 0 : i32
    %8 = vector.broadcast %c0_i32_2 : i32 to vector<16x1xi32>
    %9 = arith.cmpi slt, %5, %8 : vector<16x1xi32>
    %c0_i32_3 = arith.constant 0 : i32
    %10 = arith.cmpi slt, %3, %c0_i32_3 : i32
    %11 = vector.broadcast %10 : i1 to vector<16x1xi1>
    %12 = vector.broadcast %11 : vector<16x1xi1> to vector<16x1xi1>
    %13 = arith.xori %9, %12 : vector<16x1xi1>
    %14 = arith.andi %13, %7 : vector<16x1xi1>
    %15 = vector.broadcast %3 : i32 to vector<16x1xi32>
    %16 = arith.addi %5, %15 : vector<16x1xi32>
    %17 = arith.select %14, %16, %5 : vector<16x1xi1>, vector<16x1xi32>
    %18 = arith.truncf %0 : vector<16x512xf32> to vector<16x512xbf16>
    %c0_i32_4 = arith.constant 0 : i32
    %19 = vector.broadcast %c0_i32_4 : i32 to vector<16x1xi32>
    %20 = arith.cmpi eq, %17, %19 : vector<16x1xi32>
    %21 = vector.extract_strided_slice %18 {offsets = [15, 0], sizes = [1, 512], strides = [1, 1]} : vector<16x512xbf16> to vector<1x512xbf16>
    %22 = vector.extract_strided_slice %18 {offsets = [0, 0], sizes = [15, 512], strides = [1, 1]} : vector<16x512xbf16> to vector<15x512xbf16>
    %23 = tpu.concatenate %21, %22 in 0 : vector<1x512xbf16>, vector<15x512xbf16> -> vector<16x512xbf16>
    %c0_i32_5 = arith.constant 0 : i32
    %24 = arith.sitofp %c0_i32_5 : i32 to bf16
    %25 = vector.shape_cast %20 : vector<16x1xi1> to vector<16x1xi1>
    %26 = vector.broadcast %25 : vector<16x1xi1> to vector<16x512xi1>
    %27 = vector.broadcast %24 : bf16 to vector<16x512xbf16>
    %28 = arith.select %26, %27, %23 : vector<16x512xi1>, vector<16x512xbf16>
    %c15_i32 = arith.constant 15 : i32
    %29 = vector.broadcast %c15_i32 : i32 to vector<16x1xi32>
    %30 = arith.cmpi eq, %17, %29 : vector<16x1xi32>
    %31 = vector.extract_strided_slice %18 {offsets = [1, 0], sizes = [15, 512], strides = [1, 1]} : vector<16x512xbf16> to vector<15x512xbf16>
    %32 = vector.extract_strided_slice %18 {offsets = [0, 0], sizes = [1, 512], strides = [1, 1]} : vector<16x512xbf16> to vector<1x512xbf16>
    %33 = tpu.concatenate %31, %32 in 0 : vector<15x512xbf16>, vector<1x512xbf16> -> vector<16x512xbf16>
    %c0_i32_6 = arith.constant 0 : i32
    %34 = arith.sitofp %c0_i32_6 : i32 to bf16
    %35 = vector.shape_cast %30 : vector<16x1xi1> to vector<16x1xi1>
    %36 = vector.broadcast %35 : vector<16x1xi1> to vector<16x512xi1>
    %37 = vector.broadcast %34 : bf16 to vector<16x512xbf16>
    %38 = arith.select %36, %37, %33 : vector<16x512xi1>, vector<16x512xbf16>
    %c0_7 = arith.constant 0 : index
    %c0_8 = arith.constant 0 : index
    %c0_9 = arith.constant 0 : index
    %39 = vector.load %arg2[%c0_7, %c0_8, %c0_9] : memref<3x512x512xbf16, #tpu.memory_space<vmem>>, vector<1x512x512xbf16>
    %40 = vector.shape_cast %39 : vector<1x512x512xbf16> to vector<512x512xbf16>
    %cst = arith.constant dense<0.000000e+00> : vector<16x512xf32>
    %41 = tpu.matmul %28, %40, %cst {dimension_numbers = #tpu.dot_dimension_numbers<[1], [0], [0], [1], [0, 0, 1, 1], [], []>} : vector<16x512xbf16>, vector<512x512xbf16>, vector<16x512xf32> -> vector<16x512xf32>
    %c1 = arith.constant 1 : index
    %c0_10 = arith.constant 0 : index
    %c0_11 = arith.constant 0 : index
    %42 = vector.load %arg2[%c1, %c0_10, %c0_11] : memref<3x512x512xbf16, #tpu.memory_space<vmem>>, vector<1x512x512xbf16>
    %43 = vector.shape_cast %42 : vector<1x512x512xbf16> to vector<512x512xbf16>
    %cst_12 = arith.constant dense<0.000000e+00> : vector<16x512xf32>
    %44 = tpu.matmul %18, %43, %cst_12 {dimension_numbers = #tpu.dot_dimension_numbers<[1], [0], [0], [1], [0, 0, 1, 1], [], []>} : vector<16x512xbf16>, vector<512x512xbf16>, vector<16x512xf32> -> vector<16x512xf32>
    %45 = arith.addf %41, %44 : vector<16x512xf32>
    %c2 = arith.constant 2 : index
    %c0_13 = arith.constant 0 : index
    %c0_14 = arith.constant 0 : index
    %46 = vector.load %arg2[%c2, %c0_13, %c0_14] : memref<3x512x512xbf16, #tpu.memory_space<vmem>>, vector<1x512x512xbf16>
    %47 = vector.shape_cast %46 : vector<1x512x512xbf16> to vector<512x512xbf16>
    %cst_15 = arith.constant dense<0.000000e+00> : vector<16x512xf32>
    %48 = tpu.matmul %38, %47, %cst_15 {dimension_numbers = #tpu.dot_dimension_numbers<[1], [0], [0], [1], [0, 0, 1, 1], [], []>} : vector<16x512xbf16>, vector<512x512xbf16>, vector<16x512xf32> -> vector<16x512xf32>
    %49 = arith.addf %45, %48 : vector<16x512xf32>
    %c0_16 = arith.constant 0 : index
    %c0_17 = arith.constant 0 : index
    %50 = vector.load %arg3[%c0_16, %c0_17] : memref<1x512xf32, #tpu.memory_space<vmem>>, vector<1x512xf32>
    %51 = vector.broadcast %50 : vector<1x512xf32> to vector<16x512xf32>
    %52 = arith.addf %49, %51 : vector<16x512xf32>
    %cst_18 = arith.constant 0.000000e+00 : f32
    %53 = vector.broadcast %cst_18 : f32 to vector<16x512xf32>
    %54 = arith.maximumf %52, %53 : vector<16x512xf32>
    %55 = arith.truncf %54 : vector<16x512xf32> to vector<16x512xbf16>
    %c0_i32_19 = arith.constant 0 : i32
    %56 = vector.broadcast %c0_i32_19 : i32 to vector<16x1xi32>
    %57 = arith.cmpi eq, %17, %56 : vector<16x1xi32>
    %58 = vector.extract_strided_slice %55 {offsets = [15, 0], sizes = [1, 512], strides = [1, 1]} : vector<16x512xbf16> to vector<1x512xbf16>
    %59 = vector.extract_strided_slice %55 {offsets = [0, 0], sizes = [15, 512], strides = [1, 1]} : vector<16x512xbf16> to vector<15x512xbf16>
    %60 = tpu.concatenate %58, %59 in 0 : vector<1x512xbf16>, vector<15x512xbf16> -> vector<16x512xbf16>
    %c0_i32_20 = arith.constant 0 : i32
    %61 = arith.sitofp %c0_i32_20 : i32 to bf16
    %62 = vector.shape_cast %57 : vector<16x1xi1> to vector<16x1xi1>
    %63 = vector.broadcast %62 : vector<16x1xi1> to vector<16x512xi1>
    %64 = vector.broadcast %61 : bf16 to vector<16x512xbf16>
    %65 = arith.select %63, %64, %60 : vector<16x512xi1>, vector<16x512xbf16>
    %c15_i32_21 = arith.constant 15 : i32
    %66 = vector.broadcast %c15_i32_21 : i32 to vector<16x1xi32>
    %67 = arith.cmpi eq, %17, %66 : vector<16x1xi32>
    %68 = vector.extract_strided_slice %55 {offsets = [1, 0], sizes = [15, 512], strides = [1, 1]} : vector<16x512xbf16> to vector<15x512xbf16>
    %69 = vector.extract_strided_slice %55 {offsets = [0, 0], sizes = [1, 512], strides = [1, 1]} : vector<16x512xbf16> to vector<1x512xbf16>
    %70 = tpu.concatenate %68, %69 in 0 : vector<15x512xbf16>, vector<1x512xbf16> -> vector<16x512xbf16>
    %c0_i32_22 = arith.constant 0 : i32
    %71 = arith.sitofp %c0_i32_22 : i32 to bf16
    %72 = vector.shape_cast %67 : vector<16x1xi1> to vector<16x1xi1>
    %73 = vector.broadcast %72 : vector<16x1xi1> to vector<16x512xi1>
    %74 = vector.broadcast %71 : bf16 to vector<16x512xbf16>
    %75 = arith.select %73, %74, %70 : vector<16x512xi1>, vector<16x512xbf16>
    %c0_23 = arith.constant 0 : index
    %c0_24 = arith.constant 0 : index
    %c0_25 = arith.constant 0 : index
    %76 = vector.load %arg4[%c0_23, %c0_24, %c0_25] : memref<3x512x512xbf16, #tpu.memory_space<vmem>>, vector<1x512x512xbf16>
    %77 = vector.shape_cast %76 : vector<1x512x512xbf16> to vector<512x512xbf16>
    %cst_26 = arith.constant dense<0.000000e+00> : vector<16x512xf32>
    %78 = tpu.matmul %65, %77, %cst_26 {dimension_numbers = #tpu.dot_dimension_numbers<[1], [0], [0], [1], [0, 0, 1, 1], [], []>} : vector<16x512xbf16>, vector<512x512xbf16>, vector<16x512xf32> -> vector<16x512xf32>
    %c1_27 = arith.constant 1 : index
    %c0_28 = arith.constant 0 : index
    %c0_29 = arith.constant 0 : index
    %79 = vector.load %arg4[%c1_27, %c0_28, %c0_29] : memref<3x512x512xbf16, #tpu.memory_space<vmem>>, vector<1x512x512xbf16>
    %80 = vector.shape_cast %79 : vector<1x512x512xbf16> to vector<512x512xbf16>
    %cst_30 = arith.constant dense<0.000000e+00> : vector<16x512xf32>
    %81 = tpu.matmul %55, %80, %cst_30 {dimension_numbers = #tpu.dot_dimension_numbers<[1], [0], [0], [1], [0, 0, 1, 1], [], []>} : vector<16x512xbf16>, vector<512x512xbf16>, vector<16x512xf32> -> vector<16x512xf32>
    %82 = arith.addf %78, %81 : vector<16x512xf32>
    %c2_31 = arith.constant 2 : index
    %c0_32 = arith.constant 0 : index
    %c0_33 = arith.constant 0 : index
    %83 = vector.load %arg4[%c2_31, %c0_32, %c0_33] : memref<3x512x512xbf16, #tpu.memory_space<vmem>>, vector<1x512x512xbf16>
    %84 = vector.shape_cast %83 : vector<1x512x512xbf16> to vector<512x512xbf16>
    %cst_34 = arith.constant dense<0.000000e+00> : vector<16x512xf32>
    %85 = tpu.matmul %75, %84, %cst_34 {dimension_numbers = #tpu.dot_dimension_numbers<[1], [0], [0], [1], [0, 0, 1, 1], [], []>} : vector<16x512xbf16>, vector<512x512xbf16>, vector<16x512xf32> -> vector<16x512xf32>
    %86 = arith.addf %82, %85 : vector<16x512xf32>
    %c0_35 = arith.constant 0 : index
    %c0_36 = arith.constant 0 : index
    %87 = vector.load %arg5[%c0_35, %c0_36] : memref<1x512xf32, #tpu.memory_space<vmem>>, vector<1x512xf32>
    %88 = vector.broadcast %87 : vector<1x512xf32> to vector<16x512xf32>
    %89 = arith.addf %86, %88 : vector<16x512xf32>
    %90 = arith.addf %0, %89 : vector<16x512xf32>
    %c0_37 = arith.constant 0 : index
    %c0_38 = arith.constant 0 : index
    %91 = vector.load %arg6[%c0_37, %c0_38] : memref<16x512xf32, #tpu.memory_space<vmem>>, vector<16x512xf32>
    tpu.vector_store %arg6[%c0_37, %c0_38], %90 {strides = array<i32>} : memref<16x512xf32, #tpu.memory_space<vmem>>, vector<16x512xf32>,
    return
  }
  func.func @transform_0(%arg0: i32) -> (i32, i32) {
    %c0_i32 = arith.constant 0 : i32
    %c0_i32_0 = arith.constant 0 : i32
    return %arg0, %c0_i32 : i32, i32
  }
  func.func @transform_1(%arg0: i32) -> (i32, i32, i32) {
    %c0_i32 = arith.constant 0 : i32
    %c0_i32_0 = arith.constant 0 : i32
    %c0_i32_1 = arith.constant 0 : i32
    %c0_i32_2 = arith.constant 0 : i32
    return %c0_i32, %c0_i32_0, %c0_i32_1 : i32, i32, i32
  }
  func.func @transform_2(%arg0: i32) -> (i32, i32) {
    %c0_i32 = arith.constant 0 : i32
    %c0_i32_0 = arith.constant 0 : i32
    %c0_i32_1 = arith.constant 0 : i32
    return %c0_i32, %c0_i32_0 : i32, i32
  }
  func.func @transform_3(%arg0: i32) -> (i32, i32, i32) {
    %c0_i32 = arith.constant 0 : i32
    %c0_i32_0 = arith.constant 0 : i32
    %c0_i32_1 = arith.constant 0 : i32
    %c0_i32_2 = arith.constant 0 : i32
    return %c0_i32, %c0_i32_0, %c0_i32_1 : i32, i32, i32
  }
  func.func @transform_4(%arg0: i32) -> (i32, i32) {
    %c0_i32 = arith.constant 0 : i32
    %c0_i32_0 = arith.constant 0 : i32
    %c0_i32_1 = arith.constant 0 : i32
    return %c0_i32, %c0_i32_0 : i32, i32
  }
  func.func @transform_5(%arg0: i32) -> (i32, i32) {
    %c0_i32 = arith.constant 0 : i32
    %c0_i32_0 = arith.constant 0 : i32
    return %arg0, %c0_i32 : i32, i32
  }
}

</mosaic_0001>

<llo_original>
// kernel: tpu_custom_call.1
$region0: #{tpu_custom_call.1}
  #allocation0 [shape = 'u32[]', space=smem, size = 0x4, offset = 0x4, fixed_abs, tag = 'smem constant byte address 0x4 - core index']
  #allocation1 [shape = 'u32[144,128]{1,0:T(1,128)}', space=vmem, size = 0x12000, scoped, tag = 'internal scratch']
  %s0 = inlined_call_operand.hbm [shape: f32[32,512], index: 0, kind: input, shape index: {}]
  %s1 = inlined_call_operand.hbm [shape: bf16[3,512,512], index: 1, kind: input, shape index: {}]
  %s2 = inlined_call_operand.hbm [shape: f32[1,512], index: 2, kind: input, shape index: {}]
  %s3 = inlined_call_operand.hbm [shape: bf16[3,512,512], index: 3, kind: input, shape index: {}]
  %s4 = inlined_call_operand.hbm [shape: f32[1,512], index: 4, kind: input, shape index: {}]
  %s5 = inlined_call_operand.hbm [shape: f32[32,512], index: 5, kind: output, shape index: {}]
  %s6 = sld [smem:[#allocation0]]
  $region73: #{tpu_custom_call.1} parent=0
    _
  %s8 = ssub.s32 1, %s6
  %s9 = scalar_select 0, %s8, %s6
  $region1: #{tpu_custom_call.1} parent=0
    #allocation2 [shape = 'u8[65536]{0}', space=vmem, size = 0x10000, scoped, tag = 'input window, operand 0']
    #allocation3 [shape = 's32[2]{0}', space=sflag, size = 0x8, scoped, tag = 'scoped memory for tpu_custom_call.1']
    #allocation4 [shape = 's32[2]{0}', space=sflag, size = 0x8, scoped, tag = 'scoped memory for tpu_custom_call.1']
    #allocation5 [shape = 'u8[1572864]{0}', space=vmem, size = 0x180000, scoped, tag = 'input window, operand 1, single buffered']
    #allocation6 [shape = 's32[1]{0}', space=sflag, size = 0x4, scoped, tag = 'scoped memory for tpu_custom_call.1']
    #allocation7 [shape = 'u8[2048]{0}', space=vmem, size = 0x800, scoped, tag = 'input window, operand 2, single buffered']
    #allocation8 [shape = 'u8[1572864]{0}', space=vmem, size = 0x180000, scoped, tag = 'input window, operand 3, single buffered']
    #allocation9 [shape = 's32[1]{0}', space=sflag, size = 0x4, scoped, tag = 'scoped memory for tpu_custom_call.1']
    #allocation10 [shape = 'u8[2048]{0}', space=vmem, size = 0x800, scoped, tag = 'input window, operand 4, single buffered']
    #allocation11 [shape = 'u8[65536]{0}', space=vmem, size = 0x10000, scoped, tag = 'output window, operand 0']
    %10 = vsyncpa [#allocation3], 0
    %s11 = scalar_lea.sflag [#allocation3], 1
    %12 = vsyncpa %s11, 0
    %13 = vsyncpa [#allocation6], 0
    %14 = vsyncpa [#allocation9], 0
    %15 = vsyncpa [#allocation4], 0
    %s16 = scalar_lea.sflag [#allocation4], 1
    %17 = vsyncpa %s16, 0
    loop: start=0, step=1, limit=4
    $region2: #{tpu_custom_call.1} parent=1 // loop_pre_header
      _
    $region3: #{tpu_custom_call.1} parent=1 // loop_header
      %s19 = sphi 0, %s23
      %p20 = scmp.ge.s32.totalorder %s19, 4
      %s29 = sphi 0, %s31
      %s32 = sphi 0, %s29
      %s33 = sphi 0, %s32
      %s49 = sphi 0, %s33
      %s53 = sphi 0, %s53
      %s55 = sphi 0, %s53
      %s56 = sphi 0, %s55
      %s70 = sphi 0, %s56
      %s74 = sphi 0, %s74
      %s76 = sphi 0, %s74
      %s77 = sphi 0, %s76
      %s91 = sphi 0, %s77
      %s95 = sphi 0, %s95
      %s97 = sphi 0, %s95
      %s98 = sphi 0, %s97
      %s112 = sphi 0, %s98
      %s116 = sphi 0, %s116
      %s118 = sphi 0, %s116
      %s119 = sphi 0, %s118
      %s133 = sphi 0, %s119
      %s139 = sphi 0, %s141
      %s142 = sphi 0, %s139
      %s143 = sphi 0, %s142
      %s159 = sphi 0, %s143
    $region4: #{tpu_custom_call.1} parent=1 // loop_header_branch
      %22 = sbr.rel (%p20) target = $region8
    $region5: #{tpu_custom_call.1} parent=1 // loop_body
      %s24 = ssub.s32 %s19, 1
      %s25 = ssub.s32 %s19, 2
      %s26 = sadd.s32 %s19, 1
      %s27 = ssub.s32 %s19, %s26
      %p28 = scmp.eq.s32.totalorder %s27, 0
      %s30 = sadd.s32 %s29, 1
      %s31 = scalar_select %p28, %s29, %s30
      %p34 = pneg %p28
      %p35 = scmp.eq.s32.totalorder %s19, 1
      %p36 = por %p34, %p35
      %p37 = scmp.ne.s32.totalorder %s29, %s32
      %p38 = scmp.eq.s32.totalorder %s19, 0
      %p39 = por %p37, %p38
      %p40 = scmp.ne.s32.totalorder %s29, %s32
      %p41 = scmp.eq.s32.totalorder %s24, 1
      %p42 = por %p40, %p41
      %p43 = scmp.ne.s32.totalorder %s32, %s33
      %p44 = scmp.eq.s32.totalorder %s24, 0
      %p45 = por %p43, %p44
      %p46 = scmp.ne.s32.totalorder %s32, %s33
      %p47 = scmp.eq.s32.totalorder %s25, 1
      %p48 = por %p46, %p47
      %p50 = scmp.ne.s32.totalorder %s33, %s49
      %p51 = scmp.eq.s32.totalorder %s25, 0
      %p52 = por %p50, %p51
      %s54 = sadd.s32 %s53, 1
      %p57 = scmp.eq.s32.totalorder %s19, 1
      %p58 = scmp.ne.s32.totalorder %s53, %s55
      %p59 = scmp.eq.s32.totalorder %s19, 0
      %p60 = por %p58, %p59
      %p61 = scmp.ne.s32.totalorder %s53, %s55
      %p62 = scmp.eq.s32.totalorder %s24, 1
      %p63 = por %p61, %p62
      %p64 = scmp.ne.s32.totalorder %s55, %s56
      %p65 = scmp.eq.s32.totalorder %s24, 0
      %p66 = por %p64, %p65
      %p67 = scmp.ne.s32.totalorder %s55, %s56
      %p68 = scmp.eq.s32.totalorder %s25, 1
      %p69 = por %p67, %p68
      %p71 = scmp.ne.s32.totalorder %s56, %s70
      %p72 = scmp.eq.s32.totalorder %s25, 0
      %p73 = por %p71, %p72
      %s75 = sadd.s32 %s74, 1
      %p78 = scmp.eq.s32.totalorder %s19, 1
      %p79 = scmp.ne.s32.totalorder %s74, %s76
      %p80 = scmp.eq.s32.totalorder %s19, 0
      %p81 = por %p79, %p80
      %p82 = scmp.ne.s32.totalorder %s74, %s76
      %p83 = scmp.eq.s32.totalorder %s24, 1
      %p84 = por %p82, %p83
      %p85 = scmp.ne.s32.totalorder %s76, %s77
      %p86 = scmp.eq.s32.totalorder %s24, 0
      %p87 = por %p85, %p86
      %p88 = scmp.ne.s32.totalorder %s76, %s77
      %p89 = scmp.eq.s32.totalorder %s25, 1
      %p90 = por %p88, %p89
      %p92 = scmp.ne.s32.totalorder %s77, %s91
      %p93 = scmp.eq.s32.totalorder %s25, 0
      %p94 = por %p92, %p93
      %s96 = sadd.s32 %s95, 1
      %p99 = scmp.eq.s32.totalorder %s19, 1
      %p100 = scmp.ne.s32.totalorder %s95, %s97
      %p101 = scmp.eq.s32.totalorder %s19, 0
      %p102 = por %p100, %p101
      %p103 = scmp.ne.s32.totalorder %s95, %s97
      %p104 = scmp.eq.s32.totalorder %s24, 1
      %p105 = por %p103, %p104
      %p106 = scmp.ne.s32.totalorder %s97, %s98
      %p107 = scmp.eq.s32.totalorder %s24, 0
      %p108 = por %p106, %p107
      %p109 = scmp.ne.s32.totalorder %s97, %s98
      %p110 = scmp.eq.s32.totalorder %s25, 1
      %p111 = por %p109, %p110
      %p113 = scmp.ne.s32.totalorder %s98, %s112
      %p114 = scmp.eq.s32.totalorder %s25, 0
      %p115 = por %p113, %p114
      %s117 = sadd.s32 %s116, 1
      %p120 = scmp.eq.s32.totalorder %s19, 1
      %p121 = scmp.ne.s32.totalorder %s116, %s118
      %p122 = scmp.eq.s32.totalorder %s19, 0
      %p123 = por %p121, %p122
      %p124 = scmp.ne.s32.totalorder %s116, %s118
      %p125 = scmp.eq.s32.totalorder %s24, 1
      %p126 = por %p124, %p125
      %p127 = scmp.ne.s32.totalorder %s118, %s119
      %p128 = scmp.eq.s32.totalorder %s24, 0
      %p129 = por %p127, %p128
      %p130 = scmp.ne.s32.totalorder %s118, %s119
      %p131 = scmp.eq.s32.totalorder %s25, 1
      %p132 = por %p130, %p131
      %p134 = scmp.ne.s32.totalorder %s119, %s133
      %p135 = scmp.eq.s32.totalorder %s25, 0
      %p136 = por %p134, %p135
      %s137 = ssub.s32 %s19, %s26
      %p138 = scmp.eq.s32.totalorder %s137, 0
      %s140 = sadd.s32 %s139, 1
      %s141 = scalar_select %p138, %s139, %s140
      %p144 = pneg %p138
      %p145 = scmp.eq.s32.totalorder %s19, 1
      %p146 = por %p144, %p145
      %p147 = scmp.ne.s32.totalorder %s139, %s142
      %p148 = scmp.eq.s32.totalorder %s19, 0
      %p149 = por %p147, %p148
      %p150 = scmp.ne.s32.totalorder %s139, %s142
      %p151 = scmp.eq.s32.totalorder %s24, 1
      %p152 = por %p150, %p151
      %p153 = scmp.ne.s32.totalorder %s142, %s143
      %p154 = scmp.eq.s32.totalorder %s24, 0
      %p155 = por %p153, %p154
      %p156 = scmp.ne.s32.totalorder %s142, %s143
      %p157 = scmp.eq.s32.totalorder %s25, 1
      %p158 = por %p156, %p157
      %p160 = scmp.ne.s32.totalorder %s143, %s159
      %p161 = scmp.eq.s32.totalorder %s25, 0
      %p162 = por %p160, %p161
      %p163 = scmp.le.s32.totalorder 1, %s19
      %p164 = scmp.lt.s32.totalorder %s19, 3
      %p165 = pnand %p163, %p164
      %p166 = pneg %p165
      // Predicated region
      $region9: #{tpu_custom_call.1} parent=5 // pred_check
        _
      $region10: #{tpu_custom_call.1} parent=5 // pred_check_branch
        %168 = sbr.rel (%p165) target = $region12
      $region11: #{tpu_custom_call.1} parent=5 // pred_region
        %s169 = ssub.s32 %s19, 1
        // Predicated region
        $region13: #{tpu_custom_call.1} parent=11 // pred_check
          %p170 = pneg %p66
        $region14: #{tpu_custom_call.1} parent=11 // pred_check_branch
          %172 = sbr.rel (%p170) target = $region16
        $region15: #{tpu_custom_call.1} parent=11 // pred_region
          %s174 = ssub.s32 49152, 49152
          %175 = vsyncadd [#allocation6], %s174
          %s176 = sshll.u32 [#allocation5], 4
          %s177 = int_to_ptr.vmem [resolvable:$true] %s176
          %182 = dma.hbm_to_vmem [thread:$0]  %s1, 49152, %s177, [#allocation6], 256, 256, 16
        $region16: #{tpu_custom_call.1} parent=11 // pred_fallthru
          _
        // Predicated region
        $region17: #{tpu_custom_call.1} parent=11 // pred_check
          %p183 = pneg %p87
        $region18: #{tpu_custom_call.1} parent=11 // pred_check_branch
          %185 = sbr.rel (%p183) target = $region20
        $region19: #{tpu_custom_call.1} parent=11 // pred_region
          %s187 = ssub.s32 64, 64
          %188 = vsyncadd [#allocation6], %s187
          %s190 = sshll.u32 [#allocation7], 4
          %s191 = int_to_ptr.vmem [resolvable:$true] %s190
          %193 = dma.hbm_to_vmem [thread:$0]  %s2, 64, %s191, [#allocation6]
        $region20: #{tpu_custom_call.1} parent=11 // pred_fallthru
          _
        // Predicated region
        $region21: #{tpu_custom_call.1} parent=11 // pred_check
          %p194 = pneg %p108
        $region22: #{tpu_custom_call.1} parent=11 // pred_check_branch
          %196 = sbr.rel (%p194) target = $region24
        $region23: #{tpu_custom_call.1} parent=11 // pred_region
          %s198 = ssub.s32 49152, 49152
          %199 = vsyncadd [#allocation9], %s198
          %s200 = sshll.u32 [#allocation8], 4
          %s201 = int_to_ptr.vmem [resolvable:$true] %s200
          %206 = dma.hbm_to_vmem [thread:$0]  %s3, 49152, %s201, [#allocation9], 256, 256, 16
        $region24: #{tpu_custom_call.1} parent=11 // pred_fallthru
          _
        // Predicated region
        $region25: #{tpu_custom_call.1} parent=11 // pred_check
          %p207 = pneg %p129
        $region26: #{tpu_custom_call.1} parent=11 // pred_check_branch
          %209 = sbr.rel (%p207) target = $region28
        $region27: #{tpu_custom_call.1} parent=11 // pred_region
          %s211 = ssub.s32 64, 64
          %212 = vsyncadd [#allocation9], %s211
          %s214 = sshll.u32 [#allocation10], 4
          %s215 = int_to_ptr.vmem [resolvable:$true] %s214
          %217 = dma.hbm_to_vmem [thread:$0]  %s4, 64, %s215, [#allocation9]
        $region28: #{tpu_custom_call.1} parent=11 // pred_fallthru
          _
      $region12: #{tpu_custom_call.1} parent=5 // pred_fallthru
        _
      %p218 = scmp.lt.s32.totalorder %s19, 2
      // Predicated region
      $region29: #{tpu_custom_call.1} parent=5 // pred_check
        %p219 = pneg %p218
      $region30: #{tpu_custom_call.1} parent=5 // pred_check_branch
        %221 = sbr.rel (%p219) target = $region32
      $region31: #{tpu_custom_call.1} parent=5 // pred_region
        // Predicated region
        $region33: #{tpu_custom_call.1} parent=31 // pred_check
          %p222 = pneg %p39
        $region34: #{tpu_custom_call.1} parent=31 // pred_check_branch
          %224 = sbr.rel (%p222) target = $region36
        $region35: #{tpu_custom_call.1} parent=31 // pred_region
          %s225 = sand.u32 %s29, 1
          %s226 = scalar_lea.sflag [#allocation3], %s225
          %s227 = sand.u32 %s29, 1
          %s228 = smul.addr %s227, 64
          %s229 = scalar_lea.vmem [#allocation2], %s228
          %s230 = smul.u32 2, %s19
          %s232 = ssub.s32 1024, 1024
          %233 = vsyncadd %s226, %s232
          %s234 = smul.addr %s230, 4
          %s235 = smul.addr %s234, 128
          %s236 = scalar_lea.hbm %s0, %s235
          %s237 = sshll.u32 %s229, 4
          %s238 = int_to_ptr.vmem [resolvable:$true] %s237
          %243 = dma.hbm_to_vmem [thread:$0]  %s236, 1024, %s238, %s226, 512, 512, 32
        $region36: #{tpu_custom_call.1} parent=31 // pred_fallthru
          _
      $region32: #{tpu_custom_call.1} parent=5 // pred_fallthru
        _
      %p244 = scmp.le.s32.totalorder 1, %s19
      %p245 = scmp.lt.s32.totalorder %s19, 3
      %p246 = pnand %p244, %p245
      %p247 = pneg %p246
      // Predicated region
      $region37: #{tpu_custom_call.1} parent=5 // pred_check
        _
      $region38: #{tpu_custom_call.1} parent=5 // pred_check_branch
        %249 = sbr.rel (%p246) target = $region40
      $region39: #{tpu_custom_call.1} parent=5 // pred_region
        %s250 = ssub.s32 %s19, 1
        %s251 = sand.u32 %s32, 1
        %s252 = scalar_lea.sflag [#allocation3], %s251
        %s253 = sand.u32 %s32, 1
        %s254 = smul.addr %s253, 64
        %s255 = scalar_lea.vmem [#allocation2], %s254
        // Predicated region
        $region41: #{tpu_custom_call.1} parent=39 // pred_check
          %p256 = pneg %p45
        $region42: #{tpu_custom_call.1} parent=39 // pred_check_branch
          %258 = sbr.rel (%p256) target = $region44
        $region43: #{tpu_custom_call.1} parent=39 // pred_region
          %259 = dma.done %s252, 1024
        $region44: #{tpu_custom_call.1} parent=39 // pred_fallthru
          _
        // Predicated region
        $region45: #{tpu_custom_call.1} parent=39 // pred_check
          %p260 = pneg %p66
        $region46: #{tpu_custom_call.1} parent=39 // pred_check_branch
          %262 = sbr.rel (%p260) target = $region48
        $region47: #{tpu_custom_call.1} parent=39 // pred_region
          %263 = dma.done [#allocation6], 49152
        $region48: #{tpu_custom_call.1} parent=39 // pred_fallthru
          _
        // Predicated region
        $region49: #{tpu_custom_call.1} parent=39 // pred_check
          %p264 = pneg %p87
        $region50: #{tpu_custom_call.1} parent=39 // pred_check_branch
          %266 = sbr.rel (%p264) target = $region52
        $region51: #{tpu_custom_call.1} parent=39 // pred_region
          %267 = dma.done [#allocation6], 64
        $region52: #{tpu_custom_call.1} parent=39 // pred_fallthru
          _
        // Predicated region
        $region53: #{tpu_custom_call.1} parent=39 // pred_check
          %p268 = pneg %p108
        $region54: #{tpu_custom_call.1} parent=39 // pred_check_branch
          %270 = sbr.rel (%p268) target = $region56
        $region55: #{tpu_custom_call.1} parent=39 // pred_region
          %271 = dma.done [#allocation9], 49152
        $region56: #{tpu_custom_call.1} parent=39 // pred_fallthru
          _
        // Predicated region
        $region57: #{tpu_custom_call.1} parent=39 // pred_check
          %p272 = pneg %p129
        $region58: #{tpu_custom_call.1} parent=39 // pred_check_branch
          %274 = sbr.rel (%p272) target = $region60
        $region59: #{tpu_custom_call.1} parent=39 // pred_region
          %275 = dma.done [#allocation9], 64
        $region60: #{tpu_custom_call.1} parent=39 // pred_fallthru
          _
        %s276 = sand.u32 %s32, 1
        %s277 = scalar_lea.sflag [#allocation3], %s276
        %s278 = sand.u32 %s32, 1
        %s279 = smul.addr %s278, 64
        %s280 = scalar_lea.vmem [#allocation2], %s279
        %p281 = pneg %p45
        %p282 = pneg %p42
        %p283 = pneg %p66
        %p284 = pneg %p63
        %p285 = pneg %p87
        %p286 = pneg %p84
        %p287 = pneg %p108
        %p288 = pneg %p105
        %p289 = pneg %p129
        %p290 = pneg %p126
        %p291 = pneg %p155
        %p292 = pneg %p152
        %s293 = sand.u32 %s142, 1
        %s294 = scalar_lea.sflag [#allocation4], %s293
        %s295 = sand.u32 %s142, 1
        %s296 = smul.addr %s295, 64
        %s297 = scalar_lea.vmem [#allocation11], %s296
        %s298 = smul.u32 2, %s24
        %s299 = smul.u32 2, %s24
        %v303 = vld [vmem:[%s255] sm:$0xff]
        %v304 = vld [vmem:[%s255 + $0x8] sm:$0xff]
        %v305 = vld [vmem:[%s255 + $0x10] sm:$0xff]
        %v306 = vld [vmem:[%s255 + $0x18] sm:$0xff]
        %v307 = vld [vmem:[%s255 + $0x20] sm:$0xff]
        %v308 = vld [vmem:[%s255 + $0x28] sm:$0xff]
        %v309 = vld [vmem:[%s255 + $0x30] sm:$0xff]
        %v310 = vld [vmem:[%s255 + $0x38] sm:$0xff]
        %v311 = vlaneseq
        %v312 = vshrl.u32 %v311, 7
        %v313 = vadd.s32 %v312, 8
        %vm314 = vcmp.lt.s32.totalorder %v312, 0
        %v315 = vsub.s32 0, %v312
        %v316 = vsel %vm314, %v315, %v312
        %v317 = vshrl.u32 %v316, 4
        %v318 = vand.u32 %v316, 15
        %v319 = vsub.s32 0, %v318
        %v320 = vsel %vm314, %v319, %v318
        %vm321 = vcmp.lt.s32.totalorder %v313, 0
        %v322 = vsub.s32 0, %v313
        %v323 = vsel %vm321, %v322, %v313
        %v324 = vshrl.u32 %v323, 4
        %v325 = vand.u32 %v323, 15
        %v326 = vsub.s32 0, %v325
        %v327 = vsel %vm321, %v326, %v325
        %vm328 = vcmp.ne.s32.totalorder %v320, 0
        %vm329 = vcmp.ne.s32.totalorder %v327, 0
        %vm330 = vcmp.lt.s32.totalorder %v320, 0
        %vm331 = vcmp.lt.s32.totalorder %v327, 0
        %vm332 = vmand %vm330, %vm328
        %vm333 = vmand %vm331, %vm329
        %v334 = vadd.s32 %v320, 16
        %v335 = vadd.s32 %v327, 16
        %v336 = vsel %vm332, %v334, %v320
        %v337 = vsel %vm333, %v335, %v327
        %v338 = vpack.c.bf16 %v307, %v303
        %v339 = vpack.c.bf16 %v308, %v304
        %v340 = vpack.c.bf16 %v309, %v305
        %v341 = vpack.c.bf16 %v310, %v306
        %vm342 = vcmp.eq.s32.totalorder %v336, 0
        %vm343 = vcmp.eq.s32.totalorder %v337, 0
        %v345 = vshrl.u32 %v338, 16
        %v347 = vrot.slane %v345, 7
        %v349 = vshrl.u32 %v339, 16
        %v351 = vrot.slane %v349, 7
        %v353 = vshrl.u32 %v340, 16
        %v355 = vrot.slane %v353, 7
        %v357 = vshrl.u32 %v341, 16
        %v359 = vrot.slane %v357, 7
        %v364 = vshll.u32 %v338, 16
        %v366 = vor.u32 %v347, %v364
        %v367 = vshll.u32 %v339, 16
        %v369 = vor.u32 %v351, %v367
        %v370 = vshll.u32 %v340, 16
        %v372 = vor.u32 %v355, %v370
        %v373 = vshll.u32 %v341, 16
        %v375 = vor.u32 %v359, %v373
        %vm380 = vcmask 1040384
        %vm381 = vsmask.f32 256
        %vm382 = vmand %vm380, %vm381
        %v383 = vsel %vm382, %v347, %v366
        %v384 = vsel %vm382, %v351, %v369
        %v385 = vsel %vm382, %v355, %v372
        %v386 = vsel %vm382, %v359, %v375
        %v387 = vsel %vm342, 1, 0
        %v388 = vsel %vm343, 1, 0
        %vm389 = vcmp.eq.s32.totalorder %v387, 1
        %vm390 = vcmp.eq.s32.totalorder %v388, 1
        %vm391 = vmpackc.low %vm389, %vm389
        %vm392 = vmpackc.low %vm390, %vm390
        %v393 = vsel %vm391, 65537, 0
        %v394 = vsel %vm392, 65537, 0
        %v395 = vunpack.c.l.b16 %v393
        %v396 = vunpack.c.l.b16 %v394
        %v397 = vpack.c.b16 %v396, %v395
        %vm398 = vcmp.ne.s16.totalorder %v397, 0
        %v399 = vsel %vm398, 0, %v383
        %v400 = vsel %vm398, 0, %v384
        %v401 = vsel %vm398, 0, %v385
        %v402 = vsel %vm398, 0, %v386
        %vm403 = vcmp.eq.s32.totalorder %v336, 15
        %vm404 = vcmp.eq.s32.totalorder %v337, 15
        %v405 = vrot.slane %v364, 1
        %v406 = vor.u32 %v345, %v405
        %v407 = vrot.slane %v367, 1
        %v408 = vor.u32 %v349, %v407
        %v409 = vrot.slane %v370, 1
        %v410 = vor.u32 %v353, %v409
        %v411 = vrot.slane %v373, 1
        %v412 = vor.u32 %v357, %v411
        %vm421 = vcmask 1047552
        %vm422 = vsmask.f32 7424
        %vm423 = vmand %vm421, %vm422
        %v424 = vsel %vm423, %v406, %v405
        %v425 = vsel %vm423, %v408, %v407
        %v426 = vsel %vm423, %v410, %v409
        %v427 = vsel %vm423, %v412, %v411
        %v428 = vsel %vm403, 1, 0
        %v429 = vsel %vm404, 1, 0
        %vm430 = vcmp.eq.s32.totalorder %v428, 1
        %vm431 = vcmp.eq.s32.totalorder %v429, 1
        %vm432 = vmpackc.low %vm430, %vm430
        %vm433 = vmpackc.low %vm431, %vm431
        %v434 = vsel %vm432, 65537, 0
        %v435 = vsel %vm433, 65537, 0
        %v436 = vunpack.c.l.b16 %v434
        %v437 = vunpack.c.l.b16 %v435
        %v438 = vpack.c.b16 %v437, %v436
        %vm439 = vcmp.ne.s16.totalorder %v438, 0
        %v440 = vsel %vm439, 0, %v424
        %v441 = vsel %vm439, 0, %v425
        %v442 = vsel %vm439, 0, %v426
        %v443 = vsel %vm439, 0, %v427
        %v444 = vld [vmem:[#allocation5] sm:$0xff]
        %v445 = vld [vmem:[#allocation5 + $0x8] sm:$0xff]
        %v446 = vld [vmem:[#allocation5 + $0x10] sm:$0xff]
        %v447 = vld [vmem:[#allocation5 + $0x18] sm:$0xff]
        %v448 = vld [vmem:[#allocation5 + $0x20] sm:$0xff]
        %v449 = vld [vmem:[#allocation5 + $0x28] sm:$0xff]
        %v450 = vld [vmem:[#allocation5 + $0x30] sm:$0xff]
        %v451 = vld [vmem:[#allocation5 + $0x38] sm:$0xff]
        %v452 = vld [vmem:[#allocation5 + $0x40] sm:$0xff]
        %v453 = vld [vmem:[#allocation5 + $0x48] sm:$0xff]
        %v454 = vld [vmem:[#allocation5 + $0x50] sm:$0xff]
        %v455 = vld [vmem:[#allocation5 + $0x58] sm:$0xff]
        %v456 = vld [vmem:[#allocation5 + $0x60] sm:$0xff]
        %v457 = vld [vmem:[#allocation5 + $0x68] sm:$0xff]
        %v458 = vld [vmem:[#allocation5 + $0x70] sm:$0xff]
        %v459 = vld [vmem:[#allocation5 + $0x78] sm:$0xff]
        %v460 = vld [vmem:[#allocation5 + $0x80] sm:$0xff]
        %v461 = vld [vmem:[#allocation5 + $0x88] sm:$0xff]
        %v462 = vld [vmem:[#allocation5 + $0x90] sm:$0xff]
        %v463 = vld [vmem:[#allocation5 + $0x98] sm:$0xff]
        %v464 = vld [vmem:[#allocation5 + $0xa0] sm:$0xff]
        %v465 = vld [vmem:[#allocation5 + $0xa8] sm:$0xff]
        %v466 = vld [vmem:[#allocation5 + $0xb0] sm:$0xff]
        %v467 = vld [vmem:[#allocation5 + $0xb8] sm:$0xff]
        %v468 = vld [vmem:[#allocation5 + $0xc0] sm:$0xff]
        %v469 = vld [vmem:[#allocation5 + $0xc8] sm:$0xff]
        %v470 = vld [vmem:[#allocation5 + $0xd0] sm:$0xff]
        %v471 = vld [vmem:[#allocation5 + $0xd8] sm:$0xff]
        %v472 = vld [vmem:[#allocation5 + $0xe0] sm:$0xff]
        %v473 = vld [vmem:[#allocation5 + $0xe8] sm:$0xff]
        %v474 = vld [vmem:[#allocation5 + $0xf0] sm:$0xff]
        %v475 = vld [vmem:[#allocation5 + $0xf8] sm:$0xff]
        %v476 = vld [vmem:[#allocation5 + $0x100] sm:$0xff]
        %v477 = vld [vmem:[#allocation5 + $0x108] sm:$0xff]
        %v478 = vld [vmem:[#allocation5 + $0x110] sm:$0xff]
        %v479 = vld [vmem:[#allocation5 + $0x118] sm:$0xff]
        %v480 = vld [vmem:[#allocation5 + $0x120] sm:$0xff]
        %v481 = vld [vmem:[#allocation5 + $0x128] sm:$0xff]
        %v482 = vld [vmem:[#allocation5 + $0x130] sm:$0xff]
        %v483 = vld [vmem:[#allocation5 + $0x138] sm:$0xff]
        %v484 = vld [vmem:[#allocation5 + $0x140] sm:$0xff]
        %v485 = vld [vmem:[#allocation5 + $0x148] sm:$0xff]
        %v486 = vld [vmem:[#allocation5 + $0x150] sm:$0xff]
        %v487 = vld [vmem:[#allocation5 + $0x158] sm:$0xff]
        %v488 = vld [vmem:[#allocation5 + $0x160] sm:$0xff]
        %v489 = vld [vmem:[#allocation5 + $0x168] sm:$0xff]
        %v490 = vld [vmem:[#allocation5 + $0x170] sm:$0xff]
        %v491 = vld [vmem:[#allocation5 + $0x178] sm:$0xff]
        %v492 = vld [vmem:[#allocation5 + $0x180] sm:$0xff]
        %v493 = vld [vmem:[#allocation5 + $0x188] sm:$0xff]
        %v494 = vld [vmem:[#allocation5 + $0x190] sm:$0xff]
        %v495 = vld [vmem:[#allocation5 + $0x198] sm:$0xff]
        %v496 = vld [vmem:[#allocation5 + $0x1a0] sm:$0xff]
        %v497 = vld [vmem:[#allocation5 + $0x1a8] sm:$0xff]
        %v498 = vld [vmem:[#allocation5 + $0x1b0] sm:$0xff]
        %v499 = vld [vmem:[#allocation5 + $0x1b8] sm:$0xff]
        %v500 = vld [vmem:[#allocation5 + $0x1c0] sm:$0xff]
        %v501 = vld [vmem:[#allocation5 + $0x1c8] sm:$0xff]
        %v502 = vld [vmem:[#allocation5 + $0x1d0] sm:$0xff]
        %v503 = vld [vmem:[#allocation5 + $0x1d8] sm:$0xff]
        %v504 = vld [vmem:[#allocation5 + $0x1e0] sm:$0xff]
        %v505 = vld [vmem:[#allocation5 + $0x1e8] sm:$0xff]
        %v506 = vld [vmem:[#allocation5 + $0x1f0] sm:$0xff]
        %v507 = vld [vmem:[#allocation5 + $0x1f8] sm:$0xff]
        %v508 = vld [vmem:[#allocation5 + $0x200] sm:$0xff]
        %v509 = vld [vmem:[#allocation5 + $0x208] sm:$0xff]
        %v510 = vld [vmem:[#allocation5 + $0x210] sm:$0xff]
        %v511 = vld [vmem:[#allocation5 + $0x218] sm:$0xff]
        %v512 = vld [vmem:[#allocation5 + $0x220] sm:$0xff]
        %v513 = vld [vmem:[#allocation5 + $0x228] sm:$0xff]
        %v514 = vld [vmem:[#allocation5 + $0x230] sm:$0xff]
        %v515 = vld [vmem:[#allocation5 + $0x238] sm:$0xff]
        %v516 = vld [vmem:[#allocation5 + $0x240] sm:$0xff]
        %v517 = vld [vmem:[#allocation5 + $0x248] sm:$0xff]
        %v518 = vld [vmem:[#allocation5 + $0x250] sm:$0xff]
        %v519 = vld [vmem:[#allocation5 + $0x258] sm:$0xff]
        %v520 = vld [vmem:[#allocation5 + $0x260] sm:$0xff]
        %v521 = vld [vmem:[#allocation5 + $0x268] sm:$0xff]
        %v522 = vld [vmem:[#allocation5 + $0x270] sm:$0xff]
        %v523 = vld [vmem:[#allocation5 + $0x278] sm:$0xff]
        %v524 = vld [vmem:[#allocation5 + $0x280] sm:$0xff]
        %v525 = vld [vmem:[#allocation5 + $0x288] sm:$0xff]
        %v526 = vld [vmem:[#allocation5 + $0x290] sm:$0xff]
        %v527 = vld [vmem:[#allocation5 + $0x298] sm:$0xff]
        %v528 = vld [vmem:[#allocation5 + $0x2a0] sm:$0xff]
        %v529 = vld [vmem:[#allocation5 + $0x2a8] sm:$0xff]
        %v530 = vld [vmem:[#allocation5 + $0x2b0] sm:$0xff]
        %v531 = vld [vmem:[#allocation5 + $0x2b8] sm:$0xff]
        %v532 = vld [vmem:[#allocation5 + $0x2c0] sm:$0xff]
        %v533 = vld [vmem:[#allocation5 + $0x2c8] sm:$0xff]
        %v534 = vld [vmem:[#allocation5 + $0x2d0] sm:$0xff]
        %v535 = vld [vmem:[#allocation5 + $0x2d8] sm:$0xff]
        %v536 = vld [vmem:[#allocation5 + $0x2e0] sm:$0xff]
        %v537 = vld [vmem:[#allocation5 + $0x2e8] sm:$0xff]
        %v538 = vld [vmem:[#allocation5 + $0x2f0] sm:$0xff]
        %v539 = vld [vmem:[#allocation5 + $0x2f8] sm:$0xff]
        %v540 = vld [vmem:[#allocation5 + $0x300] sm:$0xff]
        %v541 = vld [vmem:[#allocation5 + $0x308] sm:$0xff]
        %v542 = vld [vmem:[#allocation5 + $0x310] sm:$0xff]
        %v543 = vld [vmem:[#allocation5 + $0x318] sm:$0xff]
        %v544 = vld [vmem:[#allocation5 + $0x320] sm:$0xff]
        %v545 = vld [vmem:[#allocation5 + $0x328] sm:$0xff]
        %v546 = vld [vmem:[#allocation5 + $0x330] sm:$0xff]
        %v547 = vld [vmem:[#allocation5 + $0x338] sm:$0xff]
        %v548 = vld [vmem:[#allocation5 + $0x340] sm:$0xff]
        %v549 = vld [vmem:[#allocation5 + $0x348] sm:$0xff]
        %v550 = vld [vmem:[#allocation5 + $0x350] sm:$0xff]
        %v551 = vld [vmem:[#allocation5 + $0x358] sm:$0xff]
        %v552 = vld [vmem:[#allocation5 + $0x360] sm:$0xff]
        %v553 = vld [vmem:[#allocation5 + $0x368] sm:$0xff]
        %v554 = vld [vmem:[#allocation5 + $0x370] sm:$0xff]
        %v555 = vld [vmem:[#allocation5 + $0x378] sm:$0xff]
        %v556 = vld [vmem:[#allocation5 + $0x380] sm:$0xff]
        %v557 = vld [vmem:[#allocation5 + $0x388] sm:$0xff]
        %v558 = vld [vmem:[#allocation5 + $0x390] sm:$0xff]
        %v559 = vld [vmem:[#allocation5 + $0x398] sm:$0xff]
        %v560 = vld [vmem:[#allocation5 + $0x3a0] sm:$0xff]
        %v561 = vld [vmem:[#allocation5 + $0x3a8] sm:$0xff]
        %v562 = vld [vmem:[#allocation5 + $0x3b0] sm:$0xff]
        %v563 = vld [vmem:[#allocation5 + $0x3b8] sm:$0xff]
        %v564 = vld [vmem:[#allocation5 + $0x3c0] sm:$0xff]
        %v565 = vld [vmem:[#allocation5 + $0x3c8] sm:$0xff]
        %v566 = vld [vmem:[#allocation5 + $0x3d0] sm:$0xff]
        %v567 = vld [vmem:[#allocation5 + $0x3d8] sm:$0xff]
        %v568 = vld [vmem:[#allocation5 + $0x3e0] sm:$0xff]
        %v569 = vld [vmem:[#allocation5 + $0x3e8] sm:$0xff]
        %v570 = vld [vmem:[#allocation5 + $0x3f0] sm:$0xff]
        %v571 = vld [vmem:[#allocation5 + $0x3f8] sm:$0xff]
        %s572 = scalar_lea.vmem [#allocation5], 1024
        %v573 = vld [vmem:[%s572] sm:$0xff]
        %v574 = vld [vmem:[%s572 + $0x8] sm:$0xff]
        %v575 = vld [vmem:[%s572 + $0x10] sm:$0xff]
        %v576 = vld [vmem:[%s572 + $0x18] sm:$0xff]
        %v577 = vld [vmem:[%s572 + $0x20] sm:$0xff]
        %v578 = vld [vmem:[%s572 + $0x28] sm:$0xff]
        %v579 = vld [vmem:[%s572 + $0x30] sm:$0xff]
        %v580 = vld [vmem:[%s572 + $0x38] sm:$0xff]
        %v581 = vld [vmem:[%s572 + $0x40] sm:$0xff]
        %v582 = vld [vmem:[%s572 + $0x48] sm:$0xff]
        %v583 = vld [vmem:[%s572 + $0x50] sm:$0xff]
        %v584 = vld [vmem:[%s572 + $0x58] sm:$0xff]
        %v585 = vld [vmem:[%s572 + $0x60] sm:$0xff]
        %v586 = vld [vmem:[%s572 + $0x68] sm:$0xff]
        %v587 = vld [vmem:[%s572 + $0x70] sm:$0xff]
        %v588 = vld [vmem:[%s572 + $0x78] sm:$0xff]
        %v589 = vld [vmem:[%s572 + $0x80] sm:$0xff]
        %v590 = vld [vmem:[%s572 + $0x88] sm:$0xff]
        %v591 = vld [vmem:[%s572 + $0x90] sm:$0xff]
        %v592 = vld [vmem:[%s572 + $0x98] sm:$0xff]
        %v593 = vld [vmem:[%s572 + $0xa0] sm:$0xff]
        %v594 = vld [vmem:[%s572 + $0xa8] sm:$0xff]
        %v595 = vld [vmem:[%s572 + $0xb0] sm:$0xff]
        %v596 = vld [vmem:[%s572 + $0xb8] sm:$0xff]
        %v597 = vld [vmem:[%s572 + $0xc0] sm:$0xff]
        %v598 = vld [vmem:[%s572 + $0xc8] sm:$0xff]
        %v599 = vld [vmem:[%s572 + $0xd0] sm:$0xff]
        %v600 = vld [vmem:[%s572 + $0xd8] sm:$0xff]
        %v601 = vld [vmem:[%s572 + $0xe0] sm:$0xff]
        %v602 = vld [vmem:[%s572 + $0xe8] sm:$0xff]
        %v603 = vld [vmem:[%s572 + $0xf0] sm:$0xff]
        %v604 = vld [vmem:[%s572 + $0xf8] sm:$0xff]
        %v605 = vld [vmem:[%s572 + $0x100] sm:$0xff]
        %v606 = vld [vmem:[%s572 + $0x108] sm:$0xff]
        %v607 = vld [vmem:[%s572 + $0x110] sm:$0xff]
        %v608 = vld [vmem:[%s572 + $0x118] sm:$0xff]
        %v609 = vld [vmem:[%s572 + $0x120] sm:$0xff]
        %v610 = vld [vmem:[%s572 + $0x128] sm:$0xff]
        %v611 = vld [vmem:[%s572 + $0x130] sm:$0xff]
        %v612 = vld [vmem:[%s572 + $0x138] sm:$0xff]
        %v613 = vld [vmem:[%s572 + $0x140] sm:$0xff]
        %v614 = vld [vmem:[%s572 + $0x148] sm:$0xff]
        %v615 = vld [vmem:[%s572 + $0x150] sm:$0xff]
        %v616 = vld [vmem:[%s572 + $0x158] sm:$0xff]
        %v617 = vld [vmem:[%s572 + $0x160] sm:$0xff]
        %v618 = vld [vmem:[%s572 + $0x168] sm:$0xff]
        %v619 = vld [vmem:[%s572 + $0x170] sm:$0xff]
        %v620 = vld [vmem:[%s572 + $0x178] sm:$0xff]
        %v621 = vld [vmem:[%s572 + $0x180] sm:$0xff]
        %v622 = vld [vmem:[%s572 + $0x188] sm:$0xff]
        %v623 = vld [vmem:[%s572 + $0x190] sm:$0xff]
        %v624 = vld [vmem:[%s572 + $0x198] sm:$0xff]
        %v625 = vld [vmem:[%s572 + $0x1a0] sm:$0xff]
        %v626 = vld [vmem:[%s572 + $0x1a8] sm:$0xff]
        %v627 = vld [vmem:[%s572 + $0x1b0] sm:$0xff]
        %v628 = vld [vmem:[%s572 + $0x1b8] sm:$0xff]
        %v629 = vld [vmem:[%s572 + $0x1c0] sm:$0xff]
        %v630 = vld [vmem:[%s572 + $0x1c8] sm:$0xff]
        %v631 = vld [vmem:[%s572 + $0x1d0] sm:$0xff]
        %v632 = vld [vmem:[%s572 + $0x1d8] sm:$0xff]
        %v633 = vld [vmem:[%s572 + $0x1e0] sm:$0xff]
        %v634 = vld [vmem:[%s572 + $0x1e8] sm:$0xff]
        %v635 = vld [vmem:[%s572 + $0x1f0] sm:$0xff]
        %v636 = vld [vmem:[%s572 + $0x1f8] sm:$0xff]
        %v637 = vld [vmem:[%s572 + $0x200] sm:$0xff]
        %v638 = vld [vmem:[%s572 + $0x208] sm:$0xff]
        %v639 = vld [vmem:[%s572 + $0x210] sm:$0xff]
        %v640 = vld [vmem:[%s572 + $0x218] sm:$0xff]
        %v641 = vld [vmem:[%s572 + $0x220] sm:$0xff]
        %v642 = vld [vmem:[%s572 + $0x228] sm:$0xff]
        %v643 = vld [vmem:[%s572 + $0x230] sm:$0xff]
        %v644 = vld [vmem:[%s572 + $0x238] sm:$0xff]
        %v645 = vld [vmem:[%s572 + $0x240] sm:$0xff]
        %v646 = vld [vmem:[%s572 + $0x248] sm:$0xff]
        %v647 = vld [vmem:[%s572 + $0x250] sm:$0xff]
        %v648 = vld [vmem:[%s572 + $0x258] sm:$0xff]
        %v649 = vld [vmem:[%s572 + $0x260] sm:$0xff]
        %v650 = vld [vmem:[%s572 + $0x268] sm:$0xff]
        %v651 = vld [vmem:[%s572 + $0x270] sm:$0xff]
        %v652 = vld [vmem:[%s572 + $0x278] sm:$0xff]
        %v653 = vld [vmem:[%s572 + $0x280] sm:$0xff]
        %v654 = vld [vmem:[%s572 + $0x288] sm:$0xff]
        %v655 = vld [vmem:[%s572 + $0x290] sm:$0xff]
        %v656 = vld [vmem:[%s572 + $0x298] sm:$0xff]
        %v657 = vld [vmem:[%s572 + $0x2a0] sm:$0xff]
        %v658 = vld [vmem:[%s572 + $0x2a8] sm:$0xff]
        %v659 = vld [vmem:[%s572 + $0x2b0] sm:$0xff]
        %v660 = vld [vmem:[%s572 + $0x2b8] sm:$0xff]
        %v661 = vld [vmem:[%s572 + $0x2c0] sm:$0xff]
        %v662 = vld [vmem:[%s572 + $0x2c8] sm:$0xff]
        %v663 = vld [vmem:[%s572 + $0x2d0] sm:$0xff]
        %v664 = vld [vmem:[%s572 + $0x2d8] sm:$0xff]
        %v665 = vld [vmem:[%s572 + $0x2e0] sm:$0xff]
        %v666 = vld [vmem:[%s572 + $0x2e8] sm:$0xff]
        %v667 = vld [vmem:[%s572 + $0x2f0] sm:$0xff]
        %v668 = vld [vmem:[%s572 + $0x2f8] sm:$0xff]
        %v669 = vld [vmem:[%s572 + $0x300] sm:$0xff]
        %v670 = vld [vmem:[%s572 + $0x308] sm:$0xff]
        %v671 = vld [vmem:[%s572 + $0x310] sm:$0xff]
        %v672 = vld [vmem:[%s572 + $0x318] sm:$0xff]
        %v673 = vld [vmem:[%s572 + $0x320] sm:$0xff]
        %v674 = vld [vmem:[%s572 + $0x328] sm:$0xff]
        %v675 = vld [vmem:[%s572 + $0x330] sm:$0xff]
        %v676 = vld [vmem:[%s572 + $0x338] sm:$0xff]
        %v677 = vld [vmem:[%s572 + $0x340] sm:$0xff]
        %v678 = vld [vmem:[%s572 + $0x348] sm:$0xff]
        %v679 = vld [vmem:[%s572 + $0x350] sm:$0xff]
        %v680 = vld [vmem:[%s572 + $0x358] sm:$0xff]
        %v681 = vld [vmem:[%s572 + $0x360] sm:$0xff]
        %v682 = vld [vmem:[%s572 + $0x368] sm:$0xff]
        %v683 = vld [vmem:[%s572 + $0x370] sm:$0xff]
        %v684 = vld [vmem:[%s572 + $0x378] sm:$0xff]
        %v685 = vld [vmem:[%s572 + $0x380] sm:$0xff]
        %v686 = vld [vmem:[%s572 + $0x388] sm:$0xff]
        %v687 = vld [vmem:[%s572 + $0x390] sm:$0xff]
        %v688 = vld [vmem:[%s572 + $0x398] sm:$0xff]
        %v689 = vld [vmem:[%s572 + $0x3a0] sm:$0xff]
        %v690 = vld [vmem:[%s572 + $0x3a8] sm:$0xff]
        %v691 = vld [vmem:[%s572 + $0x3b0] sm:$0xff]
        %v692 = vld [vmem:[%s572 + $0x3b8] sm:$0xff]
        %v693 = vld [vmem:[%s572 + $0x3c0] sm:$0xff]
        %v694 = vld [vmem:[%s572 + $0x3c8] sm:$0xff]
        %v695 = vld [vmem:[%s572 + $0x3d0] sm:$0xff]
        %v696 = vld [vmem:[%s572 + $0x3d8] sm:$0xff]
        %v697 = vld [vmem:[%s572 + $0x3e0] sm:$0xff]
        %v698 = vld [vmem:[%s572 + $0x3e8] sm:$0xff]
        %v699 = vld [vmem:[%s572 + $0x3f0] sm:$0xff]
        %v700 = vld [vmem:[%s572 + $0x3f8] sm:$0xff]
        %v829 = vunpack.c.l.b16 %v573
        %v830 = vunpack.c.h.b16 %v573
        %v831 = vunpack.c.l.b16 %v574
        %v832 = vunpack.c.h.b16 %v574
        %v833 = vunpack.c.l.b16 %v575
        %v834 = vunpack.c.h.b16 %v575
        %v835 = vunpack.c.l.b16 %v576
        %v836 = vunpack.c.h.b16 %v576
        %v837 = vunpack.c.l.b16 %v577
        %v838 = vunpack.c.h.b16 %v577
        %v839 = vunpack.c.l.b16 %v578
        %v840 = vunpack.c.h.b16 %v578
        %v841 = vunpack.c.l.b16 %v579
        %v842 = vunpack.c.h.b16 %v579
        %v843 = vunpack.c.l.b16 %v580
        %v844 = vunpack.c.h.b16 %v580
        %v845 = vunpack.c.l.b16 %v581
        %v846 = vunpack.c.h.b16 %v581
        %v847 = vunpack.c.l.b16 %v582
        %v848 = vunpack.c.h.b16 %v582
        %v849 = vunpack.c.l.b16 %v583
        %v850 = vunpack.c.h.b16 %v583
        %v851 = vunpack.c.l.b16 %v584
        %v852 = vunpack.c.h.b16 %v584
        %v853 = vunpack.c.l.b16 %v585
        %v854 = vunpack.c.h.b16 %v585
        %v855 = vunpack.c.l.b16 %v586
        %v856 = vunpack.c.h.b16 %v586
        %v857 = vunpack.c.l.b16 %v587
        %v858 = vunpack.c.h.b16 %v587
        %v859 = vunpack.c.l.b16 %v588
        %v860 = vunpack.c.h.b16 %v588
        %v861 = vunpack.c.l.b16 %v589
        %v862 = vunpack.c.h.b16 %v589
        %v863 = vunpack.c.l.b16 %v590
        %v864 = vunpack.c.h.b16 %v590
        %v865 = vunpack.c.l.b16 %v591
        %v866 = vunpack.c.h.b16 %v591
        %v867 = vunpack.c.l.b16 %v592
        %v868 = vunpack.c.h.b16 %v592
        %v869 = vunpack.c.l.b16 %v593
        %v870 = vunpack.c.h.b16 %v593
        %v871 = vunpack.c.l.b16 %v594
        %v872 = vunpack.c.h.b16 %v594
        %v873 = vunpack.c.l.b16 %v595
        %v874 = vunpack.c.h.b16 %v595
        %v875 = vunpack.c.l.b16 %v596
        %v876 = vunpack.c.h.b16 %v596
        %v877 = vunpack.c.l.b16 %v597
        %v878 = vunpack.c.h.b16 %v597
        %v879 = vunpack.c.l.b16 %v598
        %v880 = vunpack.c.h.b16 %v598
        %v881 = vunpack.c.l.b16 %v599
        %v882 = vunpack.c.h.b16 %v599
        %v883 = vunpack.c.l.b16 %v600
        %v884 = vunpack.c.h.b16 %v600
        %v885 = vunpack.c.l.b16 %v601
        %v886 = vunpack.c.h.b16 %v601
        %v887 = vunpack.c.l.b16 %v602
        %v888 = vunpack.c.h.b16 %v602
        %v889 = vunpack.c.l.b16 %v603
        %v890 = vunpack.c.h.b16 %v603
        %v891 = vunpack.c.l.b16 %v604
        %v892 = vunpack.c.h.b16 %v604
        %v893 = vunpack.c.l.b16 %v605
        %v894 = vunpack.c.h.b16 %v605
        %v895 = vunpack.c.l.b16 %v606
        %v896 = vunpack.c.h.b16 %v606
        %v897 = vunpack.c.l.b16 %v607
        %v898 = vunpack.c.h.b16 %v607
        %v899 = vunpack.c.l.b16 %v608
        %v900 = vunpack.c.h.b16 %v608
        %v901 = vunpack.c.l.b16 %v609
        %v902 = vunpack.c.h.b16 %v609
        %v903 = vunpack.c.l.b16 %v610
        %v904 = vunpack.c.h.b16 %v610
        %v905 = vunpack.c.l.b16 %v611
        %v906 = vunpack.c.h.b16 %v611
        %v907 = vunpack.c.l.b16 %v612
        %v908 = vunpack.c.h.b16 %v612
        %v909 = vunpack.c.l.b16 %v613
        %v910 = vunpack.c.h.b16 %v613
        %v911 = vunpack.c.l.b16 %v614
        %v912 = vunpack.c.h.b16 %v614
        %v913 = vunpack.c.l.b16 %v615
        %v914 = vunpack.c.h.b16 %v615
        %v915 = vunpack.c.l.b16 %v616
        %v916 = vunpack.c.h.b16 %v616
        %v917 = vunpack.c.l.b16 %v617
        %v918 = vunpack.c.h.b16 %v617
        %v919 = vunpack.c.l.b16 %v618
        %v920 = vunpack.c.h.b16 %v618
        %v921 = vunpack.c.l.b16 %v619
        %v922 = vunpack.c.h.b16 %v619
        %v923 = vunpack.c.l.b16 %v620
        %v924 = vunpack.c.h.b16 %v620
        %v925 = vunpack.c.l.b16 %v621
        %v926 = vunpack.c.h.b16 %v621
        %v927 = vunpack.c.l.b16 %v622
        %v928 = vunpack.c.h.b16 %v622
        %v929 = vunpack.c.l.b16 %v623
        %v930 = vunpack.c.h.b16 %v623
        %v931 = vunpack.c.l.b16 %v624
        %v932 = vunpack.c.h.b16 %v624
        %v933 = vunpack.c.l.b16 %v625
        %v934 = vunpack.c.h.b16 %v625
        %v935 = vunpack.c.l.b16 %v626
        %v936 = vunpack.c.h.b16 %v626
        %v937 = vunpack.c.l.b16 %v627
        %v938 = vunpack.c.h.b16 %v627
        %v939 = vunpack.c.l.b16 %v628
        %v940 = vunpack.c.h.b16 %v628
        %v941 = vunpack.c.l.b16 %v629
        %v942 = vunpack.c.h.b16 %v629
        %v943 = vunpack.c.l.b16 %v630
        %v944 = vunpack.c.h.b16 %v630
        %v945 = vunpack.c.l.b16 %v631
        %v946 = vunpack.c.h.b16 %v631
        %v947 = vunpack.c.l.b16 %v632
        %v948 = vunpack.c.h.b16 %v632
        %v949 = vunpack.c.l.b16 %v633
        %v950 = vunpack.c.h.b16 %v633
        %v951 = vunpack.c.l.b16 %v634
        %v952 = vunpack.c.h.b16 %v634
        %v953 = vunpack.c.l.b16 %v635
        %v954 = vunpack.c.h.b16 %v635
        %v955 = vunpack.c.l.b16 %v636
        %v956 = vunpack.c.h.b16 %v636
        %v957 = vunpack.c.l.b16 %v637
        %v958 = vunpack.c.h.b16 %v637
        %v959 = vunpack.c.l.b16 %v638
        %v960 = vunpack.c.h.b16 %v638
        %v961 = vunpack.c.l.b16 %v639
        %v962 = vunpack.c.h.b16 %v639
        %v963 = vunpack.c.l.b16 %v640
        %v964 = vunpack.c.h.b16 %v640
        %v965 = vunpack.c.l.b16 %v641
        %v966 = vunpack.c.h.b16 %v641
        %v967 = vunpack.c.l.b16 %v642
        %v968 = vunpack.c.h.b16 %v642
        %v969 = vunpack.c.l.b16 %v643
        %v970 = vunpack.c.h.b16 %v643
        %v971 = vunpack.c.l.b16 %v644
        %v972 = vunpack.c.h.b16 %v644
        %v973 = vunpack.c.l.b16 %v645
        %v974 = vunpack.c.h.b16 %v645
        %v975 = vunpack.c.l.b16 %v646
        %v976 = vunpack.c.h.b16 %v646
        %v977 = vunpack.c.l.b16 %v647
        %v978 = vunpack.c.h.b16 %v647
        %v979 = vunpack.c.l.b16 %v648
        %v980 = vunpack.c.h.b16 %v648
        %v981 = vunpack.c.l.b16 %v649
        %v982 = vunpack.c.h.b16 %v649
        %v983 = vunpack.c.l.b16 %v650
        %v984 = vunpack.c.h.b16 %v650
        %v985 = vunpack.c.l.b16 %v651
        %v986 = vunpack.c.h.b16 %v651
        %v987 = vunpack.c.l.b16 %v652
        %v988 = vunpack.c.h.b16 %v652
        %v989 = vunpack.c.l.b16 %v653
        %v990 = vunpack.c.h.b16 %v653
        %v991 = vunpack.c.l.b16 %v654
        %v992 = vunpack.c.h.b16 %v654
        %v993 = vunpack.c.l.b16 %v655
        %v994 = vunpack.c.h.b16 %v655
        %v995 = vunpack.c.l.b16 %v656
        %v996 = vunpack.c.h.b16 %v656
        %v997 = vunpack.c.l.b16 %v657
        %v998 = vunpack.c.h.b16 %v657
        %v999 = vunpack.c.l.b16 %v658
        %v1000 = vunpack.c.h.b16 %v658
        %v1001 = vunpack.c.l.b16 %v659
        %v1002 = vunpack.c.h.b16 %v659
        %v1003 = vunpack.c.l.b16 %v660
        %v1004 = vunpack.c.h.b16 %v660
        %v1005 = vunpack.c.l.b16 %v661
        %v1006 = vunpack.c.h.b16 %v661
        %v1007 = vunpack.c.l.b16 %v662
        %v1008 = vunpack.c.h.b16 %v662
        %v1009 = vunpack.c.l.b16 %v663
        %v1010 = vunpack.c.h.b16 %v663
        %v1011 = vunpack.c.l.b16 %v664
        %v1012 = vunpack.c.h.b16 %v664
        %v1013 = vunpack.c.l.b16 %v665
        %v1014 = vunpack.c.h.b16 %v665
        %v1015 = vunpack.c.l.b16 %v666
        %v1016 = vunpack.c.h.b16 %v666
        %v1017 = vunpack.c.l.b16 %v667
        %v1018 = vunpack.c.h.b16 %v667
        %v1019 = vunpack.c.l.b16 %v668
        %v1020 = vunpack.c.h.b16 %v668
        %v1021 = vunpack.c.l.b16 %v669
        %v1022 = vunpack.c.h.b16 %v669
        %v1023 = vunpack.c.l.b16 %v670
        %v1024 = vunpack.c.h.b16 %v670
        %v1025 = vunpack.c.l.b16 %v671
        %v1026 = vunpack.c.h.b16 %v671
        %v1027 = vunpack.c.l.b16 %v672
        %v1028 = vunpack.c.h.b16 %v672
        %v1029 = vunpack.c.l.b16 %v673
        %v1030 = vunpack.c.h.b16 %v673
        %v1031 = vunpack.c.l.b16 %v674
        %v1032 = vunpack.c.h.b16 %v674
        %v1033 = vunpack.c.l.b16 %v675
        %v1034 = vunpack.c.h.b16 %v675
        %v1035 = vunpack.c.l.b16 %v676
        %v1036 = vunpack.c.h.b16 %v676
        %v1037 = vunpack.c.l.b16 %v677
        %v1038 = vunpack.c.h.b16 %v677
        %v1039 = vunpack.c.l.b16 %v678
        %v1040 = vunpack.c.h.b16 %v678
        %v1041 = vunpack.c.l.b16 %v679
        %v1042 = vunpack.c.h.b16 %v679
        %v1043 = vunpack.c.l.b16 %v680
        %v1044 = vunpack.c.h.b16 %v680
        %v1045 = vunpack.c.l.b16 %v681
        %v1046 = vunpack.c.h.b16 %v681
        %v1047 = vunpack.c.l.b16 %v682
        %v1048 = vunpack.c.h.b16 %v682
        %v1049 = vunpack.c.l.b16 %v683
        %v1050 = vunpack.c.h.b16 %v683
        %v1051 = vunpack.c.l.b16 %v684
        %v1052 = vunpack.c.h.b16 %v684
        %v1053 = vunpack.c.l.b16 %v685
        %v1054 = vunpack.c.h.b16 %v685
        %v1055 = vunpack.c.l.b16 %v686
        %v1056 = vunpack.c.h.b16 %v686
        %v1057 = vunpack.c.l.b16 %v687
        %v1058 = vunpack.c.h.b16 %v687
        %v1059 = vunpack.c.l.b16 %v688
        %v1060 = vunpack.c.h.b16 %v688
        %v1061 = vunpack.c.l.b16 %v689
        %v1062 = vunpack.c.h.b16 %v689
        %v1063 = vunpack.c.l.b16 %v690
        %v1064 = vunpack.c.h.b16 %v690
        %v1065 = vunpack.c.l.b16 %v691
        %v1066 = vunpack.c.h.b16 %v691
        %v1067 = vunpack.c.l.b16 %v692
        %v1068 = vunpack.c.h.b16 %v692
        %v1069 = vunpack.c.l.b16 %v693
        %v1070 = vunpack.c.h.b16 %v693
        %v1071 = vunpack.c.l.b16 %v694
        %v1072 = vunpack.c.h.b16 %v694
        %v1073 = vunpack.c.l.b16 %v695
        %v1074 = vunpack.c.h.b16 %v695
        %v1075 = vunpack.c.l.b16 %v696
        %v1076 = vunpack.c.h.b16 %v696
        %v1077 = vunpack.c.l.b16 %v697
        %v1078 = vunpack.c.h.b16 %v697
        %v1079 = vunpack.c.l.b16 %v698
        %v1080 = vunpack.c.h.b16 %v698
        %v1081 = vunpack.c.l.b16 %v699
        %v1082 = vunpack.c.h.b16 %v699
        %v1083 = vunpack.c.l.b16 %v700
        %v1084 = vunpack.c.h.b16 %v700
        %v1085 = vpack.c.b16 %v833, %v829
        %v1086 = vpack.c.b16 %v834, %v830
        %v1087 = vpack.c.b16 %v835, %v831
        %v1088 = vpack.c.b16 %v836, %v832
        %v1089 = vpack.c.b16 %v841, %v837
        %v1090 = vpack.c.b16 %v842, %v838
        %v1091 = vpack.c.b16 %v843, %v839
        %v1092 = vpack.c.b16 %v844, %v840
        %v1093 = vpack.c.b16 %v849, %v845
        %v1094 = vpack.c.b16 %v850, %v846
        %v1095 = vpack.c.b16 %v851, %v847
        %v1096 = vpack.c.b16 %v852, %v848
        %v1097 = vpack.c.b16 %v857, %v853
        %v1098 = vpack.c.b16 %v858, %v854
        %v1099 = vpack.c.b16 %v859, %v855
        %v1100 = vpack.c.b16 %v860, %v856
        %v1101 = vpack.c.b16 %v865, %v861
        %v1102 = vpack.c.b16 %v866, %v862
        %v1103 = vpack.c.b16 %v867, %v863
        %v1104 = vpack.c.b16 %v868, %v864
        %v1105 = vpack.c.b16 %v873, %v869
        %v1106 = vpack.c.b16 %v874, %v870
        %v1107 = vpack.c.b16 %v875, %v871
        %v1108 = vpack.c.b16 %v876, %v872
        %v1109 = vpack.c.b16 %v881, %v877
        %v1110 = vpack.c.b16 %v882, %v878
        %v1111 = vpack.c.b16 %v883, %v879
        %v1112 = vpack.c.b16 %v884, %v880
        %v1113 = vpack.c.b16 %v889, %v885
        %v1114 = vpack.c.b16 %v890, %v886
        %v1115 = vpack.c.b16 %v891, %v887
        %v1116 = vpack.c.b16 %v892, %v888
        %v1117 = vpack.c.b16 %v897, %v893
        %v1118 = vpack.c.b16 %v898, %v894
        %v1119 = vpack.c.b16 %v899, %v895
        %v1120 = vpack.c.b16 %v900, %v896
        %v1121 = vpack.c.b16 %v905, %v901
        %v1122 = vpack.c.b16 %v906, %v902
        %v1123 = vpack.c.b16 %v907, %v903
        %v1124 = vpack.c.b16 %v908, %v904
        %v1125 = vpack.c.b16 %v913, %v909
        %v1126 = vpack.c.b16 %v914, %v910
        %v1127 = vpack.c.b16 %v915, %v911
        %v1128 = vpack.c.b16 %v916, %v912
        %v1129 = vpack.c.b16 %v921, %v917
        %v1130 = vpack.c.b16 %v922, %v918
        %v1131 = vpack.c.b16 %v923, %v919
        %v1132 = vpack.c.b16 %v924, %v920
        %v1133 = vpack.c.b16 %v929, %v925
        %v1134 = vpack.c.b16 %v930, %v926
        %v1135 = vpack.c.b16 %v931, %v927
        %v1136 = vpack.c.b16 %v932, %v928
        %v1137 = vpack.c.b16 %v937, %v933
        %v1138 = vpack.c.b16 %v938, %v934
        %v1139 = vpack.c.b16 %v939, %v935
        %v1140 = vpack.c.b16 %v940, %v936
        %v1141 = vpack.c.b16 %v945, %v941
        %v1142 = vpack.c.b16 %v946, %v942
        %v1143 = vpack.c.b16 %v947, %v943
        %v1144 = vpack.c.b16 %v948, %v944
        %v1145 = vpack.c.b16 %v953, %v949
        %v1146 = vpack.c.b16 %v954, %v950
        %v1147 = vpack.c.b16 %v955, %v951
        %v1148 = vpack.c.b16 %v956, %v952
        %v1149 = vpack.c.b16 %v961, %v957
        %v1150 = vpack.c.b16 %v962, %v958
        %v1151 = vpack.c.b16 %v963, %v959
        %v1152 = vpack.c.b16 %v964, %v960
        %v1153 = vpack.c.b16 %v969, %v965
        %v1154 = vpack.c.b16 %v970, %v966
        %v1155 = vpack.c.b16 %v971, %v967
        %v1156 = vpack.c.b16 %v972, %v968
        %v1157 = vpack.c.b16 %v977, %v973
        %v1158 = vpack.c.b16 %v978, %v974
        %v1159 = vpack.c.b16 %v979, %v975
        %v1160 = vpack.c.b16 %v980, %v976
        %v1161 = vpack.c.b16 %v985, %v981
        %v1162 = vpack.c.b16 %v986, %v982
        %v1163 = vpack.c.b16 %v987, %v983
        %v1164 = vpack.c.b16 %v988, %v984
        %v1165 = vpack.c.b16 %v993, %v989
        %v1166 = vpack.c.b16 %v994, %v990
        %v1167 = vpack.c.b16 %v995, %v991
        %v1168 = vpack.c.b16 %v996, %v992
        %v1169 = vpack.c.b16 %v1001, %v997
        %v1170 = vpack.c.b16 %v1002, %v998
        %v1171 = vpack.c.b16 %v1003, %v999
        %v1172 = vpack.c.b16 %v1004, %v1000
        %v1173 = vpack.c.b16 %v1009, %v1005
        %v1174 = vpack.c.b16 %v1010, %v1006
        %v1175 = vpack.c.b16 %v1011, %v1007
        %v1176 = vpack.c.b16 %v1012, %v1008
        %v1177 = vpack.c.b16 %v1017, %v1013
        %v1178 = vpack.c.b16 %v1018, %v1014
        %v1179 = vpack.c.b16 %v1019, %v1015
        %v1180 = vpack.c.b16 %v1020, %v1016
        %v1181 = vpack.c.b16 %v1025, %v1021
        %v1182 = vpack.c.b16 %v1026, %v1022
        %v1183 = vpack.c.b16 %v1027, %v1023
        %v1184 = vpack.c.b16 %v1028, %v1024
        %v1185 = vpack.c.b16 %v1033, %v1029
        %v1186 = vpack.c.b16 %v1034, %v1030
        %v1187 = vpack.c.b16 %v1035, %v1031
        %v1188 = vpack.c.b16 %v1036, %v1032
        %v1189 = vpack.c.b16 %v1041, %v1037
        %v1190 = vpack.c.b16 %v1042, %v1038
        %v1191 = vpack.c.b16 %v1043, %v1039
        %v1192 = vpack.c.b16 %v1044, %v1040
        %v1193 = vpack.c.b16 %v1049, %v1045
        %v1194 = vpack.c.b16 %v1050, %v1046
        %v1195 = vpack.c.b16 %v1051, %v1047
        %v1196 = vpack.c.b16 %v1052, %v1048
        %v1197 = vpack.c.b16 %v1057, %v1053
        %v1198 = vpack.c.b16 %v1058, %v1054
        %v1199 = vpack.c.b16 %v1059, %v1055
        %v1200 = vpack.c.b16 %v1060, %v1056
        %v1201 = vpack.c.b16 %v1065, %v1061
        %v1202 = vpack.c.b16 %v1066, %v1062
        %v1203 = vpack.c.b16 %v1067, %v1063
        %v1204 = vpack.c.b16 %v1068, %v1064
        %v1205 = vpack.c.b16 %v1073, %v1069
        %v1206 = vpack.c.b16 %v1074, %v1070
        %v1207 = vpack.c.b16 %v1075, %v1071
        %v1208 = vpack.c.b16 %v1076, %v1072
        %v1209 = vpack.c.b16 %v1081, %v1077
        %v1210 = vpack.c.b16 %v1082, %v1078
        %v1211 = vpack.c.b16 %v1083, %v1079
        %v1212 = vpack.c.b16 %v1084, %v1080
        %1341 = vmatprep.subr.bf16.mxu0 %v1086
        %1342 = vmatpush1.bf16.msra.mxu0 %v1085
        %1343 = vmatprep.subr.bf16.mxu0 %v1090
        %1344 = vmatpush1.bf16.msra.mxu0 %v1089
        %1345 = vmatprep.subr.bf16.mxu0 %v1094
        %1346 = vmatpush1.bf16.msra.mxu0 %v1093
        %1347 = vmatprep.subr.bf16.mxu0 %v1098
        %1348 = vmatpush1.bf16.msra.mxu0 %v1097
        %1349 = vmatprep.subr.bf16.mxu0 %v1102
        %1350 = vmatpush1.bf16.msra.mxu0 %v1101
        %1351 = vmatprep.subr.bf16.mxu0 %v1106
        %1352 = vmatpush1.bf16.msra.mxu0 %v1105
        %1353 = vmatprep.subr.bf16.mxu0 %v1110
        %1354 = vmatpush1.bf16.msra.mxu0 %v1109
        %1355 = vmatprep.subr.bf16.mxu0 %v1114
        %1356 = vmatpush1.bf16.msra.mxu0 %v1113
        %1357 = vmatprep.subr.bf16.mxu0 %v1118
        %1358 = vmatpush1.bf16.msra.mxu0 %v1117
        %1359 = vmatprep.subr.bf16.mxu0 %v1122
        %1360 = vmatpush1.bf16.msra.mxu0 %v1121
        %1361 = vmatprep.subr.bf16.mxu0 %v1126
        %1362 = vmatpush1.bf16.msra.mxu0 %v1125
        %1363 = vmatprep.subr.bf16.mxu0 %v1130
        %1364 = vmatpush1.bf16.msra.mxu0 %v1129
        %1365 = vmatprep.subr.bf16.mxu0 %v1134
        %1366 = vmatpush1.bf16.msra.mxu0 %v1133
        %1367 = vmatprep.subr.bf16.mxu0 %v1138
        %1368 = vmatpush1.bf16.msra.mxu0 %v1137
        %1369 = vmatprep.subr.bf16.mxu0 %v1142
        %1370 = vmatpush1.bf16.msra.mxu0 %v1141
        %1371 = vmatprep.subr.bf16.mxu0 %v1146
        %1372 = vmatpush1.bf16.msra.mxu0 %v1145
        %1373 = vmatprep.mubr.bf16.mxu0 %v339
        %1374 = vmatmul.mubr.bf16.gmra.mrb[0].mxu0 %v338
        %v1375 = vpop.f32.mrb[0].mxu0
        %v1376 = vadd.f32 0.0, %v1375
        %v1377 = vpop.f32.mrb[0].mxu0
        %v1378 = vadd.f32 0.0, %v1377
        %v1379 = vpop.f32.mrb[0].mxu0
        %v1380 = vadd.f32 0.0, %v1379
        %v1381 = vpop.f32.mrb[0].mxu0
        %v1382 = vadd.f32 0.0, %v1381
        %1383 = vdwg.mxu0
        %1384 = vmatprep.subr.bf16.mxu0 %v1150
        %1385 = vmatpush1.bf16.msra.mxu0 %v1149
        %1386 = vmatprep.subr.bf16.mxu0 %v1154
        %1387 = vmatpush1.bf16.msra.mxu0 %v1153
        %1388 = vmatprep.subr.bf16.mxu0 %v1158
        %1389 = vmatpush1.bf16.msra.mxu0 %v1157
        %1390 = vmatprep.subr.bf16.mxu0 %v1162
        %1391 = vmatpush1.bf16.msra.mxu0 %v1161
        %1392 = vmatprep.subr.bf16.mxu0 %v1166
        %1393 = vmatpush1.bf16.msra.mxu0 %v1165
        %1394 = vmatprep.subr.bf16.mxu0 %v1170
        %1395 = vmatpush1.bf16.msra.mxu0 %v1169
        %1396 = vmatprep.subr.bf16.mxu0 %v1174
        %1397 = vmatpush1.bf16.msra.mxu0 %v1173
        %1398 = vmatprep.subr.bf16.mxu0 %v1178
        %1399 = vmatpush1.bf16.msra.mxu0 %v1177
        %1400 = vmatprep.subr.bf16.mxu0 %v1182
        %1401 = vmatpush1.bf16.msra.mxu0 %v1181
        %1402 = vmatprep.subr.bf16.mxu0 %v1186
        %1403 = vmatpush1.bf16.msra.mxu0 %v1185
        %1404 = vmatprep.subr.bf16.mxu0 %v1190
        %1405 = vmatpush1.bf16.msra.mxu0 %v1189
        %1406 = vmatprep.subr.bf16.mxu0 %v1194
        %1407 = vmatpush1.bf16.msra.mxu0 %v1193
        %1408 = vmatprep.subr.bf16.mxu0 %v1198
        %1409 = vmatpush1.bf16.msra.mxu0 %v1197
        %1410 = vmatprep.subr.bf16.mxu0 %v1202
        %1411 = vmatpush1.bf16.msra.mxu0 %v1201
        %1412 = vmatprep.subr.bf16.mxu0 %v1206
        %1413 = vmatpush1.bf16.msra.mxu0 %v1205
        %1414 = vmatprep.subr.bf16.mxu0 %v1210
        %1415 = vmatpush1.bf16.msra.mxu0 %v1209
        %1416 = vmatprep.mubr.bf16.mxu0 %v341
        %1417 = vmatmul.mubr.bf16.gmra.mrb[0].mxu0 %v340
        %v1418 = vpop.f32.mrb[0].mxu0
        %v1419 = vadd.f32 %v1376, %v1418
        %v1420 = vpop.f32.mrb[0].mxu0
        %v1421 = vadd.f32 %v1378, %v1420
        %v1422 = vpop.f32.mrb[0].mxu0
        %v1423 = vadd.f32 %v1380, %v1422
        %v1424 = vpop.f32.mrb[0].mxu0
        %v1425 = vadd.f32 %v1382, %v1424
        %1426 = vdwg.mxu0
        %1427 = vmatprep.subr.bf16.mxu0 %v1088
        %1428 = vmatpush1.bf16.msra.mxu0 %v1087
        %1429 = vmatprep.subr.bf16.mxu0 %v1092
        %1430 = vmatpush1.bf16.msra.mxu0 %v1091
        %1431 = vmatprep.subr.bf16.mxu0 %v1096
        %1432 = vmatpush1.bf16.msra.mxu0 %v1095
        %1433 = vmatprep.subr.bf16.mxu0 %v1100
        %1434 = vmatpush1.bf16.msra.mxu0 %v1099
        %1435 = vmatprep.subr.bf16.mxu0 %v1104
        %1436 = vmatpush1.bf16.msra.mxu0 %v1103
        %1437 = vmatprep.subr.bf16.mxu0 %v1108
        %1438 = vmatpush1.bf16.msra.mxu0 %v1107
        %1439 = vmatprep.subr.bf16.mxu0 %v1112
        %1440 = vmatpush1.bf16.msra.mxu0 %v1111
        %1441 = vmatprep.subr.bf16.mxu0 %v1116
        %1442 = vmatpush1.bf16.msra.mxu0 %v1115
        %1443 = vmatprep.subr.bf16.mxu0 %v1120
        %1444 = vmatpush1.bf16.msra.mxu0 %v1119
        %1445 = vmatprep.subr.bf16.mxu0 %v1124
        %1446 = vmatpush1.bf16.msra.mxu0 %v1123
        %1447 = vmatprep.subr.bf16.mxu0 %v1128
        %1448 = vmatpush1.bf16.msra.mxu0 %v1127
        %1449 = vmatprep.subr.bf16.mxu0 %v1132
        %1450 = vmatpush1.bf16.msra.mxu0 %v1131
        %1451 = vmatprep.subr.bf16.mxu0 %v1136
        %1452 = vmatpush1.bf16.msra.mxu0 %v1135
        %1453 = vmatprep.subr.bf16.mxu0 %v1140
        %1454 = vmatpush1.bf16.msra.mxu0 %v1139
        %1455 = vmatprep.subr.bf16.mxu0 %v1144
        %1456 = vmatpush1.bf16.msra.mxu0 %v1143
        %1457 = vmatprep.subr.bf16.mxu0 %v1148
        %1458 = vmatpush1.bf16.msra.mxu0 %v1147
        %1459 = vmatprep.mubr.bf16.mxu0 %v339
        %1460 = vmatmul.mubr.bf16.gmra.mrb[0].mxu0 %v338
        %v1461 = vpop.f32.mrb[0].mxu0
        %v1462 = vadd.f32 0.0, %v1461
        %v1463 = vpop.f32.mrb[0].mxu0
        %v1464 = vadd.f32 0.0, %v1463
        %v1465 = vpop.f32.mrb[0].mxu0
        %v1466 = vadd.f32 0.0, %v1465
        %v1467 = vpop.f32.mrb[0].mxu0
        %v1468 = vadd.f32 0.0, %v1467
        %1469 = vdwg.mxu0
        %1470 = vmatprep.subr.bf16.mxu0 %v1152
        %1471 = vmatpush1.bf16.msra.mxu0 %v1151
        %1472 = vmatprep.subr.bf16.mxu0 %v1156
        %1473 = vmatpush1.bf16.msra.mxu0 %v1155
        %1474 = vmatprep.subr.bf16.mxu0 %v1160
        %1475 = vmatpush1.bf16.msra.mxu0 %v1159
        %1476 = vmatprep.subr.bf16.mxu0 %v1164
        %1477 = vmatpush1.bf16.msra.mxu0 %v1163
        %1478 = vmatprep.subr.bf16.mxu0 %v1168
        %1479 = vmatpush1.bf16.msra.mxu0 %v1167
        %1480 = vmatprep.subr.bf16.mxu0 %v1172
        %1481 = vmatpush1.bf16.msra.mxu0 %v1171
        %1482 = vmatprep.subr.bf16.mxu0 %v1176
        %1483 = vmatpush1.bf16.msra.mxu0 %v1175
        %1484 = vmatprep.subr.bf16.mxu0 %v1180
        %1485 = vmatpush1.bf16.msra.mxu0 %v1179
        %1486 = vmatprep.subr.bf16.mxu0 %v1184
        %1487 = vmatpush1.bf16.msra.mxu0 %v1183
        %1488 = vmatprep.subr.bf16.mxu0 %v1188
        %1489 = vmatpush1.bf16.msra.mxu0 %v1187
        %1490 = vmatprep.subr.bf16.mxu0 %v1192
        %1491 = vmatpush1.bf16.msra.mxu0 %v1191
        %1492 = vmatprep.subr.bf16.mxu0 %v1196
        %1493 = vmatpush1.bf16.msra.mxu0 %v1195
        %1494 = vmatprep.subr.bf16.mxu0 %v1200
        %1495 = vmatpush1.bf16.msra.mxu0 %v1199
        %1496 = vmatprep.subr.bf16.mxu0 %v1204
        %1497 = vmatpush1.bf16.msra.mxu0 %v1203
        %1498 = vmatprep.subr.bf16.mxu0 %v1208
        %1499 = vmatpush1.bf16.msra.mxu0 %v1207
        %1500 = vmatprep.subr.bf16.mxu0 %v1212
        %1501 = vmatpush1.bf16.msra.mxu0 %v1211
        %1502 = vmatprep.mubr.bf16.mxu0 %v341
        %1503 = vmatmul.mubr.bf16.gmra.mrb[0].mxu0 %v340
        %v1504 = vpop.f32.mrb[0].mxu0
        %v1505 = vadd.f32 %v1462, %v1504
        %v1506 = vpop.f32.mrb[0].mxu0
        %v1507 = vadd.f32 %v1464, %v1506
        %v1508 = vpop.f32.mrb[0].mxu0
        %v1509 = vadd.f32 %v1466, %v1508
        %v1510 = vpop.f32.mrb[0].mxu0
        %v1511 = vadd.f32 %v1468, %v1510
        %1512 = vdwg.mxu0
        %v1641 = vunpack.c.l.b16 %v444
        %v1642 = vunpack.c.h.b16 %v444
        %v1643 = vunpack.c.l.b16 %v445
        %v1644 = vunpack.c.h.b16 %v445
        %v1645 = vunpack.c.l.b16 %v446
        %v1646 = vunpack.c.h.b16 %v446
        %v1647 = vunpack.c.l.b16 %v447
        %v1648 = vunpack.c.h.b16 %v447
        %v1649 = vunpack.c.l.b16 %v448
        %v1650 = vunpack.c.h.b16 %v448
        %v1651 = vunpack.c.l.b16 %v449
        %v1652 = vunpack.c.h.b16 %v449
        %v1653 = vunpack.c.l.b16 %v450
        %v1654 = vunpack.c.h.b16 %v450
        %v1655 = vunpack.c.l.b16 %v451
        %v1656 = vunpack.c.h.b16 %v451
        %v1657 = vunpack.c.l.b16 %v452
        %v1658 = vunpack.c.h.b16 %v452
        %v1659 = vunpack.c.l.b16 %v453
        %v1660 = vunpack.c.h.b16 %v453
        %v1661 = vunpack.c.l.b16 %v454
        %v1662 = vunpack.c.h.b16 %v454
        %v1663 = vunpack.c.l.b16 %v455
        %v1664 = vunpack.c.h.b16 %v455
        %v1665 = vunpack.c.l.b16 %v456
        %v1666 = vunpack.c.h.b16 %v456
        %v1667 = vunpack.c.l.b16 %v457
        %v1668 = vunpack.c.h.b16 %v457
        %v1669 = vunpack.c.l.b16 %v458
        %v1670 = vunpack.c.h.b16 %v458
        %v1671 = vunpack.c.l.b16 %v459
        %v1672 = vunpack.c.h.b16 %v459
        %v1673 = vunpack.c.l.b16 %v460
        %v1674 = vunpack.c.h.b16 %v460
        %v1675 = vunpack.c.l.b16 %v461
        %v1676 = vunpack.c.h.b16 %v461
        %v1677 = vunpack.c.l.b16 %v462
        %v1678 = vunpack.c.h.b16 %v462
        %v1679 = vunpack.c.l.b16 %v463
        %v1680 = vunpack.c.h.b16 %v463
        %v1681 = vunpack.c.l.b16 %v464
        %v1682 = vunpack.c.h.b16 %v464
        %v1683 = vunpack.c.l.b16 %v465
        %v1684 = vunpack.c.h.b16 %v465
        %v1685 = vunpack.c.l.b16 %v466
        %v1686 = vunpack.c.h.b16 %v466
        %v1687 = vunpack.c.l.b16 %v467
        %v1688 = vunpack.c.h.b16 %v467
        %v1689 = vunpack.c.l.b16 %v468
        %v1690 = vunpack.c.h.b16 %v468
        %v1691 = vunpack.c.l.b16 %v469
        %v1692 = vunpack.c.h.b16 %v469
        %v1693 = vunpack.c.l.b16 %v470
        %v1694 = vunpack.c.h.b16 %v470
        %v1695 = vunpack.c.l.b16 %v471
        %v1696 = vunpack.c.h.b16 %v471
        %v1697 = vunpack.c.l.b16 %v472
        %v1698 = vunpack.c.h.b16 %v472
        %v1699 = vunpack.c.l.b16 %v473
        %v1700 = vunpack.c.h.b16 %v473
        %v1701 = vunpack.c.l.b16 %v474
        %v1702 = vunpack.c.h.b16 %v474
        %v1703 = vunpack.c.l.b16 %v475
        %v1704 = vunpack.c.h.b16 %v475
        %v1705 = vunpack.c.l.b16 %v476
        %v1706 = vunpack.c.h.b16 %v476
        %v1707 = vunpack.c.l.b16 %v477
        %v1708 = vunpack.c.h.b16 %v477
        %v1709 = vunpack.c.l.b16 %v478
        %v1710 = vunpack.c.h.b16 %v478
        %v1711 = vunpack.c.l.b16 %v479
        %v1712 = vunpack.c.h.b16 %v479
        %v1713 = vunpack.c.l.b16 %v480
        %v1714 = vunpack.c.h.b16 %v480
        %v1715 = vunpack.c.l.b16 %v481
        %v1716 = vunpack.c.h.b16 %v481
        %v1717 = vunpack.c.l.b16 %v482
        %v1718 = vunpack.c.h.b16 %v482
        %v1719 = vunpack.c.l.b16 %v483
        %v1720 = vunpack.c.h.b16 %v483
        %v1721 = vunpack.c.l.b16 %v484
        %v1722 = vunpack.c.h.b16 %v484
        %v1723 = vunpack.c.l.b16 %v485
        %v1724 = vunpack.c.h.b16 %v485
        %v1725 = vunpack.c.l.b16 %v486
        %v1726 = vunpack.c.h.b16 %v486
        %v1727 = vunpack.c.l.b16 %v487
        %v1728 = vunpack.c.h.b16 %v487
        %v1729 = vunpack.c.l.b16 %v488
        %v1730 = vunpack.c.h.b16 %v488
        %v1731 = vunpack.c.l.b16 %v489
        %v1732 = vunpack.c.h.b16 %v489
        %v1733 = vunpack.c.l.b16 %v490
        %v1734 = vunpack.c.h.b16 %v490
        %v1735 = vunpack.c.l.b16 %v491
        %v1736 = vunpack.c.h.b16 %v491
        %v1737 = vunpack.c.l.b16 %v492
        %v1738 = vunpack.c.h.b16 %v492
        %v1739 = vunpack.c.l.b16 %v493
        %v1740 = vunpack.c.h.b16 %v493
        %v1741 = vunpack.c.l.b16 %v494
        %v1742 = vunpack.c.h.b16 %v494
        %v1743 = vunpack.c.l.b16 %v495
        %v1744 = vunpack.c.h.b16 %v495
        %v1745 = vunpack.c.l.b16 %v496
        %v1746 = vunpack.c.h.b16 %v496
        %v1747 = vunpack.c.l.b16 %v497
        %v1748 = vunpack.c.h.b16 %v497
        %v1749 = vunpack.c.l.b16 %v498
        %v1750 = vunpack.c.h.b16 %v498
        %v1751 = vunpack.c.l.b16 %v499
        %v1752 = vunpack.c.h.b16 %v499
        %v1753 = vunpack.c.l.b16 %v500
        %v1754 = vunpack.c.h.b16 %v500
        %v1755 = vunpack.c.l.b16 %v501
        %v1756 = vunpack.c.h.b16 %v501
        %v1757 = vunpack.c.l.b16 %v502
        %v1758 = vunpack.c.h.b16 %v502
        %v1759 = vunpack.c.l.b16 %v503
        %v1760 = vunpack.c.h.b16 %v503
        %v1761 = vunpack.c.l.b16 %v504
        %v1762 = vunpack.c.h.b16 %v504
        %v1763 = vunpack.c.l.b16 %v505
        %v1764 = vunpack.c.h.b16 %v505
        %v1765 = vunpack.c.l.b16 %v506
        %v1766 = vunpack.c.h.b16 %v506
        %v1767 = vunpack.c.l.b16 %v507
        %v1768 = vunpack.c.h.b16 %v507
        %v1769 = vunpack.c.l.b16 %v508
        %v1770 = vunpack.c.h.b16 %v508
        %v1771 = vunpack.c.l.b16 %v509
        %v1772 = vunpack.c.h.b16 %v509
        %v1773 = vunpack.c.l.b16 %v510
        %v1774 = vunpack.c.h.b16 %v510
        %v1775 = vunpack.c.l.b16 %v511
        %v1776 = vunpack.c.h.b16 %v511
        %v1777 = vunpack.c.l.b16 %v512
        %v1778 = vunpack.c.h.b16 %v512
        %v1779 = vunpack.c.l.b16 %v513
        %v1780 = vunpack.c.h.b16 %v513
        %v1781 = vunpack.c.l.b16 %v514
        %v1782 = vunpack.c.h.b16 %v514
        %v1783 = vunpack.c.l.b16 %v515
        %v1784 = vunpack.c.h.b16 %v515
        %v1785 = vunpack.c.l.b16 %v516
        %v1786 = vunpack.c.h.b16 %v516
        %v1787 = vunpack.c.l.b16 %v517
        %v1788 = vunpack.c.h.b16 %v517
        %v1789 = vunpack.c.l.b16 %v518
        %v1790 = vunpack.c.h.b16 %v518
        %v1791 = vunpack.c.l.b16 %v519
        %v1792 = vunpack.c.h.b16 %v519
        %v1793 = vunpack.c.l.b16 %v520
        %v1794 = vunpack.c.h.b16 %v520
        %v1795 = vunpack.c.l.b16 %v521
        %v1796 = vunpack.c.h.b16 %v521
        %v1797 = vunpack.c.l.b16 %v522
        %v1798 = vunpack.c.h.b16 %v522
        %v1799 = vunpack.c.l.b16 %v523
        %v1800 = vunpack.c.h.b16 %v523
        %v1801 = vunpack.c.l.b16 %v524
        %v1802 = vunpack.c.h.b16 %v524
        %v1803 = vunpack.c.l.b16 %v525
        %v1804 = vunpack.c.h.b16 %v525
        %v1805 = vunpack.c.l.b16 %v526
        %v1806 = vunpack.c.h.b16 %v526
        %v1807 = vunpack.c.l.b16 %v527
        %v1808 = vunpack.c.h.b16 %v527
        %v1809 = vunpack.c.l.b16 %v528
        %v1810 = vunpack.c.h.b16 %v528
        %v1811 = vunpack.c.l.b16 %v529
        %v1812 = vunpack.c.h.b16 %v529
        %v1813 = vunpack.c.l.b16 %v530
        %v1814 = vunpack.c.h.b16 %v530
        %v1815 = vunpack.c.l.b16 %v531
        %v1816 = vunpack.c.h.b16 %v531
        %v1817 = vunpack.c.l.b16 %v532
        %v1818 = vunpack.c.h.b16 %v532
        %v1819 = vunpack.c.l.b16 %v533
        %v1820 = vunpack.c.h.b16 %v533
        %v1821 = vunpack.c.l.b16 %v534
        %v1822 = vunpack.c.h.b16 %v534
        %v1823 = vunpack.c.l.b16 %v535
        %v1824 = vunpack.c.h.b16 %v535
        %v1825 = vunpack.c.l.b16 %v536
        %v1826 = vunpack.c.h.b16 %v536
        %v1827 = vunpack.c.l.b16 %v537
        %v1828 = vunpack.c.h.b16 %v537
        %v1829 = vunpack.c.l.b16 %v538
        %v1830 = vunpack.c.h.b16 %v538
        %v1831 = vunpack.c.l.b16 %v539
        %v1832 = vunpack.c.h.b16 %v539
        %v1833 = vunpack.c.l.b16 %v540
        %v1834 = vunpack.c.h.b16 %v540
        %v1835 = vunpack.c.l.b16 %v541
        %v1836 = vunpack.c.h.b16 %v541
        %v1837 = vunpack.c.l.b16 %v542
        %v1838 = vunpack.c.h.b16 %v542
        %v1839 = vunpack.c.l.b16 %v543
        %v1840 = vunpack.c.h.b16 %v543
        %v1841 = vunpack.c.l.b16 %v544
        %v1842 = vunpack.c.h.b16 %v544
        %v1843 = vunpack.c.l.b16 %v545
        %v1844 = vunpack.c.h.b16 %v545
        %v1845 = vunpack.c.l.b16 %v546
        %v1846 = vunpack.c.h.b16 %v546
        %v1847 = vunpack.c.l.b16 %v547
        %v1848 = vunpack.c.h.b16 %v547
        %v1849 = vunpack.c.l.b16 %v548
        %v1850 = vunpack.c.h.b16 %v548
        %v1851 = vunpack.c.l.b16 %v549
        %v1852 = vunpack.c.h.b16 %v549
        %v1853 = vunpack.c.l.b16 %v550
        %v1854 = vunpack.c.h.b16 %v550
        %v1855 = vunpack.c.l.b16 %v551
        %v1856 = vunpack.c.h.b16 %v551
        %v1857 = vunpack.c.l.b16 %v552
        %v1858 = vunpack.c.h.b16 %v552
        %v1859 = vunpack.c.l.b16 %v553
        %v1860 = vunpack.c.h.b16 %v553
        %v1861 = vunpack.c.l.b16 %v554
        %v1862 = vunpack.c.h.b16 %v554
        %v1863 = vunpack.c.l.b16 %v555
        %v1864 = vunpack.c.h.b16 %v555
        %v1865 = vunpack.c.l.b16 %v556
        %v1866 = vunpack.c.h.b16 %v556
        %v1867 = vunpack.c.l.b16 %v557
        %v1868 = vunpack.c.h.b16 %v557
        %v1869 = vunpack.c.l.b16 %v558
        %v1870 = vunpack.c.h.b16 %v558
        %v1871 = vunpack.c.l.b16 %v559
        %v1872 = vunpack.c.h.b16 %v559
        %v1873 = vunpack.c.l.b16 %v560
        %v1874 = vunpack.c.h.b16 %v560
        %v1875 = vunpack.c.l.b16 %v561
        %v1876 = vunpack.c.h.b16 %v561
        %v1877 = vunpack.c.l.b16 %v562
        %v1878 = vunpack.c.h.b16 %v562
        %v1879 = vunpack.c.l.b16 %v563
        %v1880 = vunpack.c.h.b16 %v563
        %v1881 = vunpack.c.l.b16 %v564
        %v1882 = vunpack.c.h.b16 %v564
        %v1883 = vunpack.c.l.b16 %v565
        %v1884 = vunpack.c.h.b16 %v565
        %v1885 = vunpack.c.l.b16 %v566
        %v1886 = vunpack.c.h.b16 %v566
        %v1887 = vunpack.c.l.b16 %v567
        %v1888 = vunpack.c.h.b16 %v567
        %v1889 = vunpack.c.l.b16 %v568
        %v1890 = vunpack.c.h.b16 %v568
        %v1891 = vunpack.c.l.b16 %v569
        %v1892 = vunpack.c.h.b16 %v569
        %v1893 = vunpack.c.l.b16 %v570
        %v1894 = vunpack.c.h.b16 %v570
        %v1895 = vunpack.c.l.b16 %v571
        %v1896 = vunpack.c.h.b16 %v571
        %v1897 = vpack.c.b16 %v1645, %v1641
        %v1898 = vpack.c.b16 %v1646, %v1642
        %v1899 = vpack.c.b16 %v1647, %v1643
        %v1900 = vpack.c.b16 %v1648, %v1644
        %v1901 = vpack.c.b16 %v1653, %v1649
        %v1902 = vpack.c.b16 %v1654, %v1650
        %v1903 = vpack.c.b16 %v1655, %v1651
        %v1904 = vpack.c.b16 %v1656, %v1652
        %v1905 = vpack.c.b16 %v1661, %v1657
        %v1906 = vpack.c.b16 %v1662, %v1658
        %v1907 = vpack.c.b16 %v1663, %v1659
        %v1908 = vpack.c.b16 %v1664, %v1660
        %v1909 = vpack.c.b16 %v1669, %v1665
        %v1910 = vpack.c.b16 %v1670, %v1666
        %v1911 = vpack.c.b16 %v1671, %v1667
        %v1912 = vpack.c.b16 %v1672, %v1668
        %v1913 = vpack.c.b16 %v1677, %v1673
        %v1914 = vpack.c.b16 %v1678, %v1674
        %v1915 = vpack.c.b16 %v1679, %v1675
        %v1916 = vpack.c.b16 %v1680, %v1676
        %v1917 = vpack.c.b16 %v1685, %v1681
        %v1918 = vpack.c.b16 %v1686, %v1682
        %v1919 = vpack.c.b16 %v1687, %v1683
        %v1920 = vpack.c.b16 %v1688, %v1684
        %v1921 = vpack.c.b16 %v1693, %v1689
        %v1922 = vpack.c.b16 %v1694, %v1690
        %v1923 = vpack.c.b16 %v1695, %v1691
        %v1924 = vpack.c.b16 %v1696, %v1692
        %v1925 = vpack.c.b16 %v1701, %v1697
        %v1926 = vpack.c.b16 %v1702, %v1698
        %v1927 = vpack.c.b16 %v1703, %v1699
        %v1928 = vpack.c.b16 %v1704, %v1700
        %v1929 = vpack.c.b16 %v1709, %v1705
        %v1930 = vpack.c.b16 %v1710, %v1706
        %v1931 = vpack.c.b16 %v1711, %v1707
        %v1932 = vpack.c.b16 %v1712, %v1708
        %v1933 = vpack.c.b16 %v1717, %v1713
        %v1934 = vpack.c.b16 %v1718, %v1714
        %v1935 = vpack.c.b16 %v1719, %v1715
        %v1936 = vpack.c.b16 %v1720, %v1716
        %v1937 = vpack.c.b16 %v1725, %v1721
        %v1938 = vpack.c.b16 %v1726, %v1722
        %v1939 = vpack.c.b16 %v1727, %v1723
        %v1940 = vpack.c.b16 %v1728, %v1724
        %v1941 = vpack.c.b16 %v1733, %v1729
        %v1942 = vpack.c.b16 %v1734, %v1730
        %v1943 = vpack.c.b16 %v1735, %v1731
        %v1944 = vpack.c.b16 %v1736, %v1732
        %v1945 = vpack.c.b16 %v1741, %v1737
        %v1946 = vpack.c.b16 %v1742, %v1738
        %v1947 = vpack.c.b16 %v1743, %v1739
        %v1948 = vpack.c.b16 %v1744, %v1740
        %v1949 = vpack.c.b16 %v1749, %v1745
        %v1950 = vpack.c.b16 %v1750, %v1746
        %v1951 = vpack.c.b16 %v1751, %v1747
        %v1952 = vpack.c.b16 %v1752, %v1748
        %v1953 = vpack.c.b16 %v1757, %v1753
        %v1954 = vpack.c.b16 %v1758, %v1754
        %v1955 = vpack.c.b16 %v1759, %v1755
        %v1956 = vpack.c.b16 %v1760, %v1756
        %v1957 = vpack.c.b16 %v1765, %v1761
        %v1958 = vpack.c.b16 %v1766, %v1762
        %v1959 = vpack.c.b16 %v1767, %v1763
        %v1960 = vpack.c.b16 %v1768, %v1764
        %v1961 = vpack.c.b16 %v1773, %v1769
        %v1962 = vpack.c.b16 %v1774, %v1770
        %v1963 = vpack.c.b16 %v1775, %v1771
        %v1964 = vpack.c.b16 %v1776, %v1772
        %v1965 = vpack.c.b16 %v1781, %v1777
        %v1966 = vpack.c.b16 %v1782, %v1778
        %v1967 = vpack.c.b16 %v1783, %v1779
        %v1968 = vpack.c.b16 %v1784, %v1780
        %v1969 = vpack.c.b16 %v1789, %v1785
        %v1970 = vpack.c.b16 %v1790, %v1786
        %v1971 = vpack.c.b16 %v1791, %v1787
        %v1972 = vpack.c.b16 %v1792, %v1788
        %v1973 = vpack.c.b16 %v1797, %v1793
        %v1974 = vpack.c.b16 %v1798, %v1794
        %v1975 = vpack.c.b16 %v1799, %v1795
        %v1976 = vpack.c.b16 %v1800, %v1796
        %v1977 = vpack.c.b16 %v1805, %v1801
        %v1978 = vpack.c.b16 %v1806, %v1802
        %v1979 = vpack.c.b16 %v1807, %v1803
        %v1980 = vpack.c.b16 %v1808, %v1804
        %v1981 = vpack.c.b16 %v1813, %v1809
        %v1982 = vpack.c.b16 %v1814, %v1810
        %v1983 = vpack.c.b16 %v1815, %v1811
        %v1984 = vpack.c.b16 %v1816, %v1812
        %v1985 = vpack.c.b16 %v1821, %v1817
        %v1986 = vpack.c.b16 %v1822, %v1818
        %v1987 = vpack.c.b16 %v1823, %v1819
        %v1988 = vpack.c.b16 %v1824, %v1820
        %v1989 = vpack.c.b16 %v1829, %v1825
        %v1990 = vpack.c.b16 %v1830, %v1826
        %v1991 = vpack.c.b16 %v1831, %v1827
        %v1992 = vpack.c.b16 %v1832, %v1828
        %v1993 = vpack.c.b16 %v1837, %v1833
        %v1994 = vpack.c.b16 %v1838, %v1834
        %v1995 = vpack.c.b16 %v1839, %v1835
        %v1996 = vpack.c.b16 %v1840, %v1836
        %v1997 = vpack.c.b16 %v1845, %v1841
        %v1998 = vpack.c.b16 %v1846, %v1842
        %v1999 = vpack.c.b16 %v1847, %v1843
        %v2000 = vpack.c.b16 %v1848, %v1844
        %v2001 = vpack.c.b16 %v1853, %v1849
        %v2002 = vpack.c.b16 %v1854, %v1850
        %v2003 = vpack.c.b16 %v1855, %v1851
        %v2004 = vpack.c.b16 %v1856, %v1852
        %v2005 = vpack.c.b16 %v1861, %v1857
        %v2006 = vpack.c.b16 %v1862, %v1858
        %v2007 = vpack.c.b16 %v1863, %v1859
        %v2008 = vpack.c.b16 %v1864, %v1860
        %v2009 = vpack.c.b16 %v1869, %v1865
        %v2010 = vpack.c.b16 %v1870, %v1866
        %v2011 = vpack.c.b16 %v1871, %v1867
        %v2012 = vpack.c.b16 %v1872, %v1868
        %v2013 = vpack.c.b16 %v1877, %v1873
        %v2014 = vpack.c.b16 %v1878, %v1874
        %v2015 = vpack.c.b16 %v1879, %v1875
        %v2016 = vpack.c.b16 %v1880, %v1876
        %v2017 = vpack.c.b16 %v1885, %v1881
        %v2018 = vpack.c.b16 %v1886, %v1882
        %v2019 = vpack.c.b16 %v1887, %v1883
        %v2020 = vpack.c.b16 %v1888, %v1884
        %v2021 = vpack.c.b16 %v1893, %v1889
        %v2022 = vpack.c.b16 %v1894, %v1890
        %v2023 = vpack.c.b16 %v1895, %v1891
        %v2024 = vpack.c.b16 %v1896, %v1892
        %2153 = vmatprep.subr.bf16.mxu0 %v1898
        %2154 = vmatpush1.bf16.msra.mxu0 %v1897
        %2155 = vmatprep.subr.bf16.mxu0 %v1902
        %2156 = vmatpush1.bf16.msra.mxu0 %v1901
        %2157 = vmatprep.subr.bf16.mxu0 %v1906
        %2158 = vmatpush1.bf16.msra.mxu0 %v1905
        %2159 = vmatprep.subr.bf16.mxu0 %v1910
        %2160 = vmatpush1.bf16.msra.mxu0 %v1909
        %2161 = vmatprep.subr.bf16.mxu0 %v1914
        %2162 = vmatpush1.bf16.msra.mxu0 %v1913
        %2163 = vmatprep.subr.bf16.mxu0 %v1918
        %2164 = vmatpush1.bf16.msra.mxu0 %v1917
        %2165 = vmatprep.subr.bf16.mxu0 %v1922
        %2166 = vmatpush1.bf16.msra.mxu0 %v1921
        %2167 = vmatprep.subr.bf16.mxu0 %v1926
        %2168 = vmatpush1.bf16.msra.mxu0 %v1925
        %2169 = vmatprep.subr.bf16.mxu0 %v1930
        %2170 = vmatpush1.bf16.msra.mxu0 %v1929
        %2171 = vmatprep.subr.bf16.mxu0 %v1934
        %2172 = vmatpush1.bf16.msra.mxu0 %v1933
        %2173 = vmatprep.subr.bf16.mxu0 %v1938
        %2174 = vmatpush1.bf16.msra.mxu0 %v1937
        %2175 = vmatprep.subr.bf16.mxu0 %v1942
        %2176 = vmatpush1.bf16.msra.mxu0 %v1941
        %2177 = vmatprep.subr.bf16.mxu0 %v1946
        %2178 = vmatpush1.bf16.msra.mxu0 %v1945
        %2179 = vmatprep.subr.bf16.mxu0 %v1950
        %2180 = vmatpush1.bf16.msra.mxu0 %v1949
        %2181 = vmatprep.subr.bf16.mxu0 %v1954
        %2182 = vmatpush1.bf16.msra.mxu0 %v1953
        %2183 = vmatprep.subr.bf16.mxu0 %v1958
        %2184 = vmatpush1.bf16.msra.mxu0 %v1957
        %2185 = vmatprep.mubr.bf16.mxu0 %v400
        %2186 = vmatmul.mubr.bf16.gmra.mrb[0].mxu0 %v399
        %v2187 = vpop.f32.mrb[0].mxu0
        %v2188 = vadd.f32 %v1419, %v2187
        %v2189 = vpop.f32.mrb[0].mxu0
        %v2190 = vadd.f32 %v1421, %v2189
        %v2191 = vpop.f32.mrb[0].mxu0
        %v2192 = vadd.f32 %v1423, %v2191
        %v2193 = vpop.f32.mrb[0].mxu0
        %v2194 = vadd.f32 %v1425, %v2193
        %2195 = vdwg.mxu0
        %2196 = vmatprep.subr.bf16.mxu0 %v1962
        %2197 = vmatpush1.bf16.msra.mxu0 %v1961
        %2198 = vmatprep.subr.bf16.mxu0 %v1966
        %2199 = vmatpush1.bf16.msra.mxu0 %v1965
        %2200 = vmatprep.subr.bf16.mxu0 %v1970
        %2201 = vmatpush1.bf16.msra.mxu0 %v1969
        %2202 = vmatprep.subr.bf16.mxu0 %v1974
        %2203 = vmatpush1.bf16.msra.mxu0 %v1973
        %2204 = vmatprep.subr.bf16.mxu0 %v1978
        %2205 = vmatpush1.bf16.msra.mxu0 %v1977
        %2206 = vmatprep.subr.bf16.mxu0 %v1982
        %2207 = vmatpush1.bf16.msra.mxu0 %v1981
        %2208 = vmatprep.subr.bf16.mxu0 %v1986
        %2209 = vmatpush1.bf16.msra.mxu0 %v1985
        %2210 = vmatprep.subr.bf16.mxu0 %v1990
        %2211 = vmatpush1.bf16.msra.mxu0 %v1989
        %2212 = vmatprep.subr.bf16.mxu0 %v1994
        %2213 = vmatpush1.bf16.msra.mxu0 %v1993
        %2214 = vmatprep.subr.bf16.mxu0 %v1998
        %2215 = vmatpush1.bf16.msra.mxu0 %v1997
        %2216 = vmatprep.subr.bf16.mxu0 %v2002
        %2217 = vmatpush1.bf16.msra.mxu0 %v2001
        %2218 = vmatprep.subr.bf16.mxu0 %v2006
        %2219 = vmatpush1.bf16.msra.mxu0 %v2005
        %2220 = vmatprep.subr.bf16.mxu0 %v2010
        %2221 = vmatpush1.bf16.msra.mxu0 %v2009
        %2222 = vmatprep.subr.bf16.mxu0 %v2014
        %2223 = vmatpush1.bf16.msra.mxu0 %v2013
        %2224 = vmatprep.subr.bf16.mxu0 %v2018
        %2225 = vmatpush1.bf16.msra.mxu0 %v2017
        %2226 = vmatprep.subr.bf16.mxu0 %v2022
        %2227 = vmatpush1.bf16.msra.mxu0 %v2021
        %2228 = vmatprep.mubr.bf16.mxu0 %v402
        %2229 = vmatmul.mubr.bf16.gmra.mrb[0].mxu0 %v401
        %v2230 = vpop.f32.mrb[0].mxu0
        %v2231 = vadd.f32 %v2188, %v2230
        %v2232 = vpop.f32.mrb[0].mxu0
        %v2233 = vadd.f32 %v2190, %v2232
        %v2234 = vpop.f32.mrb[0].mxu0
        %v2235 = vadd.f32 %v2192, %v2234
        %v2236 = vpop.f32.mrb[0].mxu0
        %v2237 = vadd.f32 %v2194, %v2236
        %2238 = vdwg.mxu0
        %2239 = vmatprep.subr.bf16.mxu0 %v1900
        %2240 = vmatpush1.bf16.msra.mxu0 %v1899
        %2241 = vmatprep.subr.bf16.mxu0 %v1904
        %2242 = vmatpush1.bf16.msra.mxu0 %v1903
        %2243 = vmatprep.subr.bf16.mxu0 %v1908
        %2244 = vmatpush1.bf16.msra.mxu0 %v1907
        %2245 = vmatprep.subr.bf16.mxu0 %v1912
        %2246 = vmatpush1.bf16.msra.mxu0 %v1911
        %2247 = vmatprep.subr.bf16.mxu0 %v1916
        %2248 = vmatpush1.bf16.msra.mxu0 %v1915
        %2249 = vmatprep.subr.bf16.mxu0 %v1920
        %2250 = vmatpush1.bf16.msra.mxu0 %v1919
        %2251 = vmatprep.subr.bf16.mxu0 %v1924
        %2252 = vmatpush1.bf16.msra.mxu0 %v1923
        %2253 = vmatprep.subr.bf16.mxu0 %v1928
        %2254 = vmatpush1.bf16.msra.mxu0 %v1927
        %2255 = vmatprep.subr.bf16.mxu0 %v1932
        %2256 = vmatpush1.bf16.msra.mxu0 %v1931
        %2257 = vmatprep.subr.bf16.mxu0 %v1936
        %2258 = vmatpush1.bf16.msra.mxu0 %v1935
        %2259 = vmatprep.subr.bf16.mxu0 %v1940
        %2260 = vmatpush1.bf16.msra.mxu0 %v1939
        %2261 = vmatprep.subr.bf16.mxu0 %v1944
        %2262 = vmatpush1.bf16.msra.mxu0 %v1943
        %2263 = vmatprep.subr.bf16.mxu0 %v1948
        %2264 = vmatpush1.bf16.msra.mxu0 %v1947
        %2265 = vmatprep.subr.bf16.mxu0 %v1952
        %2266 = vmatpush1.bf16.msra.mxu0 %v1951
        %2267 = vmatprep.subr.bf16.mxu0 %v1956
        %2268 = vmatpush1.bf16.msra.mxu0 %v1955
        %2269 = vmatprep.subr.bf16.mxu0 %v1960
        %2270 = vmatpush1.bf16.msra.mxu0 %v1959
        %2271 = vmatprep.mubr.bf16.mxu0 %v400
        %2272 = vmatmul.mubr.bf16.gmra.mrb[0].mxu0 %v399
        %v2273 = vpop.f32.mrb[0].mxu0
        %v2274 = vadd.f32 %v1505, %v2273
        %v2275 = vpop.f32.mrb[0].mxu0
        %v2276 = vadd.f32 %v1507, %v2275
        %v2277 = vpop.f32.mrb[0].mxu0
        %v2278 = vadd.f32 %v1509, %v2277
        %v2279 = vpop.f32.mrb[0].mxu0
        %v2280 = vadd.f32 %v1511, %v2279
        %2281 = vdwg.mxu0
        %2282 = vmatprep.subr.bf16.mxu0 %v1964
        %2283 = vmatpush1.bf16.msra.mxu0 %v1963
        %2284 = vmatprep.subr.bf16.mxu0 %v1968
        %2285 = vmatpush1.bf16.msra.mxu0 %v1967
        %2286 = vmatprep.subr.bf16.mxu0 %v1972
        %2287 = vmatpush1.bf16.msra.mxu0 %v1971
        %2288 = vmatprep.subr.bf16.mxu0 %v1976
        %2289 = vmatpush1.bf16.msra.mxu0 %v1975
        %2290 = vmatprep.subr.bf16.mxu0 %v1980
        %2291 = vmatpush1.bf16.msra.mxu0 %v1979
        %2292 = vmatprep.subr.bf16.mxu0 %v1984
        %2293 = vmatpush1.bf16.msra.mxu0 %v1983
        %2294 = vmatprep.subr.bf16.mxu0 %v1988
        %2295 = vmatpush1.bf16.msra.mxu0 %v1987
        %2296 = vmatprep.subr.bf16.mxu0 %v1992
        %2297 = vmatpush1.bf16.msra.mxu0 %v1991
        %2298 = vmatprep.subr.bf16.mxu0 %v1996
        %2299 = vmatpush1.bf16.msra.mxu0 %v1995
        %2300 = vmatprep.subr.bf16.mxu0 %v2000
        %2301 = vmatpush1.bf16.msra.mxu0 %v1999
        %2302 = vmatprep.subr.bf16.mxu0 %v2004
        %2303 = vmatpush1.bf16.msra.mxu0 %v2003
        %2304 = vmatprep.subr.bf16.mxu0 %v2008
        %2305 = vmatpush1.bf16.msra.mxu0 %v2007
        %2306 = vmatprep.subr.bf16.mxu0 %v2012
        %2307 = vmatpush1.bf16.msra.mxu0 %v2011
        %2308 = vmatprep.subr.bf16.mxu0 %v2016
        %2309 = vmatpush1.bf16.msra.mxu0 %v2015
        %2310 = vmatprep.subr.bf16.mxu0 %v2020
        %2311 = vmatpush1.bf16.msra.mxu0 %v2019
        %2312 = vmatprep.subr.bf16.mxu0 %v2024
        %2313 = vmatpush1.bf16.msra.mxu0 %v2023
        %2314 = vmatprep.mubr.bf16.mxu0 %v402
        %2315 = vmatmul.mubr.bf16.gmra.mrb[0].mxu0 %v401
        %v2316 = vpop.f32.mrb[0].mxu0
        %v2317 = vadd.f32 %v2274, %v2316
        %v2318 = vpop.f32.mrb[0].mxu0
        %v2319 = vadd.f32 %v2276, %v2318
        %v2320 = vpop.f32.mrb[0].mxu0
        %v2321 = vadd.f32 %v2278, %v2320
        %v2322 = vpop.f32.mrb[0].mxu0
        %v2323 = vadd.f32 %v2280, %v2322
        %2324 = vdwg.mxu0
        %s2325 = scalar_lea.vmem [#allocation5], 2048
        %v2326 = vld [vmem:[%s2325] sm:$0xff]
        %v2327 = vld [vmem:[%s2325 + $0x8] sm:$0xff]
        %v2328 = vld [vmem:[%s2325 + $0x10] sm:$0xff]
        %v2329 = vld [vmem:[%s2325 + $0x18] sm:$0xff]
        %v2330 = vld [vmem:[%s2325 + $0x20] sm:$0xff]
        %v2331 = vld [vmem:[%s2325 + $0x28] sm:$0xff]
        %v2332 = vld [vmem:[%s2325 + $0x30] sm:$0xff]
        %v2333 = vld [vmem:[%s2325 + $0x38] sm:$0xff]
        %v2334 = vld [vmem:[%s2325 + $0x40] sm:$0xff]
        %v2335 = vld [vmem:[%s2325 + $0x48] sm:$0xff]
        %v2336 = vld [vmem:[%s2325 + $0x50] sm:$0xff]
        %v2337 = vld [vmem:[%s2325 + $0x58] sm:$0xff]
        %v2338 = vld [vmem:[%s2325 + $0x60] sm:$0xff]
        %v2339 = vld [vmem:[%s2325 + $0x68] sm:$0xff]
        %v2340 = vld [vmem:[%s2325 + $0x70] sm:$0xff]
        %v2341 = vld [vmem:[%s2325 + $0x78] sm:$0xff]
        %v2342 = vld [vmem:[%s2325 + $0x80] sm:$0xff]
        %v2343 = vld [vmem:[%s2325 + $0x88] sm:$0xff]
        %v2344 = vld [vmem:[%s2325 + $0x90] sm:$0xff]
        %v2345 = vld [vmem:[%s2325 + $0x98] sm:$0xff]
        %v2346 = vld [vmem:[%s2325 + $0xa0] sm:$0xff]
        %v2347 = vld [vmem:[%s2325 + $0xa8] sm:$0xff]
        %v2348 = vld [vmem:[%s2325 + $0xb0] sm:$0xff]
        %v2349 = vld [vmem:[%s2325 + $0xb8] sm:$0xff]
        %v2350 = vld [vmem:[%s2325 + $0xc0] sm:$0xff]
        %v2351 = vld [vmem:[%s2325 + $0xc8] sm:$0xff]
        %v2352 = vld [vmem:[%s2325 + $0xd0] sm:$0xff]
        %v2353 = vld [vmem:[%s2325 + $0xd8] sm:$0xff]
        %v2354 = vld [vmem:[%s2325 + $0xe0] sm:$0xff]
        %v2355 = vld [vmem:[%s2325 + $0xe8] sm:$0xff]
        %v2356 = vld [vmem:[%s2325 + $0xf0] sm:$0xff]
        %v2357 = vld [vmem:[%s2325 + $0xf8] sm:$0xff]
        %v2358 = vld [vmem:[%s2325 + $0x100] sm:$0xff]
        %v2359 = vld [vmem:[%s2325 + $0x108] sm:$0xff]
        %v2360 = vld [vmem:[%s2325 + $0x110] sm:$0xff]
        %v2361 = vld [vmem:[%s2325 + $0x118] sm:$0xff]
        %v2362 = vld [vmem:[%s2325 + $0x120] sm:$0xff]
        %v2363 = vld [vmem:[%s2325 + $0x128] sm:$0xff]
        %v2364 = vld [vmem:[%s2325 + $0x130] sm:$0xff]
        %v2365 = vld [vmem:[%s2325 + $0x138] sm:$0xff]
        %v2366 = vld [vmem:[%s2325 + $0x140] sm:$0xff]
        %v2367 = vld [vmem:[%s2325 + $0x148] sm:$0xff]
        %v2368 = vld [vmem:[%s2325 + $0x150] sm:$0xff]
        %v2369 = vld [vmem:[%s2325 + $0x158] sm:$0xff]
        %v2370 = vld [vmem:[%s2325 + $0x160] sm:$0xff]
        %v2371 = vld [vmem:[%s2325 + $0x168] sm:$0xff]
        %v2372 = vld [vmem:[%s2325 + $0x170] sm:$0xff]
        %v2373 = vld [vmem:[%s2325 + $0x178] sm:$0xff]
        %v2374 = vld [vmem:[%s2325 + $0x180] sm:$0xff]
        %v2375 = vld [vmem:[%s2325 + $0x188] sm:$0xff]
        %v2376 = vld [vmem:[%s2325 + $0x190] sm:$0xff]
        %v2377 = vld [vmem:[%s2325 + $0x198] sm:$0xff]
        %v2378 = vld [vmem:[%s2325 + $0x1a0] sm:$0xff]
        %v2379 = vld [vmem:[%s2325 + $0x1a8] sm:$0xff]
        %v2380 = vld [vmem:[%s2325 + $0x1b0] sm:$0xff]
        %v2381 = vld [vmem:[%s2325 + $0x1b8] sm:$0xff]
        %v2382 = vld [vmem:[%s2325 + $0x1c0] sm:$0xff]
        %v2383 = vld [vmem:[%s2325 + $0x1c8] sm:$0xff]
        %v2384 = vld [vmem:[%s2325 + $0x1d0] sm:$0xff]
        %v2385 = vld [vmem:[%s2325 + $0x1d8] sm:$0xff]
        %v2386 = vld [vmem:[%s2325 + $0x1e0] sm:$0xff]
        %v2387 = vld [vmem:[%s2325 + $0x1e8] sm:$0xff]
        %v2388 = vld [vmem:[%s2325 + $0x1f0] sm:$0xff]
        %v2389 = vld [vmem:[%s2325 + $0x1f8] sm:$0xff]
        %v2390 = vld [vmem:[%s2325 + $0x200] sm:$0xff]
        %v2391 = vld [vmem:[%s2325 + $0x208] sm:$0xff]
        %v2392 = vld [vmem:[%s2325 + $0x210] sm:$0xff]
        %v2393 = vld [vmem:[%s2325 + $0x218] sm:$0xff]
        %v2394 = vld [vmem:[%s2325 + $0x220] sm:$0xff]
        %v2395 = vld [vmem:[%s2325 + $0x228] sm:$0xff]
        %v2396 = vld [vmem:[%s2325 + $0x230] sm:$0xff]
        %v2397 = vld [vmem:[%s2325 + $0x238] sm:$0xff]
        %v2398 = vld [vmem:[%s2325 + $0x240] sm:$0xff]
        %v2399 = vld [vmem:[%s2325 + $0x248] sm:$0xff]
        %v2400 = vld [vmem:[%s2325 + $0x250] sm:$0xff]
        %v2401 = vld [vmem:[%s2325 + $0x258] sm:$0xff]
        %v2402 = vld [vmem:[%s2325 + $0x260] sm:$0xff]
        %v2403 = vld [vmem:[%s2325 + $0x268] sm:$0xff]
        %v2404 = vld [vmem:[%s2325 + $0x270] sm:$0xff]
        %v2405 = vld [vmem:[%s2325 + $0x278] sm:$0xff]
        %v2406 = vld [vmem:[%s2325 + $0x280] sm:$0xff]
        %v2407 = vld [vmem:[%s2325 + $0x288] sm:$0xff]
        %v2408 = vld [vmem:[%s2325 + $0x290] sm:$0xff]
        %v2409 = vld [vmem:[%s2325 + $0x298] sm:$0xff]
        %v2410 = vld [vmem:[%s2325 + $0x2a0] sm:$0xff]
        %v2411 = vld [vmem:[%s2325 + $0x2a8] sm:$0xff]
        %v2412 = vld [vmem:[%s2325 + $0x2b0] sm:$0xff]
        %v2413 = vld [vmem:[%s2325 + $0x2b8] sm:$0xff]
        %v2414 = vld [vmem:[%s2325 + $0x2c0] sm:$0xff]
        %v2415 = vld [vmem:[%s2325 + $0x2c8] sm:$0xff]
        %v2416 = vld [vmem:[%s2325 + $0x2d0] sm:$0xff]
        %v2417 = vld [vmem:[%s2325 + $0x2d8] sm:$0xff]
        %v2418 = vld [vmem:[%s2325 + $0x2e0] sm:$0xff]
        %v2419 = vld [vmem:[%s2325 + $0x2e8] sm:$0xff]
        %v2420 = vld [vmem:[%s2325 + $0x2f0] sm:$0xff]
        %v2421 = vld [vmem:[%s2325 + $0x2f8] sm:$0xff]
        %v2422 = vld [vmem:[%s2325 + $0x300] sm:$0xff]
        %v2423 = vld [vmem:[%s2325 + $0x308] sm:$0xff]
        %v2424 = vld [vmem:[%s2325 + $0x310] sm:$0xff]
        %v2425 = vld [vmem:[%s2325 + $0x318] sm:$0xff]
        %v2426 = vld [vmem:[%s2325 + $0x320] sm:$0xff]
        %v2427 = vld [vmem:[%s2325 + $0x328] sm:$0xff]
        %v2428 = vld [vmem:[%s2325 + $0x330] sm:$0xff]
        %v2429 = vld [vmem:[%s2325 + $0x338] sm:$0xff]
        %v2430 = vld [vmem:[%s2325 + $0x340] sm:$0xff]
        %v2431 = vld [vmem:[%s2325 + $0x348] sm:$0xff]
        %v2432 = vld [vmem:[%s2325 + $0x350] sm:$0xff]
        %v2433 = vld [vmem:[%s2325 + $0x358] sm:$0xff]
        %v2434 = vld [vmem:[%s2325 + $0x360] sm:$0xff]
        %v2435 = vld [vmem:[%s2325 + $0x368] sm:$0xff]
        %v2436 = vld [vmem:[%s2325 + $0x370] sm:$0xff]
        %v2437 = vld [vmem:[%s2325 + $0x378] sm:$0xff]
        %v2438 = vld [vmem:[%s2325 + $0x380] sm:$0xff]
        %v2439 = vld [vmem:[%s2325 + $0x388] sm:$0xff]
        %v2440 = vld [vmem:[%s2325 + $0x390] sm:$0xff]
        %v2441 = vld [vmem:[%s2325 + $0x398] sm:$0xff]
        %v2442 = vld [vmem:[%s2325 + $0x3a0] sm:$0xff]
        %v2443 = vld [vmem:[%s2325 + $0x3a8] sm:$0xff]
        %v2444 = vld [vmem:[%s2325 + $0x3b0] sm:$0xff]
        %v2445 = vld [vmem:[%s2325 + $0x3b8] sm:$0xff]
        %v2446 = vld [vmem:[%s2325 + $0x3c0] sm:$0xff]
        %v2447 = vld [vmem:[%s2325 + $0x3c8] sm:$0xff]
        %v2448 = vld [vmem:[%s2325 + $0x3d0] sm:$0xff]
        %v2449 = vld [vmem:[%s2325 + $0x3d8] sm:$0xff]
        %v2450 = vld [vmem:[%s2325 + $0x3e0] sm:$0xff]
        %v2451 = vld [vmem:[%s2325 + $0x3e8] sm:$0xff]
        %v2452 = vld [vmem:[%s2325 + $0x3f0] sm:$0xff]
        %v2453 = vld [vmem:[%s2325 + $0x3f8] sm:$0xff]
        %v2582 = vunpack.c.l.b16 %v2326
        %v2583 = vunpack.c.h.b16 %v2326
        %v2584 = vunpack.c.l.b16 %v2327
        %v2585 = vunpack.c.h.b16 %v2327
        %v2586 = vunpack.c.l.b16 %v2328
        %v2587 = vunpack.c.h.b16 %v2328
        %v2588 = vunpack.c.l.b16 %v2329
        %v2589 = vunpack.c.h.b16 %v2329
        %v2590 = vunpack.c.l.b16 %v2330
        %v2591 = vunpack.c.h.b16 %v2330
        %v2592 = vunpack.c.l.b16 %v2331
        %v2593 = vunpack.c.h.b16 %v2331
        %v2594 = vunpack.c.l.b16 %v2332
        %v2595 = vunpack.c.h.b16 %v2332
        %v2596 = vunpack.c.l.b16 %v2333
        %v2597 = vunpack.c.h.b16 %v2333
        %v2598 = vunpack.c.l.b16 %v2334
        %v2599 = vunpack.c.h.b16 %v2334
        %v2600 = vunpack.c.l.b16 %v2335
        %v2601 = vunpack.c.h.b16 %v2335
        %v2602 = vunpack.c.l.b16 %v2336
        %v2603 = vunpack.c.h.b16 %v2336
        %v2604 = vunpack.c.l.b16 %v2337
        %v2605 = vunpack.c.h.b16 %v2337
        %v2606 = vunpack.c.l.b16 %v2338
        %v2607 = vunpack.c.h.b16 %v2338
        %v2608 = vunpack.c.l.b16 %v2339
        %v2609 = vunpack.c.h.b16 %v2339
        %v2610 = vunpack.c.l.b16 %v2340
        %v2611 = vunpack.c.h.b16 %v2340
        %v2612 = vunpack.c.l.b16 %v2341
        %v2613 = vunpack.c.h.b16 %v2341
        %v2614 = vunpack.c.l.b16 %v2342
        %v2615 = vunpack.c.h.b16 %v2342
        %v2616 = vunpack.c.l.b16 %v2343
        %v2617 = vunpack.c.h.b16 %v2343
        %v2618 = vunpack.c.l.b16 %v2344
        %v2619 = vunpack.c.h.b16 %v2344
        %v2620 = vunpack.c.l.b16 %v2345
        %v2621 = vunpack.c.h.b16 %v2345
        %v2622 = vunpack.c.l.b16 %v2346
        %v2623 = vunpack.c.h.b16 %v2346
        %v2624 = vunpack.c.l.b16 %v2347
        %v2625 = vunpack.c.h.b16 %v2347
        %v2626 = vunpack.c.l.b16 %v2348
        %v2627 = vunpack.c.h.b16 %v2348
        %v2628 = vunpack.c.l.b16 %v2349
        %v2629 = vunpack.c.h.b16 %v2349
        %v2630 = vunpack.c.l.b16 %v2350
        %v2631 = vunpack.c.h.b16 %v2350
        %v2632 = vunpack.c.l.b16 %v2351
        %v2633 = vunpack.c.h.b16 %v2351
        %v2634 = vunpack.c.l.b16 %v2352
        %v2635 = vunpack.c.h.b16 %v2352
        %v2636 = vunpack.c.l.b16 %v2353
        %v2637 = vunpack.c.h.b16 %v2353
        %v2638 = vunpack.c.l.b16 %v2354
        %v2639 = vunpack.c.h.b16 %v2354
        %v2640 = vunpack.c.l.b16 %v2355
        %v2641 = vunpack.c.h.b16 %v2355
        %v2642 = vunpack.c.l.b16 %v2356
        %v2643 = vunpack.c.h.b16 %v2356
        %v2644 = vunpack.c.l.b16 %v2357
        %v2645 = vunpack.c.h.b16 %v2357
        %v2646 = vunpack.c.l.b16 %v2358
        %v2647 = vunpack.c.h.b16 %v2358
        %v2648 = vunpack.c.l.b16 %v2359
        %v2649 = vunpack.c.h.b16 %v2359
        %v2650 = vunpack.c.l.b16 %v2360
        %v2651 = vunpack.c.h.b16 %v2360
        %v2652 = vunpack.c.l.b16 %v2361
        %v2653 = vunpack.c.h.b16 %v2361
        %v2654 = vunpack.c.l.b16 %v2362
        %v2655 = vunpack.c.h.b16 %v2362
        %v2656 = vunpack.c.l.b16 %v2363
        %v2657 = vunpack.c.h.b16 %v2363
        %v2658 = vunpack.c.l.b16 %v2364
        %v2659 = vunpack.c.h.b16 %v2364
        %v2660 = vunpack.c.l.b16 %v2365
        %v2661 = vunpack.c.h.b16 %v2365
        %v2662 = vunpack.c.l.b16 %v2366
        %v2663 = vunpack.c.h.b16 %v2366
        %v2664 = vunpack.c.l.b16 %v2367
        %v2665 = vunpack.c.h.b16 %v2367
        %v2666 = vunpack.c.l.b16 %v2368
        %v2667 = vunpack.c.h.b16 %v2368
        %v2668 = vunpack.c.l.b16 %v2369
        %v2669 = vunpack.c.h.b16 %v2369
        %v2670 = vunpack.c.l.b16 %v2370
        %v2671 = vunpack.c.h.b16 %v2370
        %v2672 = vunpack.c.l.b16 %v2371
        %v2673 = vunpack.c.h.b16 %v2371
        %v2674 = vunpack.c.l.b16 %v2372
        %v2675 = vunpack.c.h.b16 %v2372
        %v2676 = vunpack.c.l.b16 %v2373
        %v2677 = vunpack.c.h.b16 %v2373
        %v2678 = vunpack.c.l.b16 %v2374
        %v2679 = vunpack.c.h.b16 %v2374
        %v2680 = vunpack.c.l.b16 %v2375
        %v2681 = vunpack.c.h.b16 %v2375
        %v2682 = vunpack.c.l.b16 %v2376
        %v2683 = vunpack.c.h.b16 %v2376
        %v2684 = vunpack.c.l.b16 %v2377
        %v2685 = vunpack.c.h.b16 %v2377
        %v2686 = vunpack.c.l.b16 %v2378
        %v2687 = vunpack.c.h.b16 %v2378
        %v2688 = vunpack.c.l.b16 %v2379
        %v2689 = vunpack.c.h.b16 %v2379
        %v2690 = vunpack.c.l.b16 %v2380
        %v2691 = vunpack.c.h.b16 %v2380
        %v2692 = vunpack.c.l.b16 %v2381
        %v2693 = vunpack.c.h.b16 %v2381
        %v2694 = vunpack.c.l.b16 %v2382
        %v2695 = vunpack.c.h.b16 %v2382
        %v2696 = vunpack.c.l.b16 %v2383
        %v2697 = vunpack.c.h.b16 %v2383
        %v2698 = vunpack.c.l.b16 %v2384
        %v2699 = vunpack.c.h.b16 %v2384
        %v2700 = vunpack.c.l.b16 %v2385
        %v2701 = vunpack.c.h.b16 %v2385
        %v2702 = vunpack.c.l.b16 %v2386
        %v2703 = vunpack.c.h.b16 %v2386
        %v2704 = vunpack.c.l.b16 %v2387
        %v2705 = vunpack.c.h.b16 %v2387
        %v2706 = vunpack.c.l.b16 %v2388
        %v2707 = vunpack.c.h.b16 %v2388
        %v2708 = vunpack.c.l.b16 %v2389
        %v2709 = vunpack.c.h.b16 %v2389
        %v2710 = vunpack.c.l.b16 %v2390
        %v2711 = vunpack.c.h.b16 %v2390
        %v2712 = vunpack.c.l.b16 %v2391
        %v2713 = vunpack.c.h.b16 %v2391
        %v2714 = vunpack.c.l.b16 %v2392
        %v2715 = vunpack.c.h.b16 %v2392
        %v2716 = vunpack.c.l.b16 %v2393
        %v2717 = vunpack.c.h.b16 %v2393
        %v2718 = vunpack.c.l.b16 %v2394
        %v2719 = vunpack.c.h.b16 %v2394
        %v2720 = vunpack.c.l.b16 %v2395
        %v2721 = vunpack.c.h.b16 %v2395
        %v2722 = vunpack.c.l.b16 %v2396
        %v2723 = vunpack.c.h.b16 %v2396
        %v2724 = vunpack.c.l.b16 %v2397
        %v2725 = vunpack.c.h.b16 %v2397
        %v2726 = vunpack.c.l.b16 %v2398
        %v2727 = vunpack.c.h.b16 %v2398
        %v2728 = vunpack.c.l.b16 %v2399
        %v2729 = vunpack.c.h.b16 %v2399
        %v2730 = vunpack.c.l.b16 %v2400
        %v2731 = vunpack.c.h.b16 %v2400
        %v2732 = vunpack.c.l.b16 %v2401
        %v2733 = vunpack.c.h.b16 %v2401
        %v2734 = vunpack.c.l.b16 %v2402
        %v2735 = vunpack.c.h.b16 %v2402
        %v2736 = vunpack.c.l.b16 %v2403
        %v2737 = vunpack.c.h.b16 %v2403
        %v2738 = vunpack.c.l.b16 %v2404
        %v2739 = vunpack.c.h.b16 %v2404
        %v2740 = vunpack.c.l.b16 %v2405
        %v2741 = vunpack.c.h.b16 %v2405
        %v2742 = vunpack.c.l.b16 %v2406
        %v2743 = vunpack.c.h.b16 %v2406
        %v2744 = vunpack.c.l.b16 %v2407
        %v2745 = vunpack.c.h.b16 %v2407
        %v2746 = vunpack.c.l.b16 %v2408
        %v2747 = vunpack.c.h.b16 %v2408
        %v2748 = vunpack.c.l.b16 %v2409
        %v2749 = vunpack.c.h.b16 %v2409
        %v2750 = vunpack.c.l.b16 %v2410
        %v2751 = vunpack.c.h.b16 %v2410
        %v2752 = vunpack.c.l.b16 %v2411
        %v2753 = vunpack.c.h.b16 %v2411
        %v2754 = vunpack.c.l.b16 %v2412
        %v2755 = vunpack.c.h.b16 %v2412
        %v2756 = vunpack.c.l.b16 %v2413
        %v2757 = vunpack.c.h.b16 %v2413
        %v2758 = vunpack.c.l.b16 %v2414
        %v2759 = vunpack.c.h.b16 %v2414
        %v2760 = vunpack.c.l.b16 %v2415
        %v2761 = vunpack.c.h.b16 %v2415
        %v2762 = vunpack.c.l.b16 %v2416
        %v2763 = vunpack.c.h.b16 %v2416
        %v2764 = vunpack.c.l.b16 %v2417
        %v2765 = vunpack.c.h.b16 %v2417
        %v2766 = vunpack.c.l.b16 %v2418
        %v2767 = vunpack.c.h.b16 %v2418
        %v2768 = vunpack.c.l.b16 %v2419
        %v2769 = vunpack.c.h.b16 %v2419
        %v2770 = vunpack.c.l.b16 %v2420
        %v2771 = vunpack.c.h.b16 %v2420
        %v2772 = vunpack.c.l.b16 %v2421
        %v2773 = vunpack.c.h.b16 %v2421
        %v2774 = vunpack.c.l.b16 %v2422
        %v2775 = vunpack.c.h.b16 %v2422
        %v2776 = vunpack.c.l.b16 %v2423
        %v2777 = vunpack.c.h.b16 %v2423
        %v2778 = vunpack.c.l.b16 %v2424
        %v2779 = vunpack.c.h.b16 %v2424
        %v2780 = vunpack.c.l.b16 %v2425
        %v2781 = vunpack.c.h.b16 %v2425
        %v2782 = vunpack.c.l.b16 %v2426
        %v2783 = vunpack.c.h.b16 %v2426
        %v2784 = vunpack.c.l.b16 %v2427
        %v2785 = vunpack.c.h.b16 %v2427
        %v2786 = vunpack.c.l.b16 %v2428
        %v2787 = vunpack.c.h.b16 %v2428
        %v2788 = vunpack.c.l.b16 %v2429
        %v2789 = vunpack.c.h.b16 %v2429
        %v2790 = vunpack.c.l.b16 %v2430
        %v2791 = vunpack.c.h.b16 %v2430
        %v2792 = vunpack.c.l.b16 %v2431
        %v2793 = vunpack.c.h.b16 %v2431
        %v2794 = vunpack.c.l.b16 %v2432
        %v2795 = vunpack.c.h.b16 %v2432
        %v2796 = vunpack.c.l.b16 %v2433
        %v2797 = vunpack.c.h.b16 %v2433
        %v2798 = vunpack.c.l.b16 %v2434
        %v2799 = vunpack.c.h.b16 %v2434
        %v2800 = vunpack.c.l.b16 %v2435
        %v2801 = vunpack.c.h.b16 %v2435
        %v2802 = vunpack.c.l.b16 %v2436
        %v2803 = vunpack.c.h.b16 %v2436
        %v2804 = vunpack.c.l.b16 %v2437
        %v2805 = vunpack.c.h.b16 %v2437
        %v2806 = vunpack.c.l.b16 %v2438
        %v2807 = vunpack.c.h.b16 %v2438
        %v2808 = vunpack.c.l.b16 %v2439
        %v2809 = vunpack.c.h.b16 %v2439
        %v2810 = vunpack.c.l.b16 %v2440
        %v2811 = vunpack.c.h.b16 %v2440
        %v2812 = vunpack.c.l.b16 %v2441
        %v2813 = vunpack.c.h.b16 %v2441
        %v2814 = vunpack.c.l.b16 %v2442
        %v2815 = vunpack.c.h.b16 %v2442
        %v2816 = vunpack.c.l.b16 %v2443
        %v2817 = vunpack.c.h.b16 %v2443
        %v2818 = vunpack.c.l.b16 %v2444
        %v2819 = vunpack.c.h.b16 %v2444
        %v2820 = vunpack.c.l.b16 %v2445
        %v2821 = vunpack.c.h.b16 %v2445
        %v2822 = vunpack.c.l.b16 %v2446
        %v2823 = vunpack.c.h.b16 %v2446
        %v2824 = vunpack.c.l.b16 %v2447
        %v2825 = vunpack.c.h.b16 %v2447
        %v2826 = vunpack.c.l.b16 %v2448
        %v2827 = vunpack.c.h.b16 %v2448
        %v2828 = vunpack.c.l.b16 %v2449
        %v2829 = vunpack.c.h.b16 %v2449
        %v2830 = vunpack.c.l.b16 %v2450
        %v2831 = vunpack.c.h.b16 %v2450
        %v2832 = vunpack.c.l.b16 %v2451
        %v2833 = vunpack.c.h.b16 %v2451
        %v2834 = vunpack.c.l.b16 %v2452
        %v2835 = vunpack.c.h.b16 %v2452
        %v2836 = vunpack.c.l.b16 %v2453
        %v2837 = vunpack.c.h.b16 %v2453
        %v2838 = vpack.c.b16 %v2586, %v2582
        %v2839 = vpack.c.b16 %v2587, %v2583
        %v2840 = vpack.c.b16 %v2588, %v2584
        %v2841 = vpack.c.b16 %v2589, %v2585
        %v2842 = vpack.c.b16 %v2594, %v2590
        %v2843 = vpack.c.b16 %v2595, %v2591
        %v2844 = vpack.c.b16 %v2596, %v2592
        %v2845 = vpack.c.b16 %v2597, %v2593
        %v2846 = vpack.c.b16 %v2602, %v2598
        %v2847 = vpack.c.b16 %v2603, %v2599
        %v2848 = vpack.c.b16 %v2604, %v2600
        %v2849 = vpack.c.b16 %v2605, %v2601
        %v2850 = vpack.c.b16 %v2610, %v2606
        %v2851 = vpack.c.b16 %v2611, %v2607
        %v2852 = vpack.c.b16 %v2612, %v2608
        %v2853 = vpack.c.b16 %v2613, %v2609
        %v2854 = vpack.c.b16 %v2618, %v2614
        %v2855 = vpack.c.b16 %v2619, %v2615
        %v2856 = vpack.c.b16 %v2620, %v2616
        %v2857 = vpack.c.b16 %v2621, %v2617
        %v2858 = vpack.c.b16 %v2626, %v2622
        %v2859 = vpack.c.b16 %v2627, %v2623
        %v2860 = vpack.c.b16 %v2628, %v2624
        %v2861 = vpack.c.b16 %v2629, %v2625
        %v2862 = vpack.c.b16 %v2634, %v2630
        %v2863 = vpack.c.b16 %v2635, %v2631
        %v2864 = vpack.c.b16 %v2636, %v2632
        %v2865 = vpack.c.b16 %v2637, %v2633
        %v2866 = vpack.c.b16 %v2642, %v2638
        %v2867 = vpack.c.b16 %v2643, %v2639
        %v2868 = vpack.c.b16 %v2644, %v2640
        %v2869 = vpack.c.b16 %v2645, %v2641
        %v2870 = vpack.c.b16 %v2650, %v2646
        %v2871 = vpack.c.b16 %v2651, %v2647
        %v2872 = vpack.c.b16 %v2652, %v2648
        %v2873 = vpack.c.b16 %v2653, %v2649
        %v2874 = vpack.c.b16 %v2658, %v2654
        %v2875 = vpack.c.b16 %v2659, %v2655
        %v2876 = vpack.c.b16 %v2660, %v2656
        %v2877 = vpack.c.b16 %v2661, %v2657
        %v2878 = vpack.c.b16 %v2666, %v2662
        %v2879 = vpack.c.b16 %v2667, %v2663
        %v2880 = vpack.c.b16 %v2668, %v2664
        %v2881 = vpack.c.b16 %v2669, %v2665
        %v2882 = vpack.c.b16 %v2674, %v2670
        %v2883 = vpack.c.b16 %v2675, %v2671
        %v2884 = vpack.c.b16 %v2676, %v2672
        %v2885 = vpack.c.b16 %v2677, %v2673
        %v2886 = vpack.c.b16 %v2682, %v2678
        %v2887 = vpack.c.b16 %v2683, %v2679
        %v2888 = vpack.c.b16 %v2684, %v2680
        %v2889 = vpack.c.b16 %v2685, %v2681
        %v2890 = vpack.c.b16 %v2690, %v2686
        %v2891 = vpack.c.b16 %v2691, %v2687
        %v2892 = vpack.c.b16 %v2692, %v2688
        %v2893 = vpack.c.b16 %v2693, %v2689
        %v2894 = vpack.c.b16 %v2698, %v2694
        %v2895 = vpack.c.b16 %v2699, %v2695
        %v2896 = vpack.c.b16 %v2700, %v2696
        %v2897 = vpack.c.b16 %v2701, %v2697
        %v2898 = vpack.c.b16 %v2706, %v2702
        %v2899 = vpack.c.b16 %v2707, %v2703
        %v2900 = vpack.c.b16 %v2708, %v2704
        %v2901 = vpack.c.b16 %v2709, %v2705
        %v2902 = vpack.c.b16 %v2714, %v2710
        %v2903 = vpack.c.b16 %v2715, %v2711
        %v2904 = vpack.c.b16 %v2716, %v2712
        %v2905 = vpack.c.b16 %v2717, %v2713
        %v2906 = vpack.c.b16 %v2722, %v2718
        %v2907 = vpack.c.b16 %v2723, %v2719
        %v2908 = vpack.c.b16 %v2724, %v2720
        %v2909 = vpack.c.b16 %v2725, %v2721
        %v2910 = vpack.c.b16 %v2730, %v2726
        %v2911 = vpack.c.b16 %v2731, %v2727
        %v2912 = vpack.c.b16 %v2732, %v2728
        %v2913 = vpack.c.b16 %v2733, %v2729
        %v2914 = vpack.c.b16 %v2738, %v2734
        %v2915 = vpack.c.b16 %v2739, %v2735
        %v2916 = vpack.c.b16 %v2740, %v2736
        %v2917 = vpack.c.b16 %v2741, %v2737
        %v2918 = vpack.c.b16 %v2746, %v2742
        %v2919 = vpack.c.b16 %v2747, %v2743
        %v2920 = vpack.c.b16 %v2748, %v2744
        %v2921 = vpack.c.b16 %v2749, %v2745
        %v2922 = vpack.c.b16 %v2754, %v2750
        %v2923 = vpack.c.b16 %v2755, %v2751
        %v2924 = vpack.c.b16 %v2756, %v2752
        %v2925 = vpack.c.b16 %v2757, %v2753
        %v2926 = vpack.c.b16 %v2762, %v2758
        %v2927 = vpack.c.b16 %v2763, %v2759
        %v2928 = vpack.c.b16 %v2764, %v2760
        %v2929 = vpack.c.b16 %v2765, %v2761
        %v2930 = vpack.c.b16 %v2770, %v2766
        %v2931 = vpack.c.b16 %v2771, %v2767
        %v2932 = vpack.c.b16 %v2772, %v2768
        %v2933 = vpack.c.b16 %v2773, %v2769
        %v2934 = vpack.c.b16 %v2778, %v2774
        %v2935 = vpack.c.b16 %v2779, %v2775
        %v2936 = vpack.c.b16 %v2780, %v2776
        %v2937 = vpack.c.b16 %v2781, %v2777
        %v2938 = vpack.c.b16 %v2786, %v2782
        %v2939 = vpack.c.b16 %v2787, %v2783
        %v2940 = vpack.c.b16 %v2788, %v2784
        %v2941 = vpack.c.b16 %v2789, %v2785
        %v2942 = vpack.c.b16 %v2794, %v2790
        %v2943 = vpack.c.b16 %v2795, %v2791
        %v2944 = vpack.c.b16 %v2796, %v2792
        %v2945 = vpack.c.b16 %v2797, %v2793
        %v2946 = vpack.c.b16 %v2802, %v2798
        %v2947 = vpack.c.b16 %v2803, %v2799
        %v2948 = vpack.c.b16 %v2804, %v2800
        %v2949 = vpack.c.b16 %v2805, %v2801
        %v2950 = vpack.c.b16 %v2810, %v2806
        %v2951 = vpack.c.b16 %v2811, %v2807
        %v2952 = vpack.c.b16 %v2812, %v2808
        %v2953 = vpack.c.b16 %v2813, %v2809
        %v2954 = vpack.c.b16 %v2818, %v2814
        %v2955 = vpack.c.b16 %v2819, %v2815
        %v2956 = vpack.c.b16 %v2820, %v2816
        %v2957 = vpack.c.b16 %v2821, %v2817
        %v2958 = vpack.c.b16 %v2826, %v2822
        %v2959 = vpack.c.b16 %v2827, %v2823
        %v2960 = vpack.c.b16 %v2828, %v2824
        %v2961 = vpack.c.b16 %v2829, %v2825
        %v2962 = vpack.c.b16 %v2834, %v2830
        %v2963 = vpack.c.b16 %v2835, %v2831
        %v2964 = vpack.c.b16 %v2836, %v2832
        %v2965 = vpack.c.b16 %v2837, %v2833
        %3094 = vmatprep.subr.bf16.mxu0 %v2839
        %3095 = vmatpush1.bf16.msra.mxu0 %v2838
        %3096 = vmatprep.subr.bf16.mxu0 %v2843
        %3097 = vmatpush1.bf16.msra.mxu0 %v2842
        %3098 = vmatprep.subr.bf16.mxu0 %v2847
        %3099 = vmatpush1.bf16.msra.mxu0 %v2846
        %3100 = vmatprep.subr.bf16.mxu0 %v2851
        %3101 = vmatpush1.bf16.msra.mxu0 %v2850
        %3102 = vmatprep.subr.bf16.mxu0 %v2855
        %3103 = vmatpush1.bf16.msra.mxu0 %v2854
        %3104 = vmatprep.subr.bf16.mxu0 %v2859
        %3105 = vmatpush1.bf16.msra.mxu0 %v2858
        %3106 = vmatprep.subr.bf16.mxu0 %v2863
        %3107 = vmatpush1.bf16.msra.mxu0 %v2862
        %3108 = vmatprep.subr.bf16.mxu0 %v2867
        %3109 = vmatpush1.bf16.msra.mxu0 %v2866
        %3110 = vmatprep.subr.bf16.mxu0 %v2871
        %3111 = vmatpush1.bf16.msra.mxu0 %v2870
        %3112 = vmatprep.subr.bf16.mxu0 %v2875
        %3113 = vmatpush1.bf16.msra.mxu0 %v2874
        %3114 = vmatprep.subr.bf16.mxu0 %v2879
        %3115 = vmatpush1.bf16.msra.mxu0 %v2878
        %3116 = vmatprep.subr.bf16.mxu0 %v2883
        %3117 = vmatpush1.bf16.msra.mxu0 %v2882
        %3118 = vmatprep.subr.bf16.mxu0 %v2887
        %3119 = vmatpush1.bf16.msra.mxu0 %v2886
        %3120 = vmatprep.subr.bf16.mxu0 %v2891
        %3121 = vmatpush1.bf16.msra.mxu0 %v2890
        %3122 = vmatprep.subr.bf16.mxu0 %v2895
        %3123 = vmatpush1.bf16.msra.mxu0 %v2894
        %3124 = vmatprep.subr.bf16.mxu0 %v2899
        %3125 = vmatpush1.bf16.msra.mxu0 %v2898
        %3126 = vmatprep.mubr.bf16.mxu0 %v441
        %3127 = vmatmul.mubr.bf16.gmra.mrb[0].mxu0 %v440
        %v3128 = vpop.f32.mrb[0].mxu0
        %v3129 = vadd.f32 0.0, %v3128
        %v3130 = vpop.f32.mrb[0].mxu0
        %v3131 = vadd.f32 0.0, %v3130
        %v3132 = vpop.f32.mrb[0].mxu0
        %v3133 = vadd.f32 0.0, %v3132
        %v3134 = vpop.f32.mrb[0].mxu0
        %v3135 = vadd.f32 0.0, %v3134
        %3136 = vdwg.mxu0
        %3137 = vmatprep.subr.bf16.mxu0 %v2903
        %3138 = vmatpush1.bf16.msra.mxu0 %v2902
        %3139 = vmatprep.subr.bf16.mxu0 %v2907
        %3140 = vmatpush1.bf16.msra.mxu0 %v2906
        %3141 = vmatprep.subr.bf16.mxu0 %v2911
        %3142 = vmatpush1.bf16.msra.mxu0 %v2910
        %3143 = vmatprep.subr.bf16.mxu0 %v2915
        %3144 = vmatpush1.bf16.msra.mxu0 %v2914
        %3145 = vmatprep.subr.bf16.mxu0 %v2919
        %3146 = vmatpush1.bf16.msra.mxu0 %v2918
        %3147 = vmatprep.subr.bf16.mxu0 %v2923
        %3148 = vmatpush1.bf16.msra.mxu0 %v2922
        %3149 = vmatprep.subr.bf16.mxu0 %v2927
        %3150 = vmatpush1.bf16.msra.mxu0 %v2926
        %3151 = vmatprep.subr.bf16.mxu0 %v2931
        %3152 = vmatpush1.bf16.msra.mxu0 %v2930
        %3153 = vmatprep.subr.bf16.mxu0 %v2935
        %3154 = vmatpush1.bf16.msra.mxu0 %v2934
        %3155 = vmatprep.subr.bf16.mxu0 %v2939
        %3156 = vmatpush1.bf16.msra.mxu0 %v2938
        %3157 = vmatprep.subr.bf16.mxu0 %v2943
        %3158 = vmatpush1.bf16.msra.mxu0 %v2942
        %3159 = vmatprep.subr.bf16.mxu0 %v2947
        %3160 = vmatpush1.bf16.msra.mxu0 %v2946
        %3161 = vmatprep.subr.bf16.mxu0 %v2951
        %3162 = vmatpush1.bf16.msra.mxu0 %v2950
        %3163 = vmatprep.subr.bf16.mxu0 %v2955
        %3164 = vmatpush1.bf16.msra.mxu0 %v2954
        %3165 = vmatprep.subr.bf16.mxu0 %v2959
        %3166 = vmatpush1.bf16.msra.mxu0 %v2958
        %3167 = vmatprep.subr.bf16.mxu0 %v2963
        %3168 = vmatpush1.bf16.msra.mxu0 %v2962
        %3169 = vmatprep.mubr.bf16.mxu0 %v443
        %3170 = vmatmul.mubr.bf16.gmra.mrb[0].mxu0 %v442
        %v3171 = vpop.f32.mrb[0].mxu0
        %v3172 = vadd.f32 %v3129, %v3171
        %v3173 = vpop.f32.mrb[0].mxu0
        %v3174 = vadd.f32 %v3131, %v3173
        %v3175 = vpop.f32.mrb[0].mxu0
        %v3176 = vadd.f32 %v3133, %v3175
        %v3177 = vpop.f32.mrb[0].mxu0
        %v3178 = vadd.f32 %v3135, %v3177
        %3179 = vdwg.mxu0
        %3180 = vmatprep.subr.bf16.mxu0 %v2841
        %3181 = vmatpush1.bf16.msra.mxu0 %v2840
        %3182 = vmatprep.subr.bf16.mxu0 %v2845
        %3183 = vmatpush1.bf16.msra.mxu0 %v2844
        %3184 = vmatprep.subr.bf16.mxu0 %v2849
        %3185 = vmatpush1.bf16.msra.mxu0 %v2848
        %3186 = vmatprep.subr.bf16.mxu0 %v2853
        %3187 = vmatpush1.bf16.msra.mxu0 %v2852
        %3188 = vmatprep.subr.bf16.mxu0 %v2857
        %3189 = vmatpush1.bf16.msra.mxu0 %v2856
        %3190 = vmatprep.subr.bf16.mxu0 %v2861
        %3191 = vmatpush1.bf16.msra.mxu0 %v2860
        %3192 = vmatprep.subr.bf16.mxu0 %v2865
        %3193 = vmatpush1.bf16.msra.mxu0 %v2864
        %3194 = vmatprep.subr.bf16.mxu0 %v2869
        %3195 = vmatpush1.bf16.msra.mxu0 %v2868
        %3196 = vmatprep.subr.bf16.mxu0 %v2873
        %3197 = vmatpush1.bf16.msra.mxu0 %v2872
        %3198 = vmatprep.subr.bf16.mxu0 %v2877
        %3199 = vmatpush1.bf16.msra.mxu0 %v2876
        %3200 = vmatprep.subr.bf16.mxu0 %v2881
        %3201 = vmatpush1.bf16.msra.mxu0 %v2880
        %3202 = vmatprep.subr.bf16.mxu0 %v2885
        %3203 = vmatpush1.bf16.msra.mxu0 %v2884
        %3204 = vmatprep.subr.bf16.mxu0 %v2889
        %3205 = vmatpush1.bf16.msra.mxu0 %v2888
        %3206 = vmatprep.subr.bf16.mxu0 %v2893
        %3207 = vmatpush1.bf16.msra.mxu0 %v2892
        %3208 = vmatprep.subr.bf16.mxu0 %v2897
        %3209 = vmatpush1.bf16.msra.mxu0 %v2896
        %3210 = vmatprep.subr.bf16.mxu0 %v2901
        %3211 = vmatpush1.bf16.msra.mxu0 %v2900
        %3212 = vmatprep.mubr.bf16.mxu0 %v441
        %3213 = vmatmul.mubr.bf16.gmra.mrb[0].mxu0 %v440
        %v3214 = vpop.f32.mrb[0].mxu0
        %v3215 = vadd.f32 0.0, %v3214
        %v3216 = vpop.f32.mrb[0].mxu0
        %v3217 = vadd.f32 0.0, %v3216
        %v3218 = vpop.f32.mrb[0].mxu0
        %v3219 = vadd.f32 0.0, %v3218
        %v3220 = vpop.f32.mrb[0].mxu0
        %v3221 = vadd.f32 0.0, %v3220
        %3222 = vdwg.mxu0
        %3223 = vmatprep.subr.bf16.mxu0 %v2905
        %3224 = vmatpush1.bf16.msra.mxu0 %v2904
        %3225 = vmatprep.subr.bf16.mxu0 %v2909
        %3226 = vmatpush1.bf16.msra.mxu0 %v2908
        %3227 = vmatprep.subr.bf16.mxu0 %v2913
        %3228 = vmatpush1.bf16.msra.mxu0 %v2912
        %3229 = vmatprep.subr.bf16.mxu0 %v2917
        %3230 = vmatpush1.bf16.msra.mxu0 %v2916
        %3231 = vmatprep.subr.bf16.mxu0 %v2921
        %3232 = vmatpush1.bf16.msra.mxu0 %v2920
        %3233 = vmatprep.subr.bf16.mxu0 %v2925
        %3234 = vmatpush1.bf16.msra.mxu0 %v2924
        %3235 = vmatprep.subr.bf16.mxu0 %v2929
        %3236 = vmatpush1.bf16.msra.mxu0 %v2928
        %3237 = vmatprep.subr.bf16.mxu0 %v2933
        %3238 = vmatpush1.bf16.msra.mxu0 %v2932
        %3239 = vmatprep.subr.bf16.mxu0 %v2937
        %3240 = vmatpush1.bf16.msra.mxu0 %v2936
        %3241 = vmatprep.subr.bf16.mxu0 %v2941
        %3242 = vmatpush1.bf16.msra.mxu0 %v2940
        %3243 = vmatprep.subr.bf16.mxu0 %v2945
        %3244 = vmatpush1.bf16.msra.mxu0 %v2944
        %3245 = vmatprep.subr.bf16.mxu0 %v2949
        %3246 = vmatpush1.bf16.msra.mxu0 %v2948
        %3247 = vmatprep.subr.bf16.mxu0 %v2953
        %3248 = vmatpush1.bf16.msra.mxu0 %v2952
        %3249 = vmatprep.subr.bf16.mxu0 %v2957
        %3250 = vmatpush1.bf16.msra.mxu0 %v2956
        %3251 = vmatprep.subr.bf16.mxu0 %v2961
        %3252 = vmatpush1.bf16.msra.mxu0 %v2960
        %3253 = vmatprep.subr.bf16.mxu0 %v2965
        %3254 = vmatpush1.bf16.msra.mxu0 %v2964
        %3255 = vmatprep.mubr.bf16.mxu0 %v443
        %3256 = vmatmul.mubr.bf16.gmra.mrb[0].mxu0 %v442
        %v3257 = vpop.f32.mrb[0].mxu0
        %v3258 = vadd.f32 %v3215, %v3257
        %v3259 = vpop.f32.mrb[0].mxu0
        %v3260 = vadd.f32 %v3217, %v3259
        %v3261 = vpop.f32.mrb[0].mxu0
        %v3262 = vadd.f32 %v3219, %v3261
        %v3263 = vpop.f32.mrb[0].mxu0
        %v3264 = vadd.f32 %v3221, %v3263
        %3265 = vdwg.mxu0
        %v3266 = vadd.f32 %v2231, %v3172
        %v3267 = vadd.f32 %v2233, %v3174
        %v3268 = vadd.f32 %v2317, %v3258
        %v3269 = vadd.f32 %v2319, %v3260
        %v3270 = vadd.f32 %v2235, %v3176
        %v3271 = vadd.f32 %v2237, %v3178
        %v3272 = vadd.f32 %v2321, %v3262
        %v3273 = vadd.f32 %v2323, %v3264
        %v3274 = vld [vmem:[#allocation7] sm:$0xf]
        %v3276 = vlaneseq
        %v3277 = vshrl.u32 %v3276, 7
        %v3278 = vsub.s32 0, %v3277
        %v3279 = vrot.slane %v3274, %v3278
        %v3280 = vlaneseq
        %v3281 = vshrl.u32 %v3280, 7
        %v3282 = vsub.s32 1, %v3281
        %v3283 = vrot.slane %v3274, %v3282
        %v3284 = vlaneseq
        %v3285 = vshrl.u32 %v3284, 7
        %v3286 = vsub.s32 2, %v3285
        %v3287 = vrot.slane %v3274, %v3286
        %v3288 = vlaneseq
        %v3289 = vshrl.u32 %v3288, 7
        %v3290 = vsub.s32 3, %v3289
        %v3291 = vrot.slane %v3274, %v3290
        %v3296 = vadd.f32 %v3266, %v3279
        %v3297 = vadd.f32 %v3267, %v3283
        %v3298 = vadd.f32 %v3268, %v3287
        %v3299 = vadd.f32 %v3269, %v3291
        %v3300 = vadd.f32 %v3270, %v3279
        %v3301 = vadd.f32 %v3271, %v3283
        %v3302 = vadd.f32 %v3272, %v3287
        %v3303 = vadd.f32 %v3273, %v3291
        %v3304 = vmax.f32 %v3296, 0.0
        %v3305 = vmax.f32 %v3297, 0.0
        %v3306 = vmax.f32 %v3298, 0.0
        %v3307 = vmax.f32 %v3299, 0.0
        %v3308 = vmax.f32 %v3300, 0.0
        %v3309 = vmax.f32 %v3301, 0.0
        %v3310 = vmax.f32 %v3302, 0.0
        %v3311 = vmax.f32 %v3303, 0.0
        %v3312 = vpack.c.bf16 %v3308, %v3304
        %v3313 = vpack.c.bf16 %v3309, %v3305
        %v3314 = vpack.c.bf16 %v3310, %v3306
        %v3315 = vpack.c.bf16 %v3311, %v3307
        %v3317 = vshrl.u32 %v3312, 16
        %v3319 = vrot.slane %v3317, 7
        %v3321 = vshrl.u32 %v3313, 16
        %v3323 = vrot.slane %v3321, 7
        %v3325 = vshrl.u32 %v3314, 16
        %v3327 = vrot.slane %v3325, 7
        %v3329 = vshrl.u32 %v3315, 16
        %v3331 = vrot.slane %v3329, 7
        %v3336 = vshll.u32 %v3312, 16
        %v3338 = vor.u32 %v3319, %v3336
        %v3339 = vshll.u32 %v3313, 16
        %v3341 = vor.u32 %v3323, %v3339
        %v3342 = vshll.u32 %v3314, 16
        %v3344 = vor.u32 %v3327, %v3342
        %v3345 = vshll.u32 %v3315, 16
        %v3347 = vor.u32 %v3331, %v3345
        %v3352 = vsel %vm382, %v3319, %v3338
        %v3353 = vsel %vm382, %v3323, %v3341
        %v3354 = vsel %vm382, %v3327, %v3344
        %v3355 = vsel %vm382, %v3331, %v3347
        %v3356 = vsel %vm398, 0, %v3352
        %v3357 = vsel %vm398, 0, %v3353
        %v3358 = vsel %vm398, 0, %v3354
        %v3359 = vsel %vm398, 0, %v3355
        %v3360 = vrot.slane %v3336, 1
        %v3361 = vor.u32 %v3317, %v3360
        %v3362 = vrot.slane %v3339, 1
        %v3363 = vor.u32 %v3321, %v3362
        %v3364 = vrot.slane %v3342, 1
        %v3365 = vor.u32 %v3325, %v3364
        %v3366 = vrot.slane %v3345, 1
        %v3367 = vor.u32 %v3329, %v3366
        %v3376 = vsel %vm423, %v3361, %v3360
        %v3377 = vsel %vm423, %v3363, %v3362
        %v3378 = vsel %vm423, %v3365, %v3364
        %v3379 = vsel %vm423, %v3367, %v3366
        %v3380 = vsel %vm439, 0, %v3376
        %v3381 = vsel %vm439, 0, %v3377
        %v3382 = vsel %vm439, 0, %v3378
        %v3383 = vsel %vm439, 0, %v3379
        %v3384 = vld [vmem:[#allocation8] sm:$0xff]
        %v3385 = vld [vmem:[#allocation8 + $0x8] sm:$0xff]
        %v3386 = vld [vmem:[#allocation8 + $0x10] sm:$0xff]
        %v3387 = vld [vmem:[#allocation8 + $0x18] sm:$0xff]
        %v3388 = vld [vmem:[#allocation8 + $0x20] sm:$0xff]
        %v3389 = vld [vmem:[#allocation8 + $0x28] sm:$0xff]
        %v3390 = vld [vmem:[#allocation8 + $0x30] sm:$0xff]
        %v3391 = vld [vmem:[#allocation8 + $0x38] sm:$0xff]
        %v3392 = vld [vmem:[#allocation8 + $0x40] sm:$0xff]
        %v3393 = vld [vmem:[#allocation8 + $0x48] sm:$0xff]
        %v3394 = vld [vmem:[#allocation8 + $0x50] sm:$0xff]
        %v3395 = vld [vmem:[#allocation8 + $0x58] sm:$0xff]
        %v3396 = vld [vmem:[#allocation8 + $0x60] sm:$0xff]
        %v3397 = vld [vmem:[#allocation8 + $0x68] sm:$0xff]
        %v3398 = vld [vmem:[#allocation8 + $0x70] sm:$0xff]
        %v3399 = vld [vmem:[#allocation8 + $0x78] sm:$0xff]
        %v3400 = vld [vmem:[#allocation8 + $0x80] sm:$0xff]
        %v3401 = vld [vmem:[#allocation8 + $0x88] sm:$0xff]
        %v3402 = vld [vmem:[#allocation8 + $0x90] sm:$0xff]
        %v3403 = vld [vmem:[#allocation8 + $0x98] sm:$0xff]
        %v3404 = vld [vmem:[#allocation8 + $0xa0] sm:$0xff]
        %v3405 = vld [vmem:[#allocation8 + $0xa8] sm:$0xff]
        %v3406 = vld [vmem:[#allocation8 + $0xb0] sm:$0xff]
        %v3407 = vld [vmem:[#allocation8 + $0xb8] sm:$0xff]
        %v3408 = vld [vmem:[#allocation8 + $0xc0] sm:$0xff]
        %v3409 = vld [vmem:[#allocation8 + $0xc8] sm:$0xff]
        %v3410 = vld [vmem:[#allocation8 + $0xd0] sm:$0xff]
        %v3411 = vld [vmem:[#allocation8 + $0xd8] sm:$0xff]
        %v3412 = vld [vmem:[#allocation8 + $0xe0] sm:$0xff]
        %v3413 = vld [vmem:[#allocation8 + $0xe8] sm:$0xff]
        %v3414 = vld [vmem:[#allocation8 + $0xf0] sm:$0xff]
        %v3415 = vld [vmem:[#allocation8 + $0xf8] sm:$0xff]
        %v3416 = vld [vmem:[#allocation8 + $0x100] sm:$0xff]
        %v3417 = vld [vmem:[#allocation8 + $0x108] sm:$0xff]
        %v3418 = vld [vmem:[#allocation8 + $0x110] sm:$0xff]
        %v3419 = vld [vmem:[#allocation8 + $0x118] sm:$0xff]
        %v3420 = vld [vmem:[#allocation8 + $0x120] sm:$0xff]
        %v3421 = vld [vmem:[#allocation8 + $0x128] sm:$0xff]
        %v3422 = vld [vmem:[#allocation8 + $0x130] sm:$0xff]
        %v3423 = vld [vmem:[#allocation8 + $0x138] sm:$0xff]
        %v3424 = vld [vmem:[#allocation8 + $0x140] sm:$0xff]
        %v3425 = vld [vmem:[#allocation8 + $0x148] sm:$0xff]
        %v3426 = vld [vmem:[#allocation8 + $0x150] sm:$0xff]
        %v3427 = vld [vmem:[#allocation8 + $0x158] sm:$0xff]
        %v3428 = vld [vmem:[#allocation8 + $0x160] sm:$0xff]
        %v3429 = vld [vmem:[#allocation8 + $0x168] sm:$0xff]
        %v3430 = vld [vmem:[#allocation8 + $0x170] sm:$0xff]
        %v3431 = vld [vmem:[#allocation8 + $0x178] sm:$0xff]
        %v3432 = vld [vmem:[#allocation8 + $0x180] sm:$0xff]
        %v3433 = vld [vmem:[#allocation8 + $0x188] sm:$0xff]
        %v3434 = vld [vmem:[#allocation8 + $0x190] sm:$0xff]
        %v3435 = vld [vmem:[#allocation8 + $0x198] sm:$0xff]
        %v3436 = vld [vmem:[#allocation8 + $0x1a0] sm:$0xff]
        %v3437 = vld [vmem:[#allocation8 + $0x1a8] sm:$0xff]
        %v3438 = vld [vmem:[#allocation8 + $0x1b0] sm:$0xff]
        %v3439 = vld [vmem:[#allocation8 + $0x1b8] sm:$0xff]
        %v3440 = vld [vmem:[#allocation8 + $0x1c0] sm:$0xff]
        %v3441 = vld [vmem:[#allocation8 + $0x1c8] sm:$0xff]
        %v3442 = vld [vmem:[#allocation8 + $0x1d0] sm:$0xff]
        %v3443 = vld [vmem:[#allocation8 + $0x1d8] sm:$0xff]
        %v3444 = vld [vmem:[#allocation8 + $0x1e0] sm:$0xff]
        %v3445 = vld [vmem:[#allocation8 + $0x1e8] sm:$0xff]
        %v3446 = vld [vmem:[#allocation8 + $0x1f0] sm:$0xff]
        %v3447 = vld [vmem:[#allocation8 + $0x1f8] sm:$0xff]
        %v3448 = vld [vmem:[#allocation8 + $0x200] sm:$0xff]
        %v3449 = vld [vmem:[#allocation8 + $0x208] sm:$0xff]
        %v3450 = vld [vmem:[#allocation8 + $0x210] sm:$0xff]
        %v3451 = vld [vmem:[#allocation8 + $0x218] sm:$0xff]
        %v3452 = vld [vmem:[#allocation8 + $0x220] sm:$0xff]
        %v3453 = vld [vmem:[#allocation8 + $0x228] sm:$0xff]
        %v3454 = vld [vmem:[#allocation8 + $0x230] sm:$0xff]
        %v3455 = vld [vmem:[#allocation8 + $0x238] sm:$0xff]
        %v3456 = vld [vmem:[#allocation8 + $0x240] sm:$0xff]
        %v3457 = vld [vmem:[#allocation8 + $0x248] sm:$0xff]
        %v3458 = vld [vmem:[#allocation8 + $0x250] sm:$0xff]
        %v3459 = vld [vmem:[#allocation8 + $0x258] sm:$0xff]
        %v3460 = vld [vmem:[#allocation8 + $0x260] sm:$0xff]
        %v3461 = vld [vmem:[#allocation8 + $0x268] sm:$0xff]
        %v3462 = vld [vmem:[#allocation8 + $0x270] sm:$0xff]
        %v3463 = vld [vmem:[#allocation8 + $0x278] sm:$0xff]
        %v3464 = vld [vmem:[#allocation8 + $0x280] sm:$0xff]
        %v3465 = vld [vmem:[#allocation8 + $0x288] sm:$0xff]
        %v3466 = vld [vmem:[#allocation8 + $0x290] sm:$0xff]
        %v3467 = vld [vmem:[#allocation8 + $0x298] sm:$0xff]
        %v3468 = vld [vmem:[#allocation8 + $0x2a0] sm:$0xff]
        %v3469 = vld [vmem:[#allocation8 + $0x2a8] sm:$0xff]
        %v3470 = vld [vmem:[#allocation8 + $0x2b0] sm:$0xff]
        %v3471 = vld [vmem:[#allocation8 + $0x2b8] sm:$0xff]
        %v3472 = vld [vmem:[#allocation8 + $0x2c0] sm:$0xff]
        %v3473 = vld [vmem:[#allocation8 + $0x2c8] sm:$0xff]
        %v3474 = vld [vmem:[#allocation8 + $0x2d0] sm:$0xff]
        %v3475 = vld [vmem:[#allocation8 + $0x2d8] sm:$0xff]
        %v3476 = vld [vmem:[#allocation8 + $0x2e0] sm:$0xff]
        %v3477 = vld [vmem:[#allocation8 + $0x2e8] sm:$0xff]
        %v3478 = vld [vmem:[#allocation8 + $0x2f0] sm:$0xff]
        %v3479 = vld [vmem:[#allocation8 + $0x2f8] sm:$0xff]
        %v3480 = vld [vmem:[#allocation8 + $0x300] sm:$0xff]
        %v3481 = vld [vmem:[#allocation8 + $0x308] sm:$0xff]
        %v3482 = vld [vmem:[#allocation8 + $0x310] sm:$0xff]
        %v3483 = vld [vmem:[#allocation8 + $0x318] sm:$0xff]
        %v3484 = vld [vmem:[#allocation8 + $0x320] sm:$0xff]
        %v3485 = vld [vmem:[#allocation8 + $0x328] sm:$0xff]
        %v3486 = vld [vmem:[#allocation8 + $0x330] sm:$0xff]
        %v3487 = vld [vmem:[#allocation8 + $0x338] sm:$0xff]
        %v3488 = vld [vmem:[#allocation8 + $0x340] sm:$0xff]
        %v3489 = vld [vmem:[#allocation8 + $0x348] sm:$0xff]
        %v3490 = vld [vmem:[#allocation8 + $0x350] sm:$0xff]
        %v3491 = vld [vmem:[#allocation8 + $0x358] sm:$0xff]
        %v3492 = vld [vmem:[#allocation8 + $0x360] sm:$0xff]
        %v3493 = vld [vmem:[#allocation8 + $0x368] sm:$0xff]
        %v3494 = vld [vmem:[#allocation8 + $0x370] sm:$0xff]
        %v3495 = vld [vmem:[#allocation8 + $0x378] sm:$0xff]
        %v3496 = vld [vmem:[#allocation8 + $0x380] sm:$0xff]
        %v3497 = vld [vmem:[#allocation8 + $0x388] sm:$0xff]
        %v3498 = vld [vmem:[#allocation8 + $0x390] sm:$0xff]
        %v3499 = vld [vmem:[#allocation8 + $0x398] sm:$0xff]
        %v3500 = vld [vmem:[#allocation8 + $0x3a0] sm:$0xff]
        %v3501 = vld [vmem:[#allocation8 + $0x3a8] sm:$0xff]
        %v3502 = vld [vmem:[#allocation8 + $0x3b0] sm:$0xff]
        %v3503 = vld [vmem:[#allocation8 + $0x3b8] sm:$0xff]
        %v3504 = vld [vmem:[#allocation8 + $0x3c0] sm:$0xff]
        %v3505 = vld [vmem:[#allocation8 + $0x3c8] sm:$0xff]
        %v3506 = vld [vmem:[#allocation8 + $0x3d0] sm:$0xff]
        %v3507 = vld [vmem:[#allocation8 + $0x3d8] sm:$0xff]
        %v3508 = vld [vmem:[#allocation8 + $0x3e0] sm:$0xff]
        %v3509 = vld [vmem:[#allocation8 + $0x3e8] sm:$0xff]
        %v3510 = vld [vmem:[#allocation8 + $0x3f0] sm:$0xff]
        %v3511 = vld [vmem:[#allocation8 + $0x3f8] sm:$0xff]
        %s3512 = scalar_lea.vmem [#allocation8], 1024
        %v3513 = vld [vmem:[%s3512] sm:$0xff]
        %v3514 = vld [vmem:[%s3512 + $0x8] sm:$0xff]
        %v3515 = vld [vmem:[%s3512 + $0x10] sm:$0xff]
        %v3516 = vld [vmem:[%s3512 + $0x18] sm:$0xff]
        %v3517 = vld [vmem:[%s3512 + $0x20] sm:$0xff]
        %v3518 = vld [vmem:[%s3512 + $0x28] sm:$0xff]
        %v3519 = vld [vmem:[%s3512 + $0x30] sm:$0xff]
        %v3520 = vld [vmem:[%s3512 + $0x38] sm:$0xff]
        %v3521 = vld [vmem:[%s3512 + $0x40] sm:$0xff]
        %v3522 = vld [vmem:[%s3512 + $0x48] sm:$0xff]
        %v3523 = vld [vmem:[%s3512 + $0x50] sm:$0xff]
        %v3524 = vld [vmem:[%s3512 + $0x58] sm:$0xff]
        %v3525 = vld [vmem:[%s3512 + $0x60] sm:$0xff]
        %v3526 = vld [vmem:[%s3512 + $0x68] sm:$0xff]
        %v3527 = vld [vmem:[%s3512 + $0x70] sm:$0xff]
        %v3528 = vld [vmem:[%s3512 + $0x78] sm:$0xff]
        %v3529 = vld [vmem:[%s3512 + $0x80] sm:$0xff]
        %v3530 = vld [vmem:[%s3512 + $0x88] sm:$0xff]
        %v3531 = vld [vmem:[%s3512 + $0x90] sm:$0xff]
        %v3532 = vld [vmem:[%s3512 + $0x98] sm:$0xff]
        %v3533 = vld [vmem:[%s3512 + $0xa0] sm:$0xff]
        %v3534 = vld [vmem:[%s3512 + $0xa8] sm:$0xff]
        %v3535 = vld [vmem:[%s3512 + $0xb0] sm:$0xff]
        %v3536 = vld [vmem:[%s3512 + $0xb8] sm:$0xff]
        %v3537 = vld [vmem:[%s3512 + $0xc0] sm:$0xff]
        %v3538 = vld [vmem:[%s3512 + $0xc8] sm:$0xff]
        %v3539 = vld [vmem:[%s3512 + $0xd0] sm:$0xff]
        %v3540 = vld [vmem:[%s3512 + $0xd8] sm:$0xff]
        %v3541 = vld [vmem:[%s3512 + $0xe0] sm:$0xff]
        %v3542 = vld [vmem:[%s3512 + $0xe8] sm:$0xff]
        %v3543 = vld [vmem:[%s3512 + $0xf0] sm:$0xff]
        %v3544 = vld [vmem:[%s3512 + $0xf8] sm:$0xff]
        %v3545 = vld [vmem:[%s3512 + $0x100] sm:$0xff]
        %v3546 = vld [vmem:[%s3512 + $0x108] sm:$0xff]
        %v3547 = vld [vmem:[%s3512 + $0x110] sm:$0xff]
        %v3548 = vld [vmem:[%s3512 + $0x118] sm:$0xff]
        %v3549 = vld [vmem:[%s3512 + $0x120] sm:$0xff]
        %v3550 = vld [vmem:[%s3512 + $0x128] sm:$0xff]
        %v3551 = vld [vmem:[%s3512 + $0x130] sm:$0xff]
        %v3552 = vld [vmem:[%s3512 + $0x138] sm:$0xff]
        %v3553 = vld [vmem:[%s3512 + $0x140] sm:$0xff]
        %v3554 = vld [vmem:[%s3512 + $0x148] sm:$0xff]
        %v3555 = vld [vmem:[%s3512 + $0x150] sm:$0xff]
        %v3556 = vld [vmem:[%s3512 + $0x158] sm:$0xff]
        %v3557 = vld [vmem:[%s3512 + $0x160] sm:$0xff]
        %v3558 = vld [vmem:[%s3512 + $0x168] sm:$0xff]
        %v3559 = vld [vmem:[%s3512 + $0x170] sm:$0xff]
        %v3560 = vld [vmem:[%s3512 + $0x178] sm:$0xff]
        %v3561 = vld [vmem:[%s3512 + $0x180] sm:$0xff]
        %v3562 = vld [vmem:[%s3512 + $0x188] sm:$0xff]
        %v3563 = vld [vmem:[%s3512 + $0x190] sm:$0xff]
        %v3564 = vld [vmem:[%s3512 + $0x198] sm:$0xff]
        %v3565 = vld [vmem:[%s3512 + $0x1a0] sm:$0xff]
        %v3566 = vld [vmem:[%s3512 + $0x1a8] sm:$0xff]
        %v3567 = vld [vmem:[%s3512 + $0x1b0] sm:$0xff]
        %v3568 = vld [vmem:[%s3512 + $0x1b8] sm:$0xff]
        %v3569 = vld [vmem:[%s3512 + $0x1c0] sm:$0xff]
        %v3570 = vld [vmem:[%s3512 + $0x1c8] sm:$0xff]
        %v3571 = vld [vmem:[%s3512 + $0x1d0] sm:$0xff]
        %v3572 = vld [vmem:[%s3512 + $0x1d8] sm:$0xff]
        %v3573 = vld [vmem:[%s3512 + $0x1e0] sm:$0xff]
        %v3574 = vld [vmem:[%s3512 + $0x1e8] sm:$0xff]
        %v3575 = vld [vmem:[%s3512 + $0x1f0] sm:$0xff]
        %v3576 = vld [vmem:[%s3512 + $0x1f8] sm:$0xff]
        %v3577 = vld [vmem:[%s3512 + $0x200] sm:$0xff]
        %v3578 = vld [vmem:[%s3512 + $0x208] sm:$0xff]
        %v3579 = vld [vmem:[%s3512 + $0x210] sm:$0xff]
        %v3580 = vld [vmem:[%s3512 + $0x218] sm:$0xff]
        %v3581 = vld [vmem:[%s3512 + $0x220] sm:$0xff]
        %v3582 = vld [vmem:[%s3512 + $0x228] sm:$0xff]
        %v3583 = vld [vmem:[%s3512 + $0x230] sm:$0xff]
        %v3584 = vld [vmem:[%s3512 + $0x238] sm:$0xff]
        %v3585 = vld [vmem:[%s3512 + $0x240] sm:$0xff]
        %v3586 = vld [vmem:[%s3512 + $0x248] sm:$0xff]
        %v3587 = vld [vmem:[%s3512 + $0x250] sm:$0xff]
        %v3588 = vld [vmem:[%s3512 + $0x258] sm:$0xff]
        %v3589 = vld [vmem:[%s3512 + $0x260] sm:$0xff]
        %v3590 = vld [vmem:[%s3512 + $0x268] sm:$0xff]
        %v3591 = vld [vmem:[%s3512 + $0x270] sm:$0xff]
        %v3592 = vld [vmem:[%s3512 + $0x278] sm:$0xff]
        %v3593 = vld [vmem:[%s3512 + $0x280] sm:$0xff]
        %v3594 = vld [vmem:[%s3512 + $0x288] sm:$0xff]
        %v3595 = vld [vmem:[%s3512 + $0x290] sm:$0xff]
        %v3596 = vld [vmem:[%s3512 + $0x298] sm:$0xff]
        %v3597 = vld [vmem:[%s3512 + $0x2a0] sm:$0xff]
        %v3598 = vld [vmem:[%s3512 + $0x2a8] sm:$0xff]
        %v3599 = vld [vmem:[%s3512 + $0x2b0] sm:$0xff]
        %v3600 = vld [vmem:[%s3512 + $0x2b8] sm:$0xff]
        %v3601 = vld [vmem:[%s3512 + $0x2c0] sm:$0xff]
        %v3602 = vld [vmem:[%s3512 + $0x2c8] sm:$0xff]
        %v3603 = vld [vmem:[%s3512 + $0x2d0] sm:$0xff]
        %v3604 = vld [vmem:[%s3512 + $0x2d8] sm:$0xff]
        %v3605 = vld [vmem:[%s3512 + $0x2e0] sm:$0xff]
        %v3606 = vld [vmem:[%s3512 + $0x2e8] sm:$0xff]
        %v3607 = vld [vmem:[%s3512 + $0x2f0] sm:$0xff]
        %v3608 = vld [vmem:[%s3512 + $0x2f8] sm:$0xff]
        %v3609 = vld [vmem:[%s3512 + $0x300] sm:$0xff]
        %v3610 = vld [vmem:[%s3512 + $0x308] sm:$0xff]
        %v3611 = vld [vmem:[%s3512 + $0x310] sm:$0xff]
        %v3612 = vld [vmem:[%s3512 + $0x318] sm:$0xff]
        %v3613 = vld [vmem:[%s3512 + $0x320] sm:$0xff]
        %v3614 = vld [vmem:[%s3512 + $0x328] sm:$0xff]
        %v3615 = vld [vmem:[%s3512 + $0x330] sm:$0xff]
        %v3616 = vld [vmem:[%s3512 + $0x338] sm:$0xff]
        %v3617 = vld [vmem:[%s3512 + $0x340] sm:$0xff]
        %v3618 = vld [vmem:[%s3512 + $0x348] sm:$0xff]
        %v3619 = vld [vmem:[%s3512 + $0x350] sm:$0xff]
        %v3620 = vld [vmem:[%s3512 + $0x358] sm:$0xff]
        %v3621 = vld [vmem:[%s3512 + $0x360] sm:$0xff]
        %v3622 = vld [vmem:[%s3512 + $0x368] sm:$0xff]
        %v3623 = vld [vmem:[%s3512 + $0x370] sm:$0xff]
        %v3624 = vld [vmem:[%s3512 + $0x378] sm:$0xff]
        %v3625 = vld [vmem:[%s3512 + $0x380] sm:$0xff]
        %v3626 = vld [vmem:[%s3512 + $0x388] sm:$0xff]
        %v3627 = vld [vmem:[%s3512 + $0x390] sm:$0xff]
        %v3628 = vld [vmem:[%s3512 + $0x398] sm:$0xff]
        %v3629 = vld [vmem:[%s3512 + $0x3a0] sm:$0xff]
        %v3630 = vld [vmem:[%s3512 + $0x3a8] sm:$0xff]
        %v3631 = vld [vmem:[%s3512 + $0x3b0] sm:$0xff]
        %v3632 = vld [vmem:[%s3512 + $0x3b8] sm:$0xff]
        %v3633 = vld [vmem:[%s3512 + $0x3c0] sm:$0xff]
        %v3634 = vld [vmem:[%s3512 + $0x3c8] sm:$0xff]
        %v3635 = vld [vmem:[%s3512 + $0x3d0] sm:$0xff]
        %v3636 = vld [vmem:[%s3512 + $0x3d8] sm:$0xff]
        %v3637 = vld [vmem:[%s3512 + $0x3e0] sm:$0xff]
        %v3638 = vld [vmem:[%s3512 + $0x3e8] sm:$0xff]
        %v3639 = vld [vmem:[%s3512 + $0x3f0] sm:$0xff]
        %v3640 = vld [vmem:[%s3512 + $0x3f8] sm:$0xff]
        %v3769 = vunpack.c.l.b16 %v3513
        %v3770 = vunpack.c.h.b16 %v3513
        %v3771 = vunpack.c.l.b16 %v3514
        %v3772 = vunpack.c.h.b16 %v3514
        %v3773 = vunpack.c.l.b16 %v3515
        %v3774 = vunpack.c.h.b16 %v3515
        %v3775 = vunpack.c.l.b16 %v3516
        %v3776 = vunpack.c.h.b16 %v3516
        %v3777 = vunpack.c.l.b16 %v3517
        %v3778 = vunpack.c.h.b16 %v3517
        %v3779 = vunpack.c.l.b16 %v3518
        %v3780 = vunpack.c.h.b16 %v3518
        %v3781 = vunpack.c.l.b16 %v3519
        %v3782 = vunpack.c.h.b16 %v3519
        %v3783 = vunpack.c.l.b16 %v3520
        %v3784 = vunpack.c.h.b16 %v3520
        %v3785 = vunpack.c.l.b16 %v3521
        %v3786 = vunpack.c.h.b16 %v3521
        %v3787 = vunpack.c.l.b16 %v3522
        %v3788 = vunpack.c.h.b16 %v3522
        %v3789 = vunpack.c.l.b16 %v3523
        %v3790 = vunpack.c.h.b16 %v3523
        %v3791 = vunpack.c.l.b16 %v3524
        %v3792 = vunpack.c.h.b16 %v3524
        %v3793 = vunpack.c.l.b16 %v3525
        %v3794 = vunpack.c.h.b16 %v3525
        %v3795 = vunpack.c.l.b16 %v3526
        %v3796 = vunpack.c.h.b16 %v3526
        %v3797 = vunpack.c.l.b16 %v3527
        %v3798 = vunpack.c.h.b16 %v3527
        %v3799 = vunpack.c.l.b16 %v3528
        %v3800 = vunpack.c.h.b16 %v3528
        %v3801 = vunpack.c.l.b16 %v3529
        %v3802 = vunpack.c.h.b16 %v3529
        %v3803 = vunpack.c.l.b16 %v3530
        %v3804 = vunpack.c.h.b16 %v3530
        %v3805 = vunpack.c.l.b16 %v3531
        %v3806 = vunpack.c.h.b16 %v3531
        %v3807 = vunpack.c.l.b16 %v3532
        %v3808 = vunpack.c.h.b16 %v3532
        %v3809 = vunpack.c.l.b16 %v3533
        %v3810 = vunpack.c.h.b16 %v3533
        %v3811 = vunpack.c.l.b16 %v3534
        %v3812 = vunpack.c.h.b16 %v3534
        %v3813 = vunpack.c.l.b16 %v3535
        %v3814 = vunpack.c.h.b16 %v3535
        %v3815 = vunpack.c.l.b16 %v3536
        %v3816 = vunpack.c.h.b16 %v3536
        %v3817 = vunpack.c.l.b16 %v3537
        %v3818 = vunpack.c.h.b16 %v3537
        %v3819 = vunpack.c.l.b16 %v3538
        %v3820 = vunpack.c.h.b16 %v3538
        %v3821 = vunpack.c.l.b16 %v3539
        %v3822 = vunpack.c.h.b16 %v3539
        %v3823 = vunpack.c.l.b16 %v3540
        %v3824 = vunpack.c.h.b16 %v3540
        %v3825 = vunpack.c.l.b16 %v3541
        %v3826 = vunpack.c.h.b16 %v3541
        %v3827 = vunpack.c.l.b16 %v3542
        %v3828 = vunpack.c.h.b16 %v3542
        %v3829 = vunpack.c.l.b16 %v3543
        %v3830 = vunpack.c.h.b16 %v3543
        %v3831 = vunpack.c.l.b16 %v3544
        %v3832 = vunpack.c.h.b16 %v3544
        %v3833 = vunpack.c.l.b16 %v3545
        %v3834 = vunpack.c.h.b16 %v3545
        %v3835 = vunpack.c.l.b16 %v3546
        %v3836 = vunpack.c.h.b16 %v3546
        %v3837 = vunpack.c.l.b16 %v3547
        %v3838 = vunpack.c.h.b16 %v3547
        %v3839 = vunpack.c.l.b16 %v3548
        %v3840 = vunpack.c.h.b16 %v3548
        %v3841 = vunpack.c.l.b16 %v3549
        %v3842 = vunpack.c.h.b16 %v3549
        %v3843 = vunpack.c.l.b16 %v3550
        %v3844 = vunpack.c.h.b16 %v3550
        %v3845 = vunpack.c.l.b16 %v3551
        %v3846 = vunpack.c.h.b16 %v3551
        %v3847 = vunpack.c.l.b16 %v3552
        %v3848 = vunpack.c.h.b16 %v3552
        %v3849 = vunpack.c.l.b16 %v3553
        %v3850 = vunpack.c.h.b16 %v3553
        %v3851 = vunpack.c.l.b16 %v3554
        %v3852 = vunpack.c.h.b16 %v3554
        %v3853 = vunpack.c.l.b16 %v3555
        %v3854 = vunpack.c.h.b16 %v3555
        %v3855 = vunpack.c.l.b16 %v3556
        %v3856 = vunpack.c.h.b16 %v3556
        %v3857 = vunpack.c.l.b16 %v3557
        %v3858 = vunpack.c.h.b16 %v3557
        %v3859 = vunpack.c.l.b16 %v3558
        %v3860 = vunpack.c.h.b16 %v3558
        %v3861 = vunpack.c.l.b16 %v3559
        %v3862 = vunpack.c.h.b16 %v3559
        %v3863 = vunpack.c.l.b16 %v3560
        %v3864 = vunpack.c.h.b16 %v3560
        %v3865 = vunpack.c.l.b16 %v3561
        %v3866 = vunpack.c.h.b16 %v3561
        %v3867 = vunpack.c.l.b16 %v3562
        %v3868 = vunpack.c.h.b16 %v3562
        %v3869 = vunpack.c.l.b16 %v3563
        %v3870 = vunpack.c.h.b16 %v3563
        %v3871 = vunpack.c.l.b16 %v3564
        %v3872 = vunpack.c.h.b16 %v3564
        %v3873 = vunpack.c.l.b16 %v3565
        %v3874 = vunpack.c.h.b16 %v3565
        %v3875 = vunpack.c.l.b16 %v3566
        %v3876 = vunpack.c.h.b16 %v3566
        %v3877 = vunpack.c.l.b16 %v3567
        %v3878 = vunpack.c.h.b16 %v3567
        %v3879 = vunpack.c.l.b16 %v3568
        %v3880 = vunpack.c.h.b16 %v3568
        %v3881 = vunpack.c.l.b16 %v3569
        %v3882 = vunpack.c.h.b16 %v3569
        %v3883 = vunpack.c.l.b16 %v3570
        %v3884 = vunpack.c.h.b16 %v3570
        %v3885 = vunpack.c.l.b16 %v3571
        %v3886 = vunpack.c.h.b16 %v3571
        %v3887 = vunpack.c.l.b16 %v3572
        %v3888 = vunpack.c.h.b16 %v3572
        %v3889 = vunpack.c.l.b16 %v3573
        %v3890 = vunpack.c.h.b16 %v3573
        %v3891 = vunpack.c.l.b16 %v3574
        %v3892 = vunpack.c.h.b16 %v3574
        %v3893 = vunpack.c.l.b16 %v3575
        %v3894 = vunpack.c.h.b16 %v3575
        %v3895 = vunpack.c.l.b16 %v3576
        %v3896 = vunpack.c.h.b16 %v3576
        %v3897 = vunpack.c.l.b16 %v3577
        %v3898 = vunpack.c.h.b16 %v3577
        %v3899 = vunpack.c.l.b16 %v3578
        %v3900 = vunpack.c.h.b16 %v3578
        %v3901 = vunpack.c.l.b16 %v3579
        %v3902 = vunpack.c.h.b16 %v3579
        %v3903 = vunpack.c.l.b16 %v3580
        %v3904 = vunpack.c.h.b16 %v3580
        %v3905 = vunpack.c.l.b16 %v3581
        %v3906 = vunpack.c.h.b16 %v3581
        %v3907 = vunpack.c.l.b16 %v3582
        %v3908 = vunpack.c.h.b16 %v3582
        %v3909 = vunpack.c.l.b16 %v3583
        %v3910 = vunpack.c.h.b16 %v3583
        %v3911 = vunpack.c.l.b16 %v3584
        %v3912 = vunpack.c.h.b16 %v3584
        %v3913 = vunpack.c.l.b16 %v3585
        %v3914 = vunpack.c.h.b16 %v3585
        %v3915 = vunpack.c.l.b16 %v3586
        %v3916 = vunpack.c.h.b16 %v3586
        %v3917 = vunpack.c.l.b16 %v3587
        %v3918 = vunpack.c.h.b16 %v3587
        %v3919 = vunpack.c.l.b16 %v3588
        %v3920 = vunpack.c.h.b16 %v3588
        %v3921 = vunpack.c.l.b16 %v3589
        %v3922 = vunpack.c.h.b16 %v3589
        %v3923 = vunpack.c.l.b16 %v3590
        %v3924 = vunpack.c.h.b16 %v3590
        %v3925 = vunpack.c.l.b16 %v3591
        %v3926 = vunpack.c.h.b16 %v3591
        %v3927 = vunpack.c.l.b16 %v3592
        %v3928 = vunpack.c.h.b16 %v3592
        %v3929 = vunpack.c.l.b16 %v3593
        %v3930 = vunpack.c.h.b16 %v3593
        %v3931 = vunpack.c.l.b16 %v3594
        %v3932 = vunpack.c.h.b16 %v3594
        %v3933 = vunpack.c.l.b16 %v3595
        %v3934 = vunpack.c.h.b16 %v3595
        %v3935 = vunpack.c.l.b16 %v3596
        %v3936 = vunpack.c.h.b16 %v3596
        %v3937 = vunpack.c.l.b16 %v3597
        %v3938 = vunpack.c.h.b16 %v3597
        %v3939 = vunpack.c.l.b16 %v3598
        %v3940 = vunpack.c.h.b16 %v3598
        %v3941 = vunpack.c.l.b16 %v3599
        %v3942 = vunpack.c.h.b16 %v3599
        %v3943 = vunpack.c.l.b16 %v3600
        %v3944 = vunpack.c.h.b16 %v3600
        %v3945 = vunpack.c.l.b16 %v3601
        %v3946 = vunpack.c.h.b16 %v3601
        %v3947 = vunpack.c.l.b16 %v3602
        %v3948 = vunpack.c.h.b16 %v3602
        %v3949 = vunpack.c.l.b16 %v3603
        %v3950 = vunpack.c.h.b16 %v3603
        %v3951 = vunpack.c.l.b16 %v3604
        %v3952 = vunpack.c.h.b16 %v3604
        %v3953 = vunpack.c.l.b16 %v3605
        %v3954 = vunpack.c.h.b16 %v3605
        %v3955 = vunpack.c.l.b16 %v3606
        %v3956 = vunpack.c.h.b16 %v3606
        %v3957 = vunpack.c.l.b16 %v3607
        %v3958 = vunpack.c.h.b16 %v3607
        %v3959 = vunpack.c.l.b16 %v3608
        %v3960 = vunpack.c.h.b16 %v3608
        %v3961 = vunpack.c.l.b16 %v3609
        %v3962 = vunpack.c.h.b16 %v3609
        %v3963 = vunpack.c.l.b16 %v3610
        %v3964 = vunpack.c.h.b16 %v3610
        %v3965 = vunpack.c.l.b16 %v3611
        %v3966 = vunpack.c.h.b16 %v3611
        %v3967 = vunpack.c.l.b16 %v3612
        %v3968 = vunpack.c.h.b16 %v3612
        %v3969 = vunpack.c.l.b16 %v3613
        %v3970 = vunpack.c.h.b16 %v3613
        %v3971 = vunpack.c.l.b16 %v3614
        %v3972 = vunpack.c.h.b16 %v3614
        %v3973 = vunpack.c.l.b16 %v3615
        %v3974 = vunpack.c.h.b16 %v3615
        %v3975 = vunpack.c.l.b16 %v3616
        %v3976 = vunpack.c.h.b16 %v3616
        %v3977 = vunpack.c.l.b16 %v3617
        %v3978 = vunpack.c.h.b16 %v3617
        %v3979 = vunpack.c.l.b16 %v3618
        %v3980 = vunpack.c.h.b16 %v3618
        %v3981 = vunpack.c.l.b16 %v3619
        %v3982 = vunpack.c.h.b16 %v3619
        %v3983 = vunpack.c.l.b16 %v3620
        %v3984 = vunpack.c.h.b16 %v3620
        %v3985 = vunpack.c.l.b16 %v3621
        %v3986 = vunpack.c.h.b16 %v3621
        %v3987 = vunpack.c.l.b16 %v3622
        %v3988 = vunpack.c.h.b16 %v3622
        %v3989 = vunpack.c.l.b16 %v3623
        %v3990 = vunpack.c.h.b16 %v3623
        %v3991 = vunpack.c.l.b16 %v3624
        %v3992 = vunpack.c.h.b16 %v3624
        %v3993 = vunpack.c.l.b16 %v3625
        %v3994 = vunpack.c.h.b16 %v3625
        %v3995 = vunpack.c.l.b16 %v3626
        %v3996 = vunpack.c.h.b16 %v3626
        %v3997 = vunpack.c.l.b16 %v3627
        %v3998 = vunpack.c.h.b16 %v3627
        %v3999 = vunpack.c.l.b16 %v3628
        %v4000 = vunpack.c.h.b16 %v3628
        %v4001 = vunpack.c.l.b16 %v3629
        %v4002 = vunpack.c.h.b16 %v3629
        %v4003 = vunpack.c.l.b16 %v3630
        %v4004 = vunpack.c.h.b16 %v3630
        %v4005 = vunpack.c.l.b16 %v3631
        %v4006 = vunpack.c.h.b16 %v3631
        %v4007 = vunpack.c.l.b16 %v3632
        %v4008 = vunpack.c.h.b16 %v3632
        %v4009 = vunpack.c.l.b16 %v3633
        %v4010 = vunpack.c.h.b16 %v3633
        %v4011 = vunpack.c.l.b16 %v3634
        %v4012 = vunpack.c.h.b16 %v3634
        %v4013 = vunpack.c.l.b16 %v3635
        %v4014 = vunpack.c.h.b16 %v3635
        %v4015 = vunpack.c.l.b16 %v3636
        %v4016 = vunpack.c.h.b16 %v3636
        %v4017 = vunpack.c.l.b16 %v3637
        %v4018 = vunpack.c.h.b16 %v3637
        %v4019 = vunpack.c.l.b16 %v3638
        %v4020 = vunpack.c.h.b16 %v3638
        %v4021 = vunpack.c.l.b16 %v3639
        %v4022 = vunpack.c.h.b16 %v3639
        %v4023 = vunpack.c.l.b16 %v3640
        %v4024 = vunpack.c.h.b16 %v3640
        %v4025 = vpack.c.b16 %v3773, %v3769
        %v4026 = vpack.c.b16 %v3774, %v3770
        %v4027 = vpack.c.b16 %v3775, %v3771
        %v4028 = vpack.c.b16 %v3776, %v3772
        %v4029 = vpack.c.b16 %v3781, %v3777
        %v4030 = vpack.c.b16 %v3782, %v3778
        %v4031 = vpack.c.b16 %v3783, %v3779
        %v4032 = vpack.c.b16 %v3784, %v3780
        %v4033 = vpack.c.b16 %v3789, %v3785
        %v4034 = vpack.c.b16 %v3790, %v3786
        %v4035 = vpack.c.b16 %v3791, %v3787
        %v4036 = vpack.c.b16 %v3792, %v3788
        %v4037 = vpack.c.b16 %v3797, %v3793
        %v4038 = vpack.c.b16 %v3798, %v3794
        %v4039 = vpack.c.b16 %v3799, %v3795
        %v4040 = vpack.c.b16 %v3800, %v3796
        %v4041 = vpack.c.b16 %v3805, %v3801
        %v4042 = vpack.c.b16 %v3806, %v3802
        %v4043 = vpack.c.b16 %v3807, %v3803
        %v4044 = vpack.c.b16 %v3808, %v3804
        %v4045 = vpack.c.b16 %v3813, %v3809
        %v4046 = vpack.c.b16 %v3814, %v3810
        %v4047 = vpack.c.b16 %v3815, %v3811
        %v4048 = vpack.c.b16 %v3816, %v3812
        %v4049 = vpack.c.b16 %v3821, %v3817
        %v4050 = vpack.c.b16 %v3822, %v3818
        %v4051 = vpack.c.b16 %v3823, %v3819
        %v4052 = vpack.c.b16 %v3824, %v3820
        %v4053 = vpack.c.b16 %v3829, %v3825
        %v4054 = vpack.c.b16 %v3830, %v3826
        %v4055 = vpack.c.b16 %v3831, %v3827
        %v4056 = vpack.c.b16 %v3832, %v3828
        %v4057 = vpack.c.b16 %v3837, %v3833
        %v4058 = vpack.c.b16 %v3838, %v3834
        %v4059 = vpack.c.b16 %v3839, %v3835
        %v4060 = vpack.c.b16 %v3840, %v3836
        %v4061 = vpack.c.b16 %v3845, %v3841
        %v4062 = vpack.c.b16 %v3846, %v3842
        %v4063 = vpack.c.b16 %v3847, %v3843
        %v4064 = vpack.c.b16 %v3848, %v3844
        %v4065 = vpack.c.b16 %v3853, %v3849
        %v4066 = vpack.c.b16 %v3854, %v3850
        %v4067 = vpack.c.b16 %v3855, %v3851
        %v4068 = vpack.c.b16 %v3856, %v3852
        %v4069 = vpack.c.b16 %v3861, %v3857
        %v4070 = vpack.c.b16 %v3862, %v3858
        %v4071 = vpack.c.b16 %v3863, %v3859
        %v4072 = vpack.c.b16 %v3864, %v3860
        %v4073 = vpack.c.b16 %v3869, %v3865
        %v4074 = vpack.c.b16 %v3870, %v3866
        %v4075 = vpack.c.b16 %v3871, %v3867
        %v4076 = vpack.c.b16 %v3872, %v3868
        %v4077 = vpack.c.b16 %v3877, %v3873
        %v4078 = vpack.c.b16 %v3878, %v3874
        %v4079 = vpack.c.b16 %v3879, %v3875
        %v4080 = vpack.c.b16 %v3880, %v3876
        %v4081 = vpack.c.b16 %v3885, %v3881
        %v4082 = vpack.c.b16 %v3886, %v3882
        %v4083 = vpack.c.b16 %v3887, %v3883
        %v4084 = vpack.c.b16 %v3888, %v3884
        %v4085 = vpack.c.b16 %v3893, %v3889
        %v4086 = vpack.c.b16 %v3894, %v3890
        %v4087 = vpack.c.b16 %v3895, %v3891
        %v4088 = vpack.c.b16 %v3896, %v3892
        %v4089 = vpack.c.b16 %v3901, %v3897
        %v4090 = vpack.c.b16 %v3902, %v3898
        %v4091 = vpack.c.b16 %v3903, %v3899
        %v4092 = vpack.c.b16 %v3904, %v3900
        %v4093 = vpack.c.b16 %v3909, %v3905
        %v4094 = vpack.c.b16 %v3910, %v3906
        %v4095 = vpack.c.b16 %v3911, %v3907
        %v4096 = vpack.c.b16 %v3912, %v3908
        %v4097 = vpack.c.b16 %v3917, %v3913
        %v4098 = vpack.c.b16 %v3918, %v3914
        %v4099 = vpack.c.b16 %v3919, %v3915
        %v4100 = vpack.c.b16 %v3920, %v3916
        %v4101 = vpack.c.b16 %v3925, %v3921
        %v4102 = vpack.c.b16 %v3926, %v3922
        %v4103 = vpack.c.b16 %v3927, %v3923
        %v4104 = vpack.c.b16 %v3928, %v3924
        %v4105 = vpack.c.b16 %v3933, %v3929
        %v4106 = vpack.c.b16 %v3934, %v3930
        %v4107 = vpack.c.b16 %v3935, %v3931
        %v4108 = vpack.c.b16 %v3936, %v3932
        %v4109 = vpack.c.b16 %v3941, %v3937
        %v4110 = vpack.c.b16 %v3942, %v3938
        %v4111 = vpack.c.b16 %v3943, %v3939
        %v4112 = vpack.c.b16 %v3944, %v3940
        %v4113 = vpack.c.b16 %v3949, %v3945
        %v4114 = vpack.c.b16 %v3950, %v3946
        %v4115 = vpack.c.b16 %v3951, %v3947
        %v4116 = vpack.c.b16 %v3952, %v3948
        %v4117 = vpack.c.b16 %v3957, %v3953
        %v4118 = vpack.c.b16 %v3958, %v3954
        %v4119 = vpack.c.b16 %v3959, %v3955
        %v4120 = vpack.c.b16 %v3960, %v3956
        %v4121 = vpack.c.b16 %v3965, %v3961
        %v4122 = vpack.c.b16 %v3966, %v3962
        %v4123 = vpack.c.b16 %v3967, %v3963
        %v4124 = vpack.c.b16 %v3968, %v3964
        %v4125 = vpack.c.b16 %v3973, %v3969
        %v4126 = vpack.c.b16 %v3974, %v3970
        %v4127 = vpack.c.b16 %v3975, %v3971
        %v4128 = vpack.c.b16 %v3976, %v3972
        %v4129 = vpack.c.b16 %v3981, %v3977
        %v4130 = vpack.c.b16 %v3982, %v3978
        %v4131 = vpack.c.b16 %v3983, %v3979
        %v4132 = vpack.c.b16 %v3984, %v3980
        %v4133 = vpack.c.b16 %v3989, %v3985
        %v4134 = vpack.c.b16 %v3990, %v3986
        %v4135 = vpack.c.b16 %v3991, %v3987
        %v4136 = vpack.c.b16 %v3992, %v3988
        %v4137 = vpack.c.b16 %v3997, %v3993
        %v4138 = vpack.c.b16 %v3998, %v3994
        %v4139 = vpack.c.b16 %v3999, %v3995
        %v4140 = vpack.c.b16 %v4000, %v3996
        %v4141 = vpack.c.b16 %v4005, %v4001
        %v4142 = vpack.c.b16 %v4006, %v4002
        %v4143 = vpack.c.b16 %v4007, %v4003
        %v4144 = vpack.c.b16 %v4008, %v4004
        %v4145 = vpack.c.b16 %v4013, %v4009
        %v4146 = vpack.c.b16 %v4014, %v4010
        %v4147 = vpack.c.b16 %v4015, %v4011
        %v4148 = vpack.c.b16 %v4016, %v4012
        %v4149 = vpack.c.b16 %v4021, %v4017
        %v4150 = vpack.c.b16 %v4022, %v4018
        %v4151 = vpack.c.b16 %v4023, %v4019
        %v4152 = vpack.c.b16 %v4024, %v4020
        %4281 = vmatprep.subr.bf16.mxu0 %v4026
        %4282 = vmatpush1.bf16.msra.mxu0 %v4025
        %4283 = vmatprep.subr.bf16.mxu0 %v4030
        %4284 = vmatpush1.bf16.msra.mxu0 %v4029
        %4285 = vmatprep.subr.bf16.mxu0 %v4034
        %4286 = vmatpush1.bf16.msra.mxu0 %v4033
        %4287 = vmatprep.subr.bf16.mxu0 %v4038
        %4288 = vmatpush1.bf16.msra.mxu0 %v4037
        %4289 = vmatprep.subr.bf16.mxu0 %v4042
        %4290 = vmatpush1.bf16.msra.mxu0 %v4041
        %4291 = vmatprep.subr.bf16.mxu0 %v4046
        %4292 = vmatpush1.bf16.msra.mxu0 %v4045
        %4293 = vmatprep.subr.bf16.mxu0 %v4050
        %4294 = vmatpush1.bf16.msra.mxu0 %v4049
        %4295 = vmatprep.subr.bf16.mxu0 %v4054
        %4296 = vmatpush1.bf16.msra.mxu0 %v4053
        %4297 = vmatprep.subr.bf16.mxu0 %v4058
        %4298 = vmatpush1.bf16.msra.mxu0 %v4057
        %4299 = vmatprep.subr.bf16.mxu0 %v4062
        %4300 = vmatpush1.bf16.msra.mxu0 %v4061
        %4301 = vmatprep.subr.bf16.mxu0 %v4066
        %4302 = vmatpush1.bf16.msra.mxu0 %v4065
        %4303 = vmatprep.subr.bf16.mxu0 %v4070
        %4304 = vmatpush1.bf16.msra.mxu0 %v4069
        %4305 = vmatprep.subr.bf16.mxu0 %v4074
        %4306 = vmatpush1.bf16.msra.mxu0 %v4073
        %4307 = vmatprep.subr.bf16.mxu0 %v4078
        %4308 = vmatpush1.bf16.msra.mxu0 %v4077
        %4309 = vmatprep.subr.bf16.mxu0 %v4082
        %4310 = vmatpush1.bf16.msra.mxu0 %v4081
        %4311 = vmatprep.subr.bf16.mxu0 %v4086
        %4312 = vmatpush1.bf16.msra.mxu0 %v4085
        %4313 = vmatprep.mubr.bf16.mxu0 %v3313
        %4314 = vmatmul.mubr.bf16.gmra.mrb[0].mxu0 %v3312
        %v4315 = vpop.f32.mrb[0].mxu0
        %v4316 = vadd.f32 0.0, %v4315
        %v4317 = vpop.f32.mrb[0].mxu0
        %v4318 = vadd.f32 0.0, %v4317
        %v4319 = vpop.f32.mrb[0].mxu0
        %v4320 = vadd.f32 0.0, %v4319
        %v4321 = vpop.f32.mrb[0].mxu0
        %v4322 = vadd.f32 0.0, %v4321
        %4323 = vdwg.mxu0
        %4324 = vmatprep.subr.bf16.mxu0 %v4090
        %4325 = vmatpush1.bf16.msra.mxu0 %v4089
        %4326 = vmatprep.subr.bf16.mxu0 %v4094
        %4327 = vmatpush1.bf16.msra.mxu0 %v4093
        %4328 = vmatprep.subr.bf16.mxu0 %v4098
        %4329 = vmatpush1.bf16.msra.mxu0 %v4097
        %4330 = vmatprep.subr.bf16.mxu0 %v4102
        %4331 = vmatpush1.bf16.msra.mxu0 %v4101
        %4332 = vmatprep.subr.bf16.mxu0 %v4106
        %4333 = vmatpush1.bf16.msra.mxu0 %v4105
        %4334 = vmatprep.subr.bf16.mxu0 %v4110
        %4335 = vmatpush1.bf16.msra.mxu0 %v4109
        %4336 = vmatprep.subr.bf16.mxu0 %v4114
        %4337 = vmatpush1.bf16.msra.mxu0 %v4113
        %4338 = vmatprep.subr.bf16.mxu0 %v4118
        %4339 = vmatpush1.bf16.msra.mxu0 %v4117
        %4340 = vmatprep.subr.bf16.mxu0 %v4122
        %4341 = vmatpush1.bf16.msra.mxu0 %v4121
        %4342 = vmatprep.subr.bf16.mxu0 %v4126
        %4343 = vmatpush1.bf16.msra.mxu0 %v4125
        %4344 = vmatprep.subr.bf16.mxu0 %v4130
        %4345 = vmatpush1.bf16.msra.mxu0 %v4129
        %4346 = vmatprep.subr.bf16.mxu0 %v4134
        %4347 = vmatpush1.bf16.msra.mxu0 %v4133
        %4348 = vmatprep.subr.bf16.mxu0 %v4138
        %4349 = vmatpush1.bf16.msra.mxu0 %v4137
        %4350 = vmatprep.subr.bf16.mxu0 %v4142
        %4351 = vmatpush1.bf16.msra.mxu0 %v4141
        %4352 = vmatprep.subr.bf16.mxu0 %v4146
        %4353 = vmatpush1.bf16.msra.mxu0 %v4145
        %4354 = vmatprep.subr.bf16.mxu0 %v4150
        %4355 = vmatpush1.bf16.msra.mxu0 %v4149
        %4356 = vmatprep.mubr.bf16.mxu0 %v3315
        %4357 = vmatmul.mubr.bf16.gmra.mrb[0].mxu0 %v3314
        %v4358 = vpop.f32.mrb[0].mxu0
        %v4359 = vadd.f32 %v4316, %v4358
        %v4360 = vpop.f32.mrb[0].mxu0
        %v4361 = vadd.f32 %v4318, %v4360
        %v4362 = vpop.f32.mrb[0].mxu0
        %v4363 = vadd.f32 %v4320, %v4362
        %v4364 = vpop.f32.mrb[0].mxu0
        %v4365 = vadd.f32 %v4322, %v4364
        %4366 = vdwg.mxu0
        %4367 = vmatprep.subr.bf16.mxu0 %v4028
        %4368 = vmatpush1.bf16.msra.mxu0 %v4027
        %4369 = vmatprep.subr.bf16.mxu0 %v4032
        %4370 = vmatpush1.bf16.msra.mxu0 %v4031
        %4371 = vmatprep.subr.bf16.mxu0 %v4036
        %4372 = vmatpush1.bf16.msra.mxu0 %v4035
        %4373 = vmatprep.subr.bf16.mxu0 %v4040
        %4374 = vmatpush1.bf16.msra.mxu0 %v4039
        %4375 = vmatprep.subr.bf16.mxu0 %v4044
        %4376 = vmatpush1.bf16.msra.mxu0 %v4043
        %4377 = vmatprep.subr.bf16.mxu0 %v4048
        %4378 = vmatpush1.bf16.msra.mxu0 %v4047
        %4379 = vmatprep.subr.bf16.mxu0 %v4052
        %4380 = vmatpush1.bf16.msra.mxu0 %v4051
        %4381 = vmatprep.subr.bf16.mxu0 %v4056
        %4382 = vmatpush1.bf16.msra.mxu0 %v4055
        %4383 = vmatprep.subr.bf16.mxu0 %v4060
        %4384 = vmatpush1.bf16.msra.mxu0 %v4059
        %4385 = vmatprep.subr.bf16.mxu0 %v4064
        %4386 = vmatpush1.bf16.msra.mxu0 %v4063
        %4387 = vmatprep.subr.bf16.mxu0 %v4068
        %4388 = vmatpush1.bf16.msra.mxu0 %v4067
        %4389 = vmatprep.subr.bf16.mxu0 %v4072
        %4390 = vmatpush1.bf16.msra.mxu0 %v4071
        %4391 = vmatprep.subr.bf16.mxu0 %v4076
        %4392 = vmatpush1.bf16.msra.mxu0 %v4075
        %4393 = vmatprep.subr.bf16.mxu0 %v4080
        %4394 = vmatpush1.bf16.msra.mxu0 %v4079
        %4395 = vmatprep.subr.bf16.mxu0 %v4084
        %4396 = vmatpush1.bf16.msra.mxu0 %v4083
        %4397 = vmatprep.subr.bf16.mxu0 %v4088
        %4398 = vmatpush1.bf16.msra.mxu0 %v4087
        %4399 = vmatprep.mubr.bf16.mxu0 %v3313
        %4400 = vmatmul.mubr.bf16.gmra.mrb[0].mxu0 %v3312
        %v4401 = vpop.f32.mrb[0].mxu0
        %v4402 = vadd.f32 0.0, %v4401
        %v4403 = vpop.f32.mrb[0].mxu0
        %v4404 = vadd.f32 0.0, %v4403
        %v4405 = vpop.f32.mrb[0].mxu0
        %v4406 = vadd.f32 0.0, %v4405
        %v4407 = vpop.f32.mrb[0].mxu0
        %v4408 = vadd.f32 0.0, %v4407
        %4409 = vdwg.mxu0
        %4410 = vmatprep.subr.bf16.mxu0 %v4092
        %4411 = vmatpush1.bf16.msra.mxu0 %v4091
        %4412 = vmatprep.subr.bf16.mxu0 %v4096
        %4413 = vmatpush1.bf16.msra.mxu0 %v4095
        %4414 = vmatprep.subr.bf16.mxu0 %v4100
        %4415 = vmatpush1.bf16.msra.mxu0 %v4099
        %4416 = vmatprep.subr.bf16.mxu0 %v4104
        %4417 = vmatpush1.bf16.msra.mxu0 %v4103
        %4418 = vmatprep.subr.bf16.mxu0 %v4108
        %4419 = vmatpush1.bf16.msra.mxu0 %v4107
        %4420 = vmatprep.subr.bf16.mxu0 %v4112
        %4421 = vmatpush1.bf16.msra.mxu0 %v4111
        %4422 = vmatprep.subr.bf16.mxu0 %v4116
        %4423 = vmatpush1.bf16.msra.mxu0 %v4115
        %4424 = vmatprep.subr.bf16.mxu0 %v4120
        %4425 = vmatpush1.bf16.msra.mxu0 %v4119
        %4426 = vmatprep.subr.bf16.mxu0 %v4124
        %4427 = vmatpush1.bf16.msra.mxu0 %v4123
        %4428 = vmatprep.subr.bf16.mxu0 %v4128
        %4429 = vmatpush1.bf16.msra.mxu0 %v4127
        %4430 = vmatprep.subr.bf16.mxu0 %v4132
        %4431 = vmatpush1.bf16.msra.mxu0 %v4131
        %4432 = vmatprep.subr.bf16.mxu0 %v4136
        %4433 = vmatpush1.bf16.msra.mxu0 %v4135
        %4434 = vmatprep.subr.bf16.mxu0 %v4140
        %4435 = vmatpush1.bf16.msra.mxu0 %v4139
        %4436 = vmatprep.subr.bf16.mxu0 %v4144
        %4437 = vmatpush1.bf16.msra.mxu0 %v4143
        %4438 = vmatprep.subr.bf16.mxu0 %v4148
        %4439 = vmatpush1.bf16.msra.mxu0 %v4147
        %4440 = vmatprep.subr.bf16.mxu0 %v4152
        %4441 = vmatpush1.bf16.msra.mxu0 %v4151
        %4442 = vmatprep.mubr.bf16.mxu0 %v3315
        %4443 = vmatmul.mubr.bf16.gmra.mrb[0].mxu0 %v3314
        %v4444 = vpop.f32.mrb[0].mxu0
        %v4445 = vadd.f32 %v4402, %v4444
        %v4446 = vpop.f32.mrb[0].mxu0
        %v4447 = vadd.f32 %v4404, %v4446
        %v4448 = vpop.f32.mrb[0].mxu0
        %v4449 = vadd.f32 %v4406, %v4448
        %v4450 = vpop.f32.mrb[0].mxu0
        %v4451 = vadd.f32 %v4408, %v4450
        %4452 = vdwg.mxu0
        %v4581 = vunpack.c.l.b16 %v3384
        %v4582 = vunpack.c.h.b16 %v3384
        %v4583 = vunpack.c.l.b16 %v3385
        %v4584 = vunpack.c.h.b16 %v3385
        %v4585 = vunpack.c.l.b16 %v3386
        %v4586 = vunpack.c.h.b16 %v3386
        %v4587 = vunpack.c.l.b16 %v3387
        %v4588 = vunpack.c.h.b16 %v3387
        %v4589 = vunpack.c.l.b16 %v3388
        %v4590 = vunpack.c.h.b16 %v3388
        %v4591 = vunpack.c.l.b16 %v3389
        %v4592 = vunpack.c.h.b16 %v3389
        %v4593 = vunpack.c.l.b16 %v3390
        %v4594 = vunpack.c.h.b16 %v3390
        %v4595 = vunpack.c.l.b16 %v3391
        %v4596 = vunpack.c.h.b16 %v3391
        %v4597 = vunpack.c.l.b16 %v3392
        %v4598 = vunpack.c.h.b16 %v3392
        %v4599 = vunpack.c.l.b16 %v3393
        %v4600 = vunpack.c.h.b16 %v3393
        %v4601 = vunpack.c.l.b16 %v3394
        %v4602 = vunpack.c.h.b16 %v3394
        %v4603 = vunpack.c.l.b16 %v3395
        %v4604 = vunpack.c.h.b16 %v3395
        %v4605 = vunpack.c.l.b16 %v3396
        %v4606 = vunpack.c.h.b16 %v3396
        %v4607 = vunpack.c.l.b16 %v3397
        %v4608 = vunpack.c.h.b16 %v3397
        %v4609 = vunpack.c.l.b16 %v3398
        %v4610 = vunpack.c.h.b16 %v3398
        %v4611 = vunpack.c.l.b16 %v3399
        %v4612 = vunpack.c.h.b16 %v3399
        %v4613 = vunpack.c.l.b16 %v3400
        %v4614 = vunpack.c.h.b16 %v3400
        %v4615 = vunpack.c.l.b16 %v3401
        %v4616 = vunpack.c.h.b16 %v3401
        %v4617 = vunpack.c.l.b16 %v3402
        %v4618 = vunpack.c.h.b16 %v3402
        %v4619 = vunpack.c.l.b16 %v3403
        %v4620 = vunpack.c.h.b16 %v3403
        %v4621 = vunpack.c.l.b16 %v3404
        %v4622 = vunpack.c.h.b16 %v3404
        %v4623 = vunpack.c.l.b16 %v3405
        %v4624 = vunpack.c.h.b16 %v3405
        %v4625 = vunpack.c.l.b16 %v3406
        %v4626 = vunpack.c.h.b16 %v3406
        %v4627 = vunpack.c.l.b16 %v3407
        %v4628 = vunpack.c.h.b16 %v3407
        %v4629 = vunpack.c.l.b16 %v3408
        %v4630 = vunpack.c.h.b16 %v3408
        %v4631 = vunpack.c.l.b16 %v3409
        %v4632 = vunpack.c.h.b16 %v3409
        %v4633 = vunpack.c.l.b16 %v3410
        %v4634 = vunpack.c.h.b16 %v3410
        %v4635 = vunpack.c.l.b16 %v3411
        %v4636 = vunpack.c.h.b16 %v3411
        %v4637 = vunpack.c.l.b16 %v3412
        %v4638 = vunpack.c.h.b16 %v3412
        %v4639 = vunpack.c.l.b16 %v3413
        %v4640 = vunpack.c.h.b16 %v3413
        %v4641 = vunpack.c.l.b16 %v3414
        %v4642 = vunpack.c.h.b16 %v3414
        %v4643 = vunpack.c.l.b16 %v3415
        %v4644 = vunpack.c.h.b16 %v3415
        %v4645 = vunpack.c.l.b16 %v3416
        %v4646 = vunpack.c.h.b16 %v3416
        %v4647 = vunpack.c.l.b16 %v3417
        %v4648 = vunpack.c.h.b16 %v3417
        %v4649 = vunpack.c.l.b16 %v3418
        %v4650 = vunpack.c.h.b16 %v3418
        %v4651 = vunpack.c.l.b16 %v3419
        %v4652 = vunpack.c.h.b16 %v3419
        %v4653 = vunpack.c.l.b16 %v3420
        %v4654 = vunpack.c.h.b16 %v3420
        %v4655 = vunpack.c.l.b16 %v3421
        %v4656 = vunpack.c.h.b16 %v3421
        %v4657 = vunpack.c.l.b16 %v3422
        %v4658 = vunpack.c.h.b16 %v3422
        %v4659 = vunpack.c.l.b16 %v3423
        %v4660 = vunpack.c.h.b16 %v3423
        %v4661 = vunpack.c.l.b16 %v3424
        %v4662 = vunpack.c.h.b16 %v3424
        %v4663 = vunpack.c.l.b16 %v3425
        %v4664 = vunpack.c.h.b16 %v3425
        %v4665 = vunpack.c.l.b16 %v3426
        %v4666 = vunpack.c.h.b16 %v3426
        %v4667 = vunpack.c.l.b16 %v3427
        %v4668 = vunpack.c.h.b16 %v3427
        %v4669 = vunpack.c.l.b16 %v3428
        %v4670 = vunpack.c.h.b16 %v3428
        %v4671 = vunpack.c.l.b16 %v3429
        %v4672 = vunpack.c.h.b16 %v3429
        %v4673 = vunpack.c.l.b16 %v3430
        %v4674 = vunpack.c.h.b16 %v3430
        %v4675 = vunpack.c.l.b16 %v3431
        %v4676 = vunpack.c.h.b16 %v3431
        %v4677 = vunpack.c.l.b16 %v3432
        %v4678 = vunpack.c.h.b16 %v3432
        %v4679 = vunpack.c.l.b16 %v3433
        %v4680 = vunpack.c.h.b16 %v3433
        %v4681 = vunpack.c.l.b16 %v3434
        %v4682 = vunpack.c.h.b16 %v3434
        %v4683 = vunpack.c.l.b16 %v3435
        %v4684 = vunpack.c.h.b16 %v3435
        %v4685 = vunpack.c.l.b16 %v3436
        %v4686 = vunpack.c.h.b16 %v3436
        %v4687 = vunpack.c.l.b16 %v3437
        %v4688 = vunpack.c.h.b16 %v3437
        %v4689 = vunpack.c.l.b16 %v3438
        %v4690 = vunpack.c.h.b16 %v3438
        %v4691 = vunpack.c.l.b16 %v3439
        %v4692 = vunpack.c.h.b16 %v3439
        %v4693 = vunpack.c.l.b16 %v3440
        %v4694 = vunpack.c.h.b16 %v3440
        %v4695 = vunpack.c.l.b16 %v3441
        %v4696 = vunpack.c.h.b16 %v3441
        %v4697 = vunpack.c.l.b16 %v3442
        %v4698 = vunpack.c.h.b16 %v3442
        %v4699 = vunpack.c.l.b16 %v3443
        %v4700 = vunpack.c.h.b16 %v3443
        %v4701 = vunpack.c.l.b16 %v3444
        %v4702 = vunpack.c.h.b16 %v3444
        %v4703 = vunpack.c.l.b16 %v3445
        %v4704 = vunpack.c.h.b16 %v3445
        %v4705 = vunpack.c.l.b16 %v3446
        %v4706 = vunpack.c.h.b16 %v3446
        %v4707 = vunpack.c.l.b16 %v3447
        %v4708 = vunpack.c.h.b16 %v3447
        %v4709 = vunpack.c.l.b16 %v3448
        %v4710 = vunpack.c.h.b16 %v3448
        %v4711 = vunpack.c.l.b16 %v3449
        %v4712 = vunpack.c.h.b16 %v3449
        %v4713 = vunpack.c.l.b16 %v3450
        %v4714 = vunpack.c.h.b16 %v3450
        %v4715 = vunpack.c.l.b16 %v3451
        %v4716 = vunpack.c.h.b16 %v3451
        %v4717 = vunpack.c.l.b16 %v3452
        %v4718 = vunpack.c.h.b16 %v3452
        %v4719 = vunpack.c.l.b16 %v3453
        %v4720 = vunpack.c.h.b16 %v3453
        %v4721 = vunpack.c.l.b16 %v3454
        %v4722 = vunpack.c.h.b16 %v3454
        %v4723 = vunpack.c.l.b16 %v3455
        %v4724 = vunpack.c.h.b16 %v3455
        %v4725 = vunpack.c.l.b16 %v3456
        %v4726 = vunpack.c.h.b16 %v3456
        %v4727 = vunpack.c.l.b16 %v3457
        %v4728 = vunpack.c.h.b16 %v3457
        %v4729 = vunpack.c.l.b16 %v3458
        %v4730 = vunpack.c.h.b16 %v3458
        %v4731 = vunpack.c.l.b16 %v3459
        %v4732 = vunpack.c.h.b16 %v3459
        %v4733 = vunpack.c.l.b16 %v3460
        %v4734 = vunpack.c.h.b16 %v3460
        %v4735 = vunpack.c.l.b16 %v3461
        %v4736 = vunpack.c.h.b16 %v3461
        %v4737 = vunpack.c.l.b16 %v3462
        %v4738 = vunpack.c.h.b16 %v3462
        %v4739 = vunpack.c.l.b16 %v3463
        %v4740 = vunpack.c.h.b16 %v3463
        %v4741 = vunpack.c.l.b16 %v3464
        %v4742 = vunpack.c.h.b16 %v3464
        %v4743 = vunpack.c.l.b16 %v3465
        %v4744 = vunpack.c.h.b16 %v3465
        %v4745 = vunpack.c.l.b16 %v3466
        %v4746 = vunpack.c.h.b16 %v3466
        %v4747 = vunpack.c.l.b16 %v3467
        %v4748 = vunpack.c.h.b16 %v3467
        %v4749 = vunpack.c.l.b16 %v3468
        %v4750 = vunpack.c.h.b16 %v3468
        %v4751 = vunpack.c.l.b16 %v3469
        %v4752 = vunpack.c.h.b16 %v3469
        %v4753 = vunpack.c.l.b16 %v3470
        %v4754 = vunpack.c.h.b16 %v3470
        %v4755 = vunpack.c.l.b16 %v3471
        %v4756 = vunpack.c.h.b16 %v3471
        %v4757 = vunpack.c.l.b16 %v3472
        %v4758 = vunpack.c.h.b16 %v3472
        %v4759 = vunpack.c.l.b16 %v3473
        %v4760 = vunpack.c.h.b16 %v3473
        %v4761 = vunpack.c.l.b16 %v3474
        %v4762 = vunpack.c.h.b16 %v3474
        %v4763 = vunpack.c.l.b16 %v3475
        %v4764 = vunpack.c.h.b16 %v3475
        %v4765 = vunpack.c.l.b16 %v3476
        %v4766 = vunpack.c.h.b16 %v3476
        %v4767 = vunpack.c.l.b16 %v3477
        %v4768 = vunpack.c.h.b16 %v3477
        %v4769 = vunpack.c.l.b16 %v3478
        %v4770 = vunpack.c.h.b16 %v3478
        %v4771 = vunpack.c.l.b16 %v3479
        %v4772 = vunpack.c.h.b16 %v3479
        %v4773 = vunpack.c.l.b16 %v3480
        %v4774 = vunpack.c.h.b16 %v3480
        %v4775 = vunpack.c.l.b16 %v3481
        %v4776 = vunpack.c.h.b16 %v3481
        %v4777 = vunpack.c.l.b16 %v3482
        %v4778 = vunpack.c.h.b16 %v3482
        %v4779 = vunpack.c.l.b16 %v3483
        %v4780 = vunpack.c.h.b16 %v3483
        %v4781 = vunpack.c.l.b16 %v3484
        %v4782 = vunpack.c.h.b16 %v3484
        %v4783 = vunpack.c.l.b16 %v3485
        %v4784 = vunpack.c.h.b16 %v3485
        %v4785 = vunpack.c.l.b16 %v3486
        %v4786 = vunpack.c.h.b16 %v3486
        %v4787 = vunpack.c.l.b16 %v3487
        %v4788 = vunpack.c.h.b16 %v3487
        %v4789 = vunpack.c.l.b16 %v3488
        %v4790 = vunpack.c.h.b16 %v3488
        %v4791 = vunpack.c.l.b16 %v3489
        %v4792 = vunpack.c.h.b16 %v3489
        %v4793 = vunpack.c.l.b16 %v3490
        %v4794 = vunpack.c.h.b16 %v3490
        %v4795 = vunpack.c.l.b16 %v3491
        %v4796 = vunpack.c.h.b16 %v3491
        %v4797 = vunpack.c.l.b16 %v3492
        %v4798 = vunpack.c.h.b16 %v3492
        %v4799 = vunpack.c.l.b16 %v3493
        %v4800 = vunpack.c.h.b16 %v3493
        %v4801 = vunpack.c.l.b16 %v3494
        %v4802 = vunpack.c.h.b16 %v3494
        %v4803 = vunpack.c.l.b16 %v3495
        %v4804 = vunpack.c.h.b16 %v3495
        %v4805 = vunpack.c.l.b16 %v3496
        %v4806 = vunpack.c.h.b16 %v3496
        %v4807 = vunpack.c.l.b16 %v3497
        %v4808 = vunpack.c.h.b16 %v3497
        %v4809 = vunpack.c.l.b16 %v3498
        %v4810 = vunpack.c.h.b16 %v3498
        %v4811 = vunpack.c.l.b16 %v3499
        %v4812 = vunpack.c.h.b16 %v3499
        %v4813 = vunpack.c.l.b16 %v3500
        %v4814 = vunpack.c.h.b16 %v3500
        %v4815 = vunpack.c.l.b16 %v3501
        %v4816 = vunpack.c.h.b16 %v3501
        %v4817 = vunpack.c.l.b16 %v3502
        %v4818 = vunpack.c.h.b16 %v3502
        %v4819 = vunpack.c.l.b16 %v3503
        %v4820 = vunpack.c.h.b16 %v3503
        %v4821 = vunpack.c.l.b16 %v3504
        %v4822 = vunpack.c.h.b16 %v3504
        %v4823 = vunpack.c.l.b16 %v3505
        %v4824 = vunpack.c.h.b16 %v3505
        %v4825 = vunpack.c.l.b16 %v3506
        %v4826 = vunpack.c.h.b16 %v3506
        %v4827 = vunpack.c.l.b16 %v3507
        %v4828 = vunpack.c.h.b16 %v3507
        %v4829 = vunpack.c.l.b16 %v3508
        %v4830 = vunpack.c.h.b16 %v3508
        %v4831 = vunpack.c.l.b16 %v3509
        %v4832 = vunpack.c.h.b16 %v3509
        %v4833 = vunpack.c.l.b16 %v3510
        %v4834 = vunpack.c.h.b16 %v3510
        %v4835 = vunpack.c.l.b16 %v3511
        %v4836 = vunpack.c.h.b16 %v3511
        %v4837 = vpack.c.b16 %v4585, %v4581
        %v4838 = vpack.c.b16 %v4586, %v4582
        %v4839 = vpack.c.b16 %v4587, %v4583
        %v4840 = vpack.c.b16 %v4588, %v4584
        %v4841 = vpack.c.b16 %v4593, %v4589
        %v4842 = vpack.c.b16 %v4594, %v4590
        %v4843 = vpack.c.b16 %v4595, %v4591
        %v4844 = vpack.c.b16 %v4596, %v4592
        %v4845 = vpack.c.b16 %v4601, %v4597
        %v4846 = vpack.c.b16 %v4602, %v4598
        %v4847 = vpack.c.b16 %v4603, %v4599
        %v4848 = vpack.c.b16 %v4604, %v4600
        %v4849 = vpack.c.b16 %v4609, %v4605
        %v4850 = vpack.c.b16 %v4610, %v4606
        %v4851 = vpack.c.b16 %v4611, %v4607
        %v4852 = vpack.c.b16 %v4612, %v4608
        %v4853 = vpack.c.b16 %v4617, %v4613
        %v4854 = vpack.c.b16 %v4618, %v4614
        %v4855 = vpack.c.b16 %v4619, %v4615
        %v4856 = vpack.c.b16 %v4620, %v4616
        %v4857 = vpack.c.b16 %v4625, %v4621
        %v4858 = vpack.c.b16 %v4626, %v4622
        %v4859 = vpack.c.b16 %v4627, %v4623
        %v4860 = vpack.c.b16 %v4628, %v4624
        %v4861 = vpack.c.b16 %v4633, %v4629
        %v4862 = vpack.c.b16 %v4634, %v4630
        %v4863 = vpack.c.b16 %v4635, %v4631
        %v4864 = vpack.c.b16 %v4636, %v4632
        %v4865 = vpack.c.b16 %v4641, %v4637
        %v4866 = vpack.c.b16 %v4642, %v4638
        %v4867 = vpack.c.b16 %v4643, %v4639
        %v4868 = vpack.c.b16 %v4644, %v4640
        %v4869 = vpack.c.b16 %v4649, %v4645
        %v4870 = vpack.c.b16 %v4650, %v4646
        %v4871 = vpack.c.b16 %v4651, %v4647
        %v4872 = vpack.c.b16 %v4652, %v4648
        %v4873 = vpack.c.b16 %v4657, %v4653
        %v4874 = vpack.c.b16 %v4658, %v4654
        %v4875 = vpack.c.b16 %v4659, %v4655
        %v4876 = vpack.c.b16 %v4660, %v4656
        %v4877 = vpack.c.b16 %v4665, %v4661
        %v4878 = vpack.c.b16 %v4666, %v4662
        %v4879 = vpack.c.b16 %v4667, %v4663
        %v4880 = vpack.c.b16 %v4668, %v4664
        %v4881 = vpack.c.b16 %v4673, %v4669
        %v4882 = vpack.c.b16 %v4674, %v4670
        %v4883 = vpack.c.b16 %v4675, %v4671
        %v4884 = vpack.c.b16 %v4676, %v4672
        %v4885 = vpack.c.b16 %v4681, %v4677
        %v4886 = vpack.c.b16 %v4682, %v4678
        %v4887 = vpack.c.b16 %v4683, %v4679
        %v4888 = vpack.c.b16 %v4684, %v4680
        %v4889 = vpack.c.b16 %v4689, %v4685
        %v4890 = vpack.c.b16 %v4690, %v4686
        %v4891 = vpack.c.b16 %v4691, %v4687
        %v4892 = vpack.c.b16 %v4692, %v4688
        %v4893 = vpack.c.b16 %v4697, %v4693
        %v4894 = vpack.c.b16 %v4698, %v4694
        %v4895 = vpack.c.b16 %v4699, %v4695
        %v4896 = vpack.c.b16 %v4700, %v4696
        %v4897 = vpack.c.b16 %v4705, %v4701
        %v4898 = vpack.c.b16 %v4706, %v4702
        %v4899 = vpack.c.b16 %v4707, %v4703
        %v4900 = vpack.c.b16 %v4708, %v4704
        %v4901 = vpack.c.b16 %v4713, %v4709
        %v4902 = vpack.c.b16 %v4714, %v4710
        %v4903 = vpack.c.b16 %v4715, %v4711
        %v4904 = vpack.c.b16 %v4716, %v4712
        %v4905 = vpack.c.b16 %v4721, %v4717
        %v4906 = vpack.c.b16 %v4722, %v4718
        %v4907 = vpack.c.b16 %v4723, %v4719
        %v4908 = vpack.c.b16 %v4724, %v4720
        %v4909 = vpack.c.b16 %v4729, %v4725
        %v4910 = vpack.c.b16 %v4730, %v4726
        %v4911 = vpack.c.b16 %v4731, %v4727
        %v4912 = vpack.c.b16 %v4732, %v4728
        %v4913 = vpack.c.b16 %v4737, %v4733
        %v4914 = vpack.c.b16 %v4738, %v4734
        %v4915 = vpack.c.b16 %v4739, %v4735
        %v4916 = vpack.c.b16 %v4740, %v4736
        %v4917 = vpack.c.b16 %v4745, %v4741
        %v4918 = vpack.c.b16 %v4746, %v4742
        %v4919 = vpack.c.b16 %v4747, %v4743
        %v4920 = vpack.c.b16 %v4748, %v4744
        %v4921 = vpack.c.b16 %v4753, %v4749
        %v4922 = vpack.c.b16 %v4754, %v4750
        %v4923 = vpack.c.b16 %v4755, %v4751
        %v4924 = vpack.c.b16 %v4756, %v4752
        %v4925 = vpack.c.b16 %v4761, %v4757
        %v4926 = vpack.c.b16 %v4762, %v4758
        %v4927 = vpack.c.b16 %v4763, %v4759
        %v4928 = vpack.c.b16 %v4764, %v4760
        %v4929 = vpack.c.b16 %v4769, %v4765
        %v4930 = vpack.c.b16 %v4770, %v4766
        %v4931 = vpack.c.b16 %v4771, %v4767
        %v4932 = vpack.c.b16 %v4772, %v4768
        %v4933 = vpack.c.b16 %v4777, %v4773
        %v4934 = vpack.c.b16 %v4778, %v4774
        %v4935 = vpack.c.b16 %v4779, %v4775
        %v4936 = vpack.c.b16 %v4780, %v4776
        %v4937 = vpack.c.b16 %v4785, %v4781
        %v4938 = vpack.c.b16 %v4786, %v4782
        %v4939 = vpack.c.b16 %v4787, %v4783
        %v4940 = vpack.c.b16 %v4788, %v4784
        %v4941 = vpack.c.b16 %v4793, %v4789
        %v4942 = vpack.c.b16 %v4794, %v4790
        %v4943 = vpack.c.b16 %v4795, %v4791
        %v4944 = vpack.c.b16 %v4796, %v4792
        %v4945 = vpack.c.b16 %v4801, %v4797
        %v4946 = vpack.c.b16 %v4802, %v4798
        %v4947 = vpack.c.b16 %v4803, %v4799
        %v4948 = vpack.c.b16 %v4804, %v4800
        %v4949 = vpack.c.b16 %v4809, %v4805
        %v4950 = vpack.c.b16 %v4810, %v4806
        %v4951 = vpack.c.b16 %v4811, %v4807
        %v4952 = vpack.c.b16 %v4812, %v4808
        %v4953 = vpack.c.b16 %v4817, %v4813
        %v4954 = vpack.c.b16 %v4818, %v4814
        %v4955 = vpack.c.b16 %v4819, %v4815
        %v4956 = vpack.c.b16 %v4820, %v4816
        %v4957 = vpack.c.b16 %v4825, %v4821
        %v4958 = vpack.c.b16 %v4826, %v4822
        %v4959 = vpack.c.b16 %v4827, %v4823
        %v4960 = vpack.c.b16 %v4828, %v4824
        %v4961 = vpack.c.b16 %v4833, %v4829
        %v4962 = vpack.c.b16 %v4834, %v4830
        %v4963 = vpack.c.b16 %v4835, %v4831
        %v4964 = vpack.c.b16 %v4836, %v4832
        %5093 = vmatprep.subr.bf16.mxu0 %v4838
        %5094 = vmatpush1.bf16.msra.mxu0 %v4837
        %5095 = vmatprep.subr.bf16.mxu0 %v4842
        %5096 = vmatpush1.bf16.msra.mxu0 %v4841
        %5097 = vmatprep.subr.bf16.mxu0 %v4846
        %5098 = vmatpush1.bf16.msra.mxu0 %v4845
        %5099 = vmatprep.subr.bf16.mxu0 %v4850
        %5100 = vmatpush1.bf16.msra.mxu0 %v4849
        %5101 = vmatprep.subr.bf16.mxu0 %v4854
        %5102 = vmatpush1.bf16.msra.mxu0 %v4853
        %5103 = vmatprep.subr.bf16.mxu0 %v4858
        %5104 = vmatpush1.bf16.msra.mxu0 %v4857
        %5105 = vmatprep.subr.bf16.mxu0 %v4862
        %5106 = vmatpush1.bf16.msra.mxu0 %v4861
        %5107 = vmatprep.subr.bf16.mxu0 %v4866
        %5108 = vmatpush1.bf16.msra.mxu0 %v4865
        %5109 = vmatprep.subr.bf16.mxu0 %v4870
        %5110 = vmatpush1.bf16.msra.mxu0 %v4869
        %5111 = vmatprep.subr.bf16.mxu0 %v4874
        %5112 = vmatpush1.bf16.msra.mxu0 %v4873
        %5113 = vmatprep.subr.bf16.mxu0 %v4878
        %5114 = vmatpush1.bf16.msra.mxu0 %v4877
        %5115 = vmatprep.subr.bf16.mxu0 %v4882
        %5116 = vmatpush1.bf16.msra.mxu0 %v4881
        %5117 = vmatprep.subr.bf16.mxu0 %v4886
        %5118 = vmatpush1.bf16.msra.mxu0 %v4885
        %5119 = vmatprep.subr.bf16.mxu0 %v4890
        %5120 = vmatpush1.bf16.msra.mxu0 %v4889
        %5121 = vmatprep.subr.bf16.mxu0 %v4894
        %5122 = vmatpush1.bf16.msra.mxu0 %v4893
        %5123 = vmatprep.subr.bf16.mxu0 %v4898
        %5124 = vmatpush1.bf16.msra.mxu0 %v4897
        %5125 = vmatprep.mubr.bf16.mxu0 %v3357
        %5126 = vmatmul.mubr.bf16.gmra.mrb[0].mxu0 %v3356
        %v5127 = vpop.f32.mrb[0].mxu0
        %v5128 = vadd.f32 %v4359, %v5127
        %v5129 = vpop.f32.mrb[0].mxu0
        %v5130 = vadd.f32 %v4361, %v5129
        %v5131 = vpop.f32.mrb[0].mxu0
        %v5132 = vadd.f32 %v4363, %v5131
        %v5133 = vpop.f32.mrb[0].mxu0
        %v5134 = vadd.f32 %v4365, %v5133
        %5135 = vdwg.mxu0
        %5136 = vmatprep.subr.bf16.mxu0 %v4902
        %5137 = vmatpush1.bf16.msra.mxu0 %v4901
        %5138 = vmatprep.subr.bf16.mxu0 %v4906
        %5139 = vmatpush1.bf16.msra.mxu0 %v4905
        %5140 = vmatprep.subr.bf16.mxu0 %v4910
        %5141 = vmatpush1.bf16.msra.mxu0 %v4909
        %5142 = vmatprep.subr.bf16.mxu0 %v4914
        %5143 = vmatpush1.bf16.msra.mxu0 %v4913
        %5144 = vmatprep.subr.bf16.mxu0 %v4918
        %5145 = vmatpush1.bf16.msra.mxu0 %v4917
        %5146 = vmatprep.subr.bf16.mxu0 %v4922
        %5147 = vmatpush1.bf16.msra.mxu0 %v4921
        %5148 = vmatprep.subr.bf16.mxu0 %v4926
        %5149 = vmatpush1.bf16.msra.mxu0 %v4925
        %5150 = vmatprep.subr.bf16.mxu0 %v4930
        %5151 = vmatpush1.bf16.msra.mxu0 %v4929
        %5152 = vmatprep.subr.bf16.mxu0 %v4934
        %5153 = vmatpush1.bf16.msra.mxu0 %v4933
        %5154 = vmatprep.subr.bf16.mxu0 %v4938
        %5155 = vmatpush1.bf16.msra.mxu0 %v4937
        %5156 = vmatprep.subr.bf16.mxu0 %v4942
        %5157 = vmatpush1.bf16.msra.mxu0 %v4941
        %5158 = vmatprep.subr.bf16.mxu0 %v4946
        %5159 = vmatpush1.bf16.msra.mxu0 %v4945
        %5160 = vmatprep.subr.bf16.mxu0 %v4950
        %5161 = vmatpush1.bf16.msra.mxu0 %v4949
        %5162 = vmatprep.subr.bf16.mxu0 %v4954
        %5163 = vmatpush1.bf16.msra.mxu0 %v4953
        %5164 = vmatprep.subr.bf16.mxu0 %v4958
        %5165 = vmatpush1.bf16.msra.mxu0 %v4957
        %5166 = vmatprep.subr.bf16.mxu0 %v4962
        %5167 = vmatpush1.bf16.msra.mxu0 %v4961
        %5168 = vmatprep.mubr.bf16.mxu0 %v3359
        %5169 = vmatmul.mubr.bf16.gmra.mrb[0].mxu0 %v3358
        %v5170 = vpop.f32.mrb[0].mxu0
        %v5171 = vadd.f32 %v5128, %v5170
        %v5172 = vpop.f32.mrb[0].mxu0
        %v5173 = vadd.f32 %v5130, %v5172
        %v5174 = vpop.f32.mrb[0].mxu0
        %v5175 = vadd.f32 %v5132, %v5174
        %v5176 = vpop.f32.mrb[0].mxu0
        %v5177 = vadd.f32 %v5134, %v5176
        %5178 = vdwg.mxu0
        %5179 = vmatprep.subr.bf16.mxu0 %v4840
        %5180 = vmatpush1.bf16.msra.mxu0 %v4839
        %5181 = vmatprep.subr.bf16.mxu0 %v4844
        %5182 = vmatpush1.bf16.msra.mxu0 %v4843
        %5183 = vmatprep.subr.bf16.mxu0 %v4848
        %5184 = vmatpush1.bf16.msra.mxu0 %v4847
        %5185 = vmatprep.subr.bf16.mxu0 %v4852
        %5186 = vmatpush1.bf16.msra.mxu0 %v4851
        %5187 = vmatprep.subr.bf16.mxu0 %v4856
        %5188 = vmatpush1.bf16.msra.mxu0 %v4855
        %5189 = vmatprep.subr.bf16.mxu0 %v4860
        %5190 = vmatpush1.bf16.msra.mxu0 %v4859
        %5191 = vmatprep.subr.bf16.mxu0 %v4864
        %5192 = vmatpush1.bf16.msra.mxu0 %v4863
        %5193 = vmatprep.subr.bf16.mxu0 %v4868
        %5194 = vmatpush1.bf16.msra.mxu0 %v4867
        %5195 = vmatprep.subr.bf16.mxu0 %v4872
        %5196 = vmatpush1.bf16.msra.mxu0 %v4871
        %5197 = vmatprep.subr.bf16.mxu0 %v4876
        %5198 = vmatpush1.bf16.msra.mxu0 %v4875
        %5199 = vmatprep.subr.bf16.mxu0 %v4880
        %5200 = vmatpush1.bf16.msra.mxu0 %v4879
        %5201 = vmatprep.subr.bf16.mxu0 %v4884
        %5202 = vmatpush1.bf16.msra.mxu0 %v4883
        %5203 = vmatprep.subr.bf16.mxu0 %v4888
        %5204 = vmatpush1.bf16.msra.mxu0 %v4887
        %5205 = vmatprep.subr.bf16.mxu0 %v4892
        %5206 = vmatpush1.bf16.msra.mxu0 %v4891
        %5207 = vmatprep.subr.bf16.mxu0 %v4896
        %5208 = vmatpush1.bf16.msra.mxu0 %v4895
        %5209 = vmatprep.subr.bf16.mxu0 %v4900
        %5210 = vmatpush1.bf16.msra.mxu0 %v4899
        %5211 = vmatprep.mubr.bf16.mxu0 %v3357
        %5212 = vmatmul.mubr.bf16.gmra.mrb[0].mxu0 %v3356
        %v5213 = vpop.f32.mrb[0].mxu0
        %v5214 = vadd.f32 %v4445, %v5213
        %v5215 = vpop.f32.mrb[0].mxu0
        %v5216 = vadd.f32 %v4447, %v5215
        %v5217 = vpop.f32.mrb[0].mxu0
        %v5218 = vadd.f32 %v4449, %v5217
        %v5219 = vpop.f32.mrb[0].mxu0
        %v5220 = vadd.f32 %v4451, %v5219
        %5221 = vdwg.mxu0
        %5222 = vmatprep.subr.bf16.mxu0 %v4904
        %5223 = vmatpush1.bf16.msra.mxu0 %v4903
        %5224 = vmatprep.subr.bf16.mxu0 %v4908
        %5225 = vmatpush1.bf16.msra.mxu0 %v4907
        %5226 = vmatprep.subr.bf16.mxu0 %v4912
        %5227 = vmatpush1.bf16.msra.mxu0 %v4911
        %5228 = vmatprep.subr.bf16.mxu0 %v4916
        %5229 = vmatpush1.bf16.msra.mxu0 %v4915
        %5230 = vmatprep.subr.bf16.mxu0 %v4920
        %5231 = vmatpush1.bf16.msra.mxu0 %v4919
        %5232 = vmatprep.subr.bf16.mxu0 %v4924
        %5233 = vmatpush1.bf16.msra.mxu0 %v4923
        %5234 = vmatprep.subr.bf16.mxu0 %v4928
        %5235 = vmatpush1.bf16.msra.mxu0 %v4927
        %5236 = vmatprep.subr.bf16.mxu0 %v4932
        %5237 = vmatpush1.bf16.msra.mxu0 %v4931
        %5238 = vmatprep.subr.bf16.mxu0 %v4936
        %5239 = vmatpush1.bf16.msra.mxu0 %v4935
        %5240 = vmatprep.subr.bf16.mxu0 %v4940
        %5241 = vmatpush1.bf16.msra.mxu0 %v4939
        %5242 = vmatprep.subr.bf16.mxu0 %v4944
        %5243 = vmatpush1.bf16.msra.mxu0 %v4943
        %5244 = vmatprep.subr.bf16.mxu0 %v4948
        %5245 = vmatpush1.bf16.msra.mxu0 %v4947
        %5246 = vmatprep.subr.bf16.mxu0 %v4952
        %5247 = vmatpush1.bf16.msra.mxu0 %v4951
        %5248 = vmatprep.subr.bf16.mxu0 %v4956
        %5249 = vmatpush1.bf16.msra.mxu0 %v4955
        %5250 = vmatprep.subr.bf16.mxu0 %v4960
        %5251 = vmatpush1.bf16.msra.mxu0 %v4959
        %5252 = vmatprep.subr.bf16.mxu0 %v4964
        %5253 = vmatpush1.bf16.msra.mxu0 %v4963
        %5254 = vmatprep.mubr.bf16.mxu0 %v3359
        %5255 = vmatmul.mubr.bf16.gmra.mrb[0].mxu0 %v3358
        %v5256 = vpop.f32.mrb[0].mxu0
        %v5257 = vadd.f32 %v5214, %v5256
        %v5258 = vpop.f32.mrb[0].mxu0
        %v5259 = vadd.f32 %v5216, %v5258
        %v5260 = vpop.f32.mrb[0].mxu0
        %v5261 = vadd.f32 %v5218, %v5260
        %v5262 = vpop.f32.mrb[0].mxu0
        %v5263 = vadd.f32 %v5220, %v5262
        %5264 = vdwg.mxu0
        %s5265 = scalar_lea.vmem [#allocation8], 2048
        %v5266 = vld [vmem:[%s5265] sm:$0xff]
        %v5267 = vld [vmem:[%s5265 + $0x8] sm:$0xff]
        %v5268 = vld [vmem:[%s5265 + $0x10] sm:$0xff]
        %v5269 = vld [vmem:[%s5265 + $0x18] sm:$0xff]
        %v5270 = vld [vmem:[%s5265 + $0x20] sm:$0xff]
        %v5271 = vld [vmem:[%s5265 + $0x28] sm:$0xff]
        %v5272 = vld [vmem:[%s5265 + $0x30] sm:$0xff]
        %v5273 = vld [vmem:[%s5265 + $0x38] sm:$0xff]
        %v5274 = vld [vmem:[%s5265 + $0x40] sm:$0xff]
        %v5275 = vld [vmem:[%s5265 + $0x48] sm:$0xff]
        %v5276 = vld [vmem:[%s5265 + $0x50] sm:$0xff]
        %v5277 = vld [vmem:[%s5265 + $0x58] sm:$0xff]
        %v5278 = vld [vmem:[%s5265 + $0x60] sm:$0xff]
        %v5279 = vld [vmem:[%s5265 + $0x68] sm:$0xff]
        %v5280 = vld [vmem:[%s5265 + $0x70] sm:$0xff]
        %v5281 = vld [vmem:[%s5265 + $0x78] sm:$0xff]
        %v5282 = vld [vmem:[%s5265 + $0x80] sm:$0xff]
        %v5283 = vld [vmem:[%s5265 + $0x88] sm:$0xff]
        %v5284 = vld [vmem:[%s5265 + $0x90] sm:$0xff]
        %v5285 = vld [vmem:[%s5265 + $0x98] sm:$0xff]
        %v5286 = vld [vmem:[%s5265 + $0xa0] sm:$0xff]
        %v5287 = vld [vmem:[%s5265 + $0xa8] sm:$0xff]
        %v5288 = vld [vmem:[%s5265 + $0xb0] sm:$0xff]
        %v5289 = vld [vmem:[%s5265 + $0xb8] sm:$0xff]
        %v5290 = vld [vmem:[%s5265 + $0xc0] sm:$0xff]
        %v5291 = vld [vmem:[%s5265 + $0xc8] sm:$0xff]
        %v5292 = vld [vmem:[%s5265 + $0xd0] sm:$0xff]
        %v5293 = vld [vmem:[%s5265 + $0xd8] sm:$0xff]
        %v5294 = vld [vmem:[%s5265 + $0xe0] sm:$0xff]
        %v5295 = vld [vmem:[%s5265 + $0xe8] sm:$0xff]
        %v5296 = vld [vmem:[%s5265 + $0xf0] sm:$0xff]
        %v5297 = vld [vmem:[%s5265 + $0xf8] sm:$0xff]
        %v5298 = vld [vmem:[%s5265 + $0x100] sm:$0xff]
        %v5299 = vld [vmem:[%s5265 + $0x108] sm:$0xff]
        %v5300 = vld [vmem:[%s5265 + $0x110] sm:$0xff]
        %v5301 = vld [vmem:[%s5265 + $0x118] sm:$0xff]
        %v5302 = vld [vmem:[%s5265 + $0x120] sm:$0xff]
        %v5303 = vld [vmem:[%s5265 + $0x128] sm:$0xff]
        %v5304 = vld [vmem:[%s5265 + $0x130] sm:$0xff]
        %v5305 = vld [vmem:[%s5265 + $0x138] sm:$0xff]
        %v5306 = vld [vmem:[%s5265 + $0x140] sm:$0xff]
        %v5307 = vld [vmem:[%s5265 + $0x148] sm:$0xff]
        %v5308 = vld [vmem:[%s5265 + $0x150] sm:$0xff]
        %v5309 = vld [vmem:[%s5265 + $0x158] sm:$0xff]
        %v5310 = vld [vmem:[%s5265 + $0x160] sm:$0xff]
        %v5311 = vld [vmem:[%s5265 + $0x168] sm:$0xff]
        %v5312 = vld [vmem:[%s5265 + $0x170] sm:$0xff]
        %v5313 = vld [vmem:[%s5265 + $0x178] sm:$0xff]
        %v5314 = vld [vmem:[%s5265 + $0x180] sm:$0xff]
        %v5315 = vld [vmem:[%s5265 + $0x188] sm:$0xff]
        %v5316 = vld [vmem:[%s5265 + $0x190] sm:$0xff]
        %v5317 = vld [vmem:[%s5265 + $0x198] sm:$0xff]
        %v5318 = vld [vmem:[%s5265 + $0x1a0] sm:$0xff]
        %v5319 = vld [vmem:[%s5265 + $0x1a8] sm:$0xff]
        %v5320 = vld [vmem:[%s5265 + $0x1b0] sm:$0xff]
        %v5321 = vld [vmem:[%s5265 + $0x1b8] sm:$0xff]
        %v5322 = vld [vmem:[%s5265 + $0x1c0] sm:$0xff]
        %v5323 = vld [vmem:[%s5265 + $0x1c8] sm:$0xff]
        %v5324 = vld [vmem:[%s5265 + $0x1d0] sm:$0xff]
        %v5325 = vld [vmem:[%s5265 + $0x1d8] sm:$0xff]
        %v5326 = vld [vmem:[%s5265 + $0x1e0] sm:$0xff]
        %v5327 = vld [vmem:[%s5265 + $0x1e8] sm:$0xff]
        %v5328 = vld [vmem:[%s5265 + $0x1f0] sm:$0xff]
        %v5329 = vld [vmem:[%s5265 + $0x1f8] sm:$0xff]
        %v5330 = vld [vmem:[%s5265 + $0x200] sm:$0xff]
        %v5331 = vld [vmem:[%s5265 + $0x208] sm:$0xff]
        %v5332 = vld [vmem:[%s5265 + $0x210] sm:$0xff]
        %v5333 = vld [vmem:[%s5265 + $0x218] sm:$0xff]
        %v5334 = vld [vmem:[%s5265 + $0x220] sm:$0xff]
        %v5335 = vld [vmem:[%s5265 + $0x228] sm:$0xff]
        %v5336 = vld [vmem:[%s5265 + $0x230] sm:$0xff]
        %v5337 = vld [vmem:[%s5265 + $0x238] sm:$0xff]
        %v5338 = vld [vmem:[%s5265 + $0x240] sm:$0xff]
        %v5339 = vld [vmem:[%s5265 + $0x248] sm:$0xff]
        %v5340 = vld [vmem:[%s5265 + $0x250] sm:$0xff]
        %v5341 = vld [vmem:[%s5265 + $0x258] sm:$0xff]
        %v5342 = vld [vmem:[%s5265 + $0x260] sm:$0xff]
        %v5343 = vld [vmem:[%s5265 + $0x268] sm:$0xff]
        %v5344 = vld [vmem:[%s5265 + $0x270] sm:$0xff]
        %v5345 = vld [vmem:[%s5265 + $0x278] sm:$0xff]
        %v5346 = vld [vmem:[%s5265 + $0x280] sm:$0xff]
        %v5347 = vld [vmem:[%s5265 + $0x288] sm:$0xff]
        %v5348 = vld [vmem:[%s5265 + $0x290] sm:$0xff]
        %v5349 = vld [vmem:[%s5265 + $0x298] sm:$0xff]
        %v5350 = vld [vmem:[%s5265 + $0x2a0] sm:$0xff]
        %v5351 = vld [vmem:[%s5265 + $0x2a8] sm:$0xff]
        %v5352 = vld [vmem:[%s5265 + $0x2b0] sm:$0xff]
        %v5353 = vld [vmem:[%s5265 + $0x2b8] sm:$0xff]
        %v5354 = vld [vmem:[%s5265 + $0x2c0] sm:$0xff]
        %v5355 = vld [vmem:[%s5265 + $0x2c8] sm:$0xff]
        %v5356 = vld [vmem:[%s5265 + $0x2d0] sm:$0xff]
        %v5357 = vld [vmem:[%s5265 + $0x2d8] sm:$0xff]
        %v5358 = vld [vmem:[%s5265 + $0x2e0] sm:$0xff]
        %v5359 = vld [vmem:[%s5265 + $0x2e8] sm:$0xff]
        %v5360 = vld [vmem:[%s5265 + $0x2f0] sm:$0xff]
        %v5361 = vld [vmem:[%s5265 + $0x2f8] sm:$0xff]
        %v5362 = vld [vmem:[%s5265 + $0x300] sm:$0xff]
        %v5363 = vld [vmem:[%s5265 + $0x308] sm:$0xff]
        %v5364 = vld [vmem:[%s5265 + $0x310] sm:$0xff]
        %v5365 = vld [vmem:[%s5265 + $0x318] sm:$0xff]
        %v5366 = vld [vmem:[%s5265 + $0x320] sm:$0xff]
        %v5367 = vld [vmem:[%s5265 + $0x328] sm:$0xff]
        %v5368 = vld [vmem:[%s5265 + $0x330] sm:$0xff]
        %v5369 = vld [vmem:[%s5265 + $0x338] sm:$0xff]
        %v5370 = vld [vmem:[%s5265 + $0x340] sm:$0xff]
        %v5371 = vld [vmem:[%s5265 + $0x348] sm:$0xff]
        %v5372 = vld [vmem:[%s5265 + $0x350] sm:$0xff]
        %v5373 = vld [vmem:[%s5265 + $0x358] sm:$0xff]
        %v5374 = vld [vmem:[%s5265 + $0x360] sm:$0xff]
        %v5375 = vld [vmem:[%s5265 + $0x368] sm:$0xff]
        %v5376 = vld [vmem:[%s5265 + $0x370] sm:$0xff]
        %v5377 = vld [vmem:[%s5265 + $0x378] sm:$0xff]
        %v5378 = vld [vmem:[%s5265 + $0x380] sm:$0xff]
        %v5379 = vld [vmem:[%s5265 + $0x388] sm:$0xff]
        %v5380 = vld [vmem:[%s5265 + $0x390] sm:$0xff]
        %v5381 = vld [vmem:[%s5265 + $0x398] sm:$0xff]
        %v5382 = vld [vmem:[%s5265 + $0x3a0] sm:$0xff]
        %v5383 = vld [vmem:[%s5265 + $0x3a8] sm:$0xff]
        %v5384 = vld [vmem:[%s5265 + $0x3b0] sm:$0xff]
        %v5385 = vld [vmem:[%s5265 + $0x3b8] sm:$0xff]
        %v5386 = vld [vmem:[%s5265 + $0x3c0] sm:$0xff]
        %v5387 = vld [vmem:[%s5265 + $0x3c8] sm:$0xff]
        %v5388 = vld [vmem:[%s5265 + $0x3d0] sm:$0xff]
        %v5389 = vld [vmem:[%s5265 + $0x3d8] sm:$0xff]
        %v5390 = vld [vmem:[%s5265 + $0x3e0] sm:$0xff]
        %v5391 = vld [vmem:[%s5265 + $0x3e8] sm:$0xff]
        %v5392 = vld [vmem:[%s5265 + $0x3f0] sm:$0xff]
        %v5393 = vld [vmem:[%s5265 + $0x3f8] sm:$0xff]
        %v5522 = vunpack.c.l.b16 %v5266
        %v5523 = vunpack.c.h.b16 %v5266
        %v5524 = vunpack.c.l.b16 %v5267
        %v5525 = vunpack.c.h.b16 %v5267
        %v5526 = vunpack.c.l.b16 %v5268
        %v5527 = vunpack.c.h.b16 %v5268
        %v5528 = vunpack.c.l.b16 %v5269
        %v5529 = vunpack.c.h.b16 %v5269
        %v5530 = vunpack.c.l.b16 %v5270
        %v5531 = vunpack.c.h.b16 %v5270
        %v5532 = vunpack.c.l.b16 %v5271
        %v5533 = vunpack.c.h.b16 %v5271
        %v5534 = vunpack.c.l.b16 %v5272
        %v5535 = vunpack.c.h.b16 %v5272
        %v5536 = vunpack.c.l.b16 %v5273
        %v5537 = vunpack.c.h.b16 %v5273
        %v5538 = vunpack.c.l.b16 %v5274
        %v5539 = vunpack.c.h.b16 %v5274
        %v5540 = vunpack.c.l.b16 %v5275
        %v5541 = vunpack.c.h.b16 %v5275
        %v5542 = vunpack.c.l.b16 %v5276
        %v5543 = vunpack.c.h.b16 %v5276
        %v5544 = vunpack.c.l.b16 %v5277
        %v5545 = vunpack.c.h.b16 %v5277
        %v5546 = vunpack.c.l.b16 %v5278
        %v5547 = vunpack.c.h.b16 %v5278
        %v5548 = vunpack.c.l.b16 %v5279
        %v5549 = vunpack.c.h.b16 %v5279
        %v5550 = vunpack.c.l.b16 %v5280
        %v5551 = vunpack.c.h.b16 %v5280
        %v5552 = vunpack.c.l.b16 %v5281
        %v5553 = vunpack.c.h.b16 %v5281
        %v5554 = vunpack.c.l.b16 %v5282
        %v5555 = vunpack.c.h.b16 %v5282
        %v5556 = vunpack.c.l.b16 %v5283
        %v5557 = vunpack.c.h.b16 %v5283
        %v5558 = vunpack.c.l.b16 %v5284
        %v5559 = vunpack.c.h.b16 %v5284
        %v5560 = vunpack.c.l.b16 %v5285
        %v5561 = vunpack.c.h.b16 %v5285
        %v5562 = vunpack.c.l.b16 %v5286
        %v5563 = vunpack.c.h.b16 %v5286
        %v5564 = vunpack.c.l.b16 %v5287
        %v5565 = vunpack.c.h.b16 %v5287
        %v5566 = vunpack.c.l.b16 %v5288
        %v5567 = vunpack.c.h.b16 %v5288
        %v5568 = vunpack.c.l.b16 %v5289
        %v5569 = vunpack.c.h.b16 %v5289
        %v5570 = vunpack.c.l.b16 %v5290
        %v5571 = vunpack.c.h.b16 %v5290
        %v5572 = vunpack.c.l.b16 %v5291
        %v5573 = vunpack.c.h.b16 %v5291
        %v5574 = vunpack.c.l.b16 %v5292
        %v5575 = vunpack.c.h.b16 %v5292
        %v5576 = vunpack.c.l.b16 %v5293
        %v5577 = vunpack.c.h.b16 %v5293
        %v5578 = vunpack.c.l.b16 %v5294
        %v5579 = vunpack.c.h.b16 %v5294
        %v5580 = vunpack.c.l.b16 %v5295
        %v5581 = vunpack.c.h.b16 %v5295
        %v5582 = vunpack.c.l.b16 %v5296
        %v5583 = vunpack.c.h.b16 %v5296
        %v5584 = vunpack.c.l.b16 %v5297
        %v5585 = vunpack.c.h.b16 %v5297
        %v5586 = vunpack.c.l.b16 %v5298
        %v5587 = vunpack.c.h.b16 %v5298
        %v5588 = vunpack.c.l.b16 %v5299
        %v5589 = vunpack.c.h.b16 %v5299
        %v5590 = vunpack.c.l.b16 %v5300
        %v5591 = vunpack.c.h.b16 %v5300
        %v5592 = vunpack.c.l.b16 %v5301
        %v5593 = vunpack.c.h.b16 %v5301
        %v5594 = vunpack.c.l.b16 %v5302
        %v5595 = vunpack.c.h.b16 %v5302
        %v5596 = vunpack.c.l.b16 %v5303
        %v5597 = vunpack.c.h.b16 %v5303
        %v5598 = vunpack.c.l.b16 %v5304
        %v5599 = vunpack.c.h.b16 %v5304
        %v5600 = vunpack.c.l.b16 %v5305
        %v5601 = vunpack.c.h.b16 %v5305
        %v5602 = vunpack.c.l.b16 %v5306
        %v5603 = vunpack.c.h.b16 %v5306
        %v5604 = vunpack.c.l.b16 %v5307
        %v5605 = vunpack.c.h.b16 %v5307
        %v5606 = vunpack.c.l.b16 %v5308
        %v5607 = vunpack.c.h.b16 %v5308
        %v5608 = vunpack.c.l.b16 %v5309
        %v5609 = vunpack.c.h.b16 %v5309
        %v5610 = vunpack.c.l.b16 %v5310
        %v5611 = vunpack.c.h.b16 %v5310
        %v5612 = vunpack.c.l.b16 %v5311
        %v5613 = vunpack.c.h.b16 %v5311
        %v5614 = vunpack.c.l.b16 %v5312
        %v5615 = vunpack.c.h.b16 %v5312
        %v5616 = vunpack.c.l.b16 %v5313
        %v5617 = vunpack.c.h.b16 %v5313
        %v5618 = vunpack.c.l.b16 %v5314
        %v5619 = vunpack.c.h.b16 %v5314
        %v5620 = vunpack.c.l.b16 %v5315
        %v5621 = vunpack.c.h.b16 %v5315
        %v5622 = vunpack.c.l.b16 %v5316
        %v5623 = vunpack.c.h.b16 %v5316
        %v5624 = vunpack.c.l.b16 %v5317
        %v5625 = vunpack.c.h.b16 %v5317
        %v5626 = vunpack.c.l.b16 %v5318
        %v5627 = vunpack.c.h.b16 %v5318
        %v5628 = vunpack.c.l.b16 %v5319
        %v5629 = vunpack.c.h.b16 %v5319
        %v5630 = vunpack.c.l.b16 %v5320
        %v5631 = vunpack.c.h.b16 %v5320
        %v5632 = vunpack.c.l.b16 %v5321
        %v5633 = vunpack.c.h.b16 %v5321
        %v5634 = vunpack.c.l.b16 %v5322
        %v5635 = vunpack.c.h.b16 %v5322
        %v5636 = vunpack.c.l.b16 %v5323
        %v5637 = vunpack.c.h.b16 %v5323
        %v5638 = vunpack.c.l.b16 %v5324
        %v5639 = vunpack.c.h.b16 %v5324
        %v5640 = vunpack.c.l.b16 %v5325
        %v5641 = vunpack.c.h.b16 %v5325
        %v5642 = vunpack.c.l.b16 %v5326
        %v5643 = vunpack.c.h.b16 %v5326
        %v5644 = vunpack.c.l.b16 %v5327
        %v5645 = vunpack.c.h.b16 %v5327
        %v5646 = vunpack.c.l.b16 %v5328
        %v5647 = vunpack.c.h.b16 %v5328
        %v5648 = vunpack.c.l.b16 %v5329
        %v5649 = vunpack.c.h.b16 %v5329
        %v5650 = vunpack.c.l.b16 %v5330
        %v5651 = vunpack.c.h.b16 %v5330
        %v5652 = vunpack.c.l.b16 %v5331
        %v5653 = vunpack.c.h.b16 %v5331
        %v5654 = vunpack.c.l.b16 %v5332
        %v5655 = vunpack.c.h.b16 %v5332
        %v5656 = vunpack.c.l.b16 %v5333
        %v5657 = vunpack.c.h.b16 %v5333
        %v5658 = vunpack.c.l.b16 %v5334
        %v5659 = vunpack.c.h.b16 %v5334
        %v5660 = vunpack.c.l.b16 %v5335
        %v5661 = vunpack.c.h.b16 %v5335
        %v5662 = vunpack.c.l.b16 %v5336
        %v5663 = vunpack.c.h.b16 %v5336
        %v5664 = vunpack.c.l.b16 %v5337
        %v5665 = vunpack.c.h.b16 %v5337
        %v5666 = vunpack.c.l.b16 %v5338
        %v5667 = vunpack.c.h.b16 %v5338
        %v5668 = vunpack.c.l.b16 %v5339
        %v5669 = vunpack.c.h.b16 %v5339
        %v5670 = vunpack.c.l.b16 %v5340
        %v5671 = vunpack.c.h.b16 %v5340
        %v5672 = vunpack.c.l.b16 %v5341
        %v5673 = vunpack.c.h.b16 %v5341
        %v5674 = vunpack.c.l.b16 %v5342
        %v5675 = vunpack.c.h.b16 %v5342
        %v5676 = vunpack.c.l.b16 %v5343
        %v5677 = vunpack.c.h.b16 %v5343
        %v5678 = vunpack.c.l.b16 %v5344
        %v5679 = vunpack.c.h.b16 %v5344
        %v5680 = vunpack.c.l.b16 %v5345
        %v5681 = vunpack.c.h.b16 %v5345
        %v5682 = vunpack.c.l.b16 %v5346
        %v5683 = vunpack.c.h.b16 %v5346
        %v5684 = vunpack.c.l.b16 %v5347
        %v5685 = vunpack.c.h.b16 %v5347
        %v5686 = vunpack.c.l.b16 %v5348
        %v5687 = vunpack.c.h.b16 %v5348
        %v5688 = vunpack.c.l.b16 %v5349
        %v5689 = vunpack.c.h.b16 %v5349
        %v5690 = vunpack.c.l.b16 %v5350
        %v5691 = vunpack.c.h.b16 %v5350
        %v5692 = vunpack.c.l.b16 %v5351
        %v5693 = vunpack.c.h.b16 %v5351
        %v5694 = vunpack.c.l.b16 %v5352
        %v5695 = vunpack.c.h.b16 %v5352
        %v5696 = vunpack.c.l.b16 %v5353
        %v5697 = vunpack.c.h.b16 %v5353
        %v5698 = vunpack.c.l.b16 %v5354
        %v5699 = vunpack.c.h.b16 %v5354
        %v5700 = vunpack.c.l.b16 %v5355
        %v5701 = vunpack.c.h.b16 %v5355
        %v5702 = vunpack.c.l.b16 %v5356
        %v5703 = vunpack.c.h.b16 %v5356
        %v5704 = vunpack.c.l.b16 %v5357
        %v5705 = vunpack.c.h.b16 %v5357
        %v5706 = vunpack.c.l.b16 %v5358
        %v5707 = vunpack.c.h.b16 %v5358
        %v5708 = vunpack.c.l.b16 %v5359
        %v5709 = vunpack.c.h.b16 %v5359
        %v5710 = vunpack.c.l.b16 %v5360
        %v5711 = vunpack.c.h.b16 %v5360
        %v5712 = vunpack.c.l.b16 %v5361
        %v5713 = vunpack.c.h.b16 %v5361
        %v5714 = vunpack.c.l.b16 %v5362
        %v5715 = vunpack.c.h.b16 %v5362
        %v5716 = vunpack.c.l.b16 %v5363
        %v5717 = vunpack.c.h.b16 %v5363
        %v5718 = vunpack.c.l.b16 %v5364
        %v5719 = vunpack.c.h.b16 %v5364
        %v5720 = vunpack.c.l.b16 %v5365
        %v5721 = vunpack.c.h.b16 %v5365
        %v5722 = vunpack.c.l.b16 %v5366
        %v5723 = vunpack.c.h.b16 %v5366
        %v5724 = vunpack.c.l.b16 %v5367
        %v5725 = vunpack.c.h.b16 %v5367
        %v5726 = vunpack.c.l.b16 %v5368
        %v5727 = vunpack.c.h.b16 %v5368
        %v5728 = vunpack.c.l.b16 %v5369
        %v5729 = vunpack.c.h.b16 %v5369
        %v5730 = vunpack.c.l.b16 %v5370
        %v5731 = vunpack.c.h.b16 %v5370
        %v5732 = vunpack.c.l.b16 %v5371
        %v5733 = vunpack.c.h.b16 %v5371
        %v5734 = vunpack.c.l.b16 %v5372
        %v5735 = vunpack.c.h.b16 %v5372
        %v5736 = vunpack.c.l.b16 %v5373
        %v5737 = vunpack.c.h.b16 %v5373
        %v5738 = vunpack.c.l.b16 %v5374
        %v5739 = vunpack.c.h.b16 %v5374
        %v5740 = vunpack.c.l.b16 %v5375
        %v5741 = vunpack.c.h.b16 %v5375
        %v5742 = vunpack.c.l.b16 %v5376
        %v5743 = vunpack.c.h.b16 %v5376
        %v5744 = vunpack.c.l.b16 %v5377
        %v5745 = vunpack.c.h.b16 %v5377
        %v5746 = vunpack.c.l.b16 %v5378
        %v5747 = vunpack.c.h.b16 %v5378
        %v5748 = vunpack.c.l.b16 %v5379
        %v5749 = vunpack.c.h.b16 %v5379
        %v5750 = vunpack.c.l.b16 %v5380
        %v5751 = vunpack.c.h.b16 %v5380
        %v5752 = vunpack.c.l.b16 %v5381
        %v5753 = vunpack.c.h.b16 %v5381
        %v5754 = vunpack.c.l.b16 %v5382
        %v5755 = vunpack.c.h.b16 %v5382
        %v5756 = vunpack.c.l.b16 %v5383
        %v5757 = vunpack.c.h.b16 %v5383
        %v5758 = vunpack.c.l.b16 %v5384
        %v5759 = vunpack.c.h.b16 %v5384
        %v5760 = vunpack.c.l.b16 %v5385
        %v5761 = vunpack.c.h.b16 %v5385
        %v5762 = vunpack.c.l.b16 %v5386
        %v5763 = vunpack.c.h.b16 %v5386
        %v5764 = vunpack.c.l.b16 %v5387
        %v5765 = vunpack.c.h.b16 %v5387
        %v5766 = vunpack.c.l.b16 %v5388
        %v5767 = vunpack.c.h.b16 %v5388
        %v5768 = vunpack.c.l.b16 %v5389
        %v5769 = vunpack.c.h.b16 %v5389
        %v5770 = vunpack.c.l.b16 %v5390
        %v5771 = vunpack.c.h.b16 %v5390
        %v5772 = vunpack.c.l.b16 %v5391
        %v5773 = vunpack.c.h.b16 %v5391
        %v5774 = vunpack.c.l.b16 %v5392
        %v5775 = vunpack.c.h.b16 %v5392
        %v5776 = vunpack.c.l.b16 %v5393
        %v5777 = vunpack.c.h.b16 %v5393
        %v5778 = vpack.c.b16 %v5526, %v5522
        %v5779 = vpack.c.b16 %v5527, %v5523
        %v5780 = vpack.c.b16 %v5528, %v5524
        %v5781 = vpack.c.b16 %v5529, %v5525
        %v5782 = vpack.c.b16 %v5534, %v5530
        %v5783 = vpack.c.b16 %v5535, %v5531
        %v5784 = vpack.c.b16 %v5536, %v5532
        %v5785 = vpack.c.b16 %v5537, %v5533
        %v5786 = vpack.c.b16 %v5542, %v5538
        %v5787 = vpack.c.b16 %v5543, %v5539
        %v5788 = vpack.c.b16 %v5544, %v5540
        %v5789 = vpack.c.b16 %v5545, %v5541
        %v5790 = vpack.c.b16 %v5550, %v5546
        %v5791 = vpack.c.b16 %v5551, %v5547
        %v5792 = vpack.c.b16 %v5552, %v5548
        %v5793 = vpack.c.b16 %v5553, %v5549
        %v5794 = vpack.c.b16 %v5558, %v5554
        %v5795 = vpack.c.b16 %v5559, %v5555
        %v5796 = vpack.c.b16 %v5560, %v5556
        %v5797 = vpack.c.b16 %v5561, %v5557
        %v5798 = vpack.c.b16 %v5566, %v5562
        %v5799 = vpack.c.b16 %v5567, %v5563
        %v5800 = vpack.c.b16 %v5568, %v5564
        %v5801 = vpack.c.b16 %v5569, %v5565
        %v5802 = vpack.c.b16 %v5574, %v5570
        %v5803 = vpack.c.b16 %v5575, %v5571
        %v5804 = vpack.c.b16 %v5576, %v5572
        %v5805 = vpack.c.b16 %v5577, %v5573
        %v5806 = vpack.c.b16 %v5582, %v5578
        %v5807 = vpack.c.b16 %v5583, %v5579
        %v5808 = vpack.c.b16 %v5584, %v5580
        %v5809 = vpack.c.b16 %v5585, %v5581
        %v5810 = vpack.c.b16 %v5590, %v5586
        %v5811 = vpack.c.b16 %v5591, %v5587
        %v5812 = vpack.c.b16 %v5592, %v5588
        %v5813 = vpack.c.b16 %v5593, %v5589
        %v5814 = vpack.c.b16 %v5598, %v5594
        %v5815 = vpack.c.b16 %v5599, %v5595
        %v5816 = vpack.c.b16 %v5600, %v5596
        %v5817 = vpack.c.b16 %v5601, %v5597
        %v5818 = vpack.c.b16 %v5606, %v5602
        %v5819 = vpack.c.b16 %v5607, %v5603
        %v5820 = vpack.c.b16 %v5608, %v5604
        %v5821 = vpack.c.b16 %v5609, %v5605
        %v5822 = vpack.c.b16 %v5614, %v5610
        %v5823 = vpack.c.b16 %v5615, %v5611
        %v5824 = vpack.c.b16 %v5616, %v5612
        %v5825 = vpack.c.b16 %v5617, %v5613
        %v5826 = vpack.c.b16 %v5622, %v5618
        %v5827 = vpack.c.b16 %v5623, %v5619
        %v5828 = vpack.c.b16 %v5624, %v5620
        %v5829 = vpack.c.b16 %v5625, %v5621
        %v5830 = vpack.c.b16 %v5630, %v5626
        %v5831 = vpack.c.b16 %v5631, %v5627
        %v5832 = vpack.c.b16 %v5632, %v5628
        %v5833 = vpack.c.b16 %v5633, %v5629
        %v5834 = vpack.c.b16 %v5638, %v5634
        %v5835 = vpack.c.b16 %v5639, %v5635
        %v5836 = vpack.c.b16 %v5640, %v5636
        %v5837 = vpack.c.b16 %v5641, %v5637
        %v5838 = vpack.c.b16 %v5646, %v5642
        %v5839 = vpack.c.b16 %v5647, %v5643
        %v5840 = vpack.c.b16 %v5648, %v5644
        %v5841 = vpack.c.b16 %v5649, %v5645
        %v5842 = vpack.c.b16 %v5654, %v5650
        %v5843 = vpack.c.b16 %v5655, %v5651
        %v5844 = vpack.c.b16 %v5656, %v5652
        %v5845 = vpack.c.b16 %v5657, %v5653
        %v5846 = vpack.c.b16 %v5662, %v5658
        %v5847 = vpack.c.b16 %v5663, %v5659
        %v5848 = vpack.c.b16 %v5664, %v5660
        %v5849 = vpack.c.b16 %v5665, %v5661
        %v5850 = vpack.c.b16 %v5670, %v5666
        %v5851 = vpack.c.b16 %v5671, %v5667
        %v5852 = vpack.c.b16 %v5672, %v5668
        %v5853 = vpack.c.b16 %v5673, %v5669
        %v5854 = vpack.c.b16 %v5678, %v5674
        %v5855 = vpack.c.b16 %v5679, %v5675
        %v5856 = vpack.c.b16 %v5680, %v5676
        %v5857 = vpack.c.b16 %v5681, %v5677
        %v5858 = vpack.c.b16 %v5686, %v5682
        %v5859 = vpack.c.b16 %v5687, %v5683
        %v5860 = vpack.c.b16 %v5688, %v5684
        %v5861 = vpack.c.b16 %v5689, %v5685
        %v5862 = vpack.c.b16 %v5694, %v5690
        %v5863 = vpack.c.b16 %v5695, %v5691
        %v5864 = vpack.c.b16 %v5696, %v5692
        %v5865 = vpack.c.b16 %v5697, %v5693
        %v5866 = vpack.c.b16 %v5702, %v5698
        %v5867 = vpack.c.b16 %v5703, %v5699
        %v5868 = vpack.c.b16 %v5704, %v5700
        %v5869 = vpack.c.b16 %v5705, %v5701
        %v5870 = vpack.c.b16 %v5710, %v5706
        %v5871 = vpack.c.b16 %v5711, %v5707
        %v5872 = vpack.c.b16 %v5712, %v5708
        %v5873 = vpack.c.b16 %v5713, %v5709
        %v5874 = vpack.c.b16 %v5718, %v5714
        %v5875 = vpack.c.b16 %v5719, %v5715
        %v5876 = vpack.c.b16 %v5720, %v5716
        %v5877 = vpack.c.b16 %v5721, %v5717
        %v5878 = vpack.c.b16 %v5726, %v5722
        %v5879 = vpack.c.b16 %v5727, %v5723
        %v5880 = vpack.c.b16 %v5728, %v5724
        %v5881 = vpack.c.b16 %v5729, %v5725
        %v5882 = vpack.c.b16 %v5734, %v5730
        %v5883 = vpack.c.b16 %v5735, %v5731
        %v5884 = vpack.c.b16 %v5736, %v5732
        %v5885 = vpack.c.b16 %v5737, %v5733
        %v5886 = vpack.c.b16 %v5742, %v5738
        %v5887 = vpack.c.b16 %v5743, %v5739
        %v5888 = vpack.c.b16 %v5744, %v5740
        %v5889 = vpack.c.b16 %v5745, %v5741
        %v5890 = vpack.c.b16 %v5750, %v5746
        %v5891 = vpack.c.b16 %v5751, %v5747
        %v5892 = vpack.c.b16 %v5752, %v5748
        %v5893 = vpack.c.b16 %v5753, %v5749
        %v5894 = vpack.c.b16 %v5758, %v5754
        %v5895 = vpack.c.b16 %v5759, %v5755
        %v5896 = vpack.c.b16 %v5760, %v5756
        %v5897 = vpack.c.b16 %v5761, %v5757
        %v5898 = vpack.c.b16 %v5766, %v5762
        %v5899 = vpack.c.b16 %v5767, %v5763
        %v5900 = vpack.c.b16 %v5768, %v5764
        %v5901 = vpack.c.b16 %v5769, %v5765
        %v5902 = vpack.c.b16 %v5774, %v5770
        %v5903 = vpack.c.b16 %v5775, %v5771
        %v5904 = vpack.c.b16 %v5776, %v5772
        %v5905 = vpack.c.b16 %v5777, %v5773
        %6034 = vmatprep.subr.bf16.mxu0 %v5779
        %6035 = vmatpush1.bf16.msra.mxu0 %v5778
        %6036 = vmatprep.subr.bf16.mxu0 %v5783
        %6037 = vmatpush1.bf16.msra.mxu0 %v5782
        %6038 = vmatprep.subr.bf16.mxu0 %v5787
        %6039 = vmatpush1.bf16.msra.mxu0 %v5786
        %6040 = vmatprep.subr.bf16.mxu0 %v5791
        %6041 = vmatpush1.bf16.msra.mxu0 %v5790
        %6042 = vmatprep.subr.bf16.mxu0 %v5795
        %6043 = vmatpush1.bf16.msra.mxu0 %v5794
        %6044 = vmatprep.subr.bf16.mxu0 %v5799
        %6045 = vmatpush1.bf16.msra.mxu0 %v5798
        %6046 = vmatprep.subr.bf16.mxu0 %v5803
        %6047 = vmatpush1.bf16.msra.mxu0 %v5802
        %6048 = vmatprep.subr.bf16.mxu0 %v5807
        %6049 = vmatpush1.bf16.msra.mxu0 %v5806
        %6050 = vmatprep.subr.bf16.mxu0 %v5811
        %6051 = vmatpush1.bf16.msra.mxu0 %v5810
        %6052 = vmatprep.subr.bf16.mxu0 %v5815
        %6053 = vmatpush1.bf16.msra.mxu0 %v5814
        %6054 = vmatprep.subr.bf16.mxu0 %v5819
        %6055 = vmatpush1.bf16.msra.mxu0 %v5818
        %6056 = vmatprep.subr.bf16.mxu0 %v5823
        %6057 = vmatpush1.bf16.msra.mxu0 %v5822
        %6058 = vmatprep.subr.bf16.mxu0 %v5827
        %6059 = vmatpush1.bf16.msra.mxu0 %v5826
        %6060 = vmatprep.subr.bf16.mxu0 %v5831
        %6061 = vmatpush1.bf16.msra.mxu0 %v5830
        %6062 = vmatprep.subr.bf16.mxu0 %v5835
        %6063 = vmatpush1.bf16.msra.mxu0 %v5834
        %6064 = vmatprep.subr.bf16.mxu0 %v5839
        %6065 = vmatpush1.bf16.msra.mxu0 %v5838
        %6066 = vmatprep.mubr.bf16.mxu0 %v3381
        %6067 = vmatmul.mubr.bf16.gmra.mrb[0].mxu0 %v3380
        %v6068 = vpop.f32.mrb[0].mxu0
        %v6069 = vadd.f32 0.0, %v6068
        %v6070 = vpop.f32.mrb[0].mxu0
        %v6071 = vadd.f32 0.0, %v6070
        %v6072 = vpop.f32.mrb[0].mxu0
        %v6073 = vadd.f32 0.0, %v6072
        %v6074 = vpop.f32.mrb[0].mxu0
        %v6075 = vadd.f32 0.0, %v6074
        %6076 = vdwg.mxu0
        %6077 = vmatprep.subr.bf16.mxu0 %v5843
        %6078 = vmatpush1.bf16.msra.mxu0 %v5842
        %6079 = vmatprep.subr.bf16.mxu0 %v5847
        %6080 = vmatpush1.bf16.msra.mxu0 %v5846
        %6081 = vmatprep.subr.bf16.mxu0 %v5851
        %6082 = vmatpush1.bf16.msra.mxu0 %v5850
        %6083 = vmatprep.subr.bf16.mxu0 %v5855
        %6084 = vmatpush1.bf16.msra.mxu0 %v5854
        %6085 = vmatprep.subr.bf16.mxu0 %v5859
        %6086 = vmatpush1.bf16.msra.mxu0 %v5858
        %6087 = vmatprep.subr.bf16.mxu0 %v5863
        %6088 = vmatpush1.bf16.msra.mxu0 %v5862
        %6089 = vmatprep.subr.bf16.mxu0 %v5867
        %6090 = vmatpush1.bf16.msra.mxu0 %v5866
        %6091 = vmatprep.subr.bf16.mxu0 %v5871
        %6092 = vmatpush1.bf16.msra.mxu0 %v5870
        %6093 = vmatprep.subr.bf16.mxu0 %v5875
        %6094 = vmatpush1.bf16.msra.mxu0 %v5874
        %6095 = vmatprep.subr.bf16.mxu0 %v5879
        %6096 = vmatpush1.bf16.msra.mxu0 %v5878
        %6097 = vmatprep.subr.bf16.mxu0 %v5883
        %6098 = vmatpush1.bf16.msra.mxu0 %v5882
        %6099 = vmatprep.subr.bf16.mxu0 %v5887
        %6100 = vmatpush1.bf16.msra.mxu0 %v5886
        %6101 = vmatprep.subr.bf16.mxu0 %v5891
        %6102 = vmatpush1.bf16.msra.mxu0 %v5890
        %6103 = vmatprep.subr.bf16.mxu0 %v5895
        %6104 = vmatpush1.bf16.msra.mxu0 %v5894
        %6105 = vmatprep.subr.bf16.mxu0 %v5899
        %6106 = vmatpush1.bf16.msra.mxu0 %v5898
        %6107 = vmatprep.subr.bf16.mxu0 %v5903
        %6108 = vmatpush1.bf16.msra.mxu0 %v5902
        %6109 = vmatprep.mubr.bf16.mxu0 %v3383
        %6110 = vmatmul.mubr.bf16.gmra.mrb[0].mxu0 %v3382
        %v6111 = vpop.f32.mrb[0].mxu0
        %v6112 = vadd.f32 %v6069, %v6111
        %v6113 = vpop.f32.mrb[0].mxu0
        %v6114 = vadd.f32 %v6071, %v6113
        %v6115 = vpop.f32.mrb[0].mxu0
        %v6116 = vadd.f32 %v6073, %v6115
        %v6117 = vpop.f32.mrb[0].mxu0
        %v6118 = vadd.f32 %v6075, %v6117
        %6119 = vdwg.mxu0
        %6120 = vmatprep.subr.bf16.mxu0 %v5781
        %6121 = vmatpush1.bf16.msra.mxu0 %v5780
        %6122 = vmatprep.subr.bf16.mxu0 %v5785
        %6123 = vmatpush1.bf16.msra.mxu0 %v5784
        %6124 = vmatprep.subr.bf16.mxu0 %v5789
        %6125 = vmatpush1.bf16.msra.mxu0 %v5788
        %6126 = vmatprep.subr.bf16.mxu0 %v5793
        %6127 = vmatpush1.bf16.msra.mxu0 %v5792
        %6128 = vmatprep.subr.bf16.mxu0 %v5797
        %6129 = vmatpush1.bf16.msra.mxu0 %v5796
        %6130 = vmatprep.subr.bf16.mxu0 %v5801
        %6131 = vmatpush1.bf16.msra.mxu0 %v5800
        %6132 = vmatprep.subr.bf16.mxu0 %v5805
        %6133 = vmatpush1.bf16.msra.mxu0 %v5804
        %6134 = vmatprep.subr.bf16.mxu0 %v5809
        %6135 = vmatpush1.bf16.msra.mxu0 %v5808
        %6136 = vmatprep.subr.bf16.mxu0 %v5813
        %6137 = vmatpush1.bf16.msra.mxu0 %v5812
        %6138 = vmatprep.subr.bf16.mxu0 %v5817
        %6139 = vmatpush1.bf16.msra.mxu0 %v5816
        %6140 = vmatprep.subr.bf16.mxu0 %v5821
        %6141 = vmatpush1.bf16.msra.mxu0 %v5820
        %6142 = vmatprep.subr.bf16.mxu0 %v5825
        %6143 = vmatpush1.bf16.msra.mxu0 %v5824
        %6144 = vmatprep.subr.bf16.mxu0 %v5829
        %6145 = vmatpush1.bf16.msra.mxu0 %v5828
        %6146 = vmatprep.subr.bf16.mxu0 %v5833
        %6147 = vmatpush1.bf16.msra.mxu0 %v5832
        %6148 = vmatprep.subr.bf16.mxu0 %v5837
        %6149 = vmatpush1.bf16.msra.mxu0 %v5836
        %6150 = vmatprep.subr.bf16.mxu0 %v5841
        %6151 = vmatpush1.bf16.msra.mxu0 %v5840
        %6152 = vmatprep.mubr.bf16.mxu0 %v3381
        %6153 = vmatmul.mubr.bf16.gmra.mrb[0].mxu0 %v3380
        %v6154 = vpop.f32.mrb[0].mxu0
        %v6155 = vadd.f32 0.0, %v6154
        %v6156 = vpop.f32.mrb[0].mxu0
        %v6157 = vadd.f32 0.0, %v6156
        %v6158 = vpop.f32.mrb[0].mxu0
        %v6159 = vadd.f32 0.0, %v6158
        %v6160 = vpop.f32.mrb[0].mxu0
        %v6161 = vadd.f32 0.0, %v6160
        %6162 = vdwg.mxu0
        %6163 = vmatprep.subr.bf16.mxu0 %v5845
        %6164 = vmatpush1.bf16.msra.mxu0 %v5844
        %6165 = vmatprep.subr.bf16.mxu0 %v5849
        %6166 = vmatpush1.bf16.msra.mxu0 %v5848
        %6167 = vmatprep.subr.bf16.mxu0 %v5853
        %6168 = vmatpush1.bf16.msra.mxu0 %v5852
        %6169 = vmatprep.subr.bf16.mxu0 %v5857
        %6170 = vmatpush1.bf16.msra.mxu0 %v5856
        %6171 = vmatprep.subr.bf16.mxu0 %v5861
        %6172 = vmatpush1.bf16.msra.mxu0 %v5860
        %6173 = vmatprep.subr.bf16.mxu0 %v5865
        %6174 = vmatpush1.bf16.msra.mxu0 %v5864
        %6175 = vmatprep.subr.bf16.mxu0 %v5869
        %6176 = vmatpush1.bf16.msra.mxu0 %v5868
        %6177 = vmatprep.subr.bf16.mxu0 %v5873
        %6178 = vmatpush1.bf16.msra.mxu0 %v5872
        %6179 = vmatprep.subr.bf16.mxu0 %v5877
        %6180 = vmatpush1.bf16.msra.mxu0 %v5876
        %6181 = vmatprep.subr.bf16.mxu0 %v5881
        %6182 = vmatpush1.bf16.msra.mxu0 %v5880
        %6183 = vmatprep.subr.bf16.mxu0 %v5885
        %6184 = vmatpush1.bf16.msra.mxu0 %v5884
        %6185 = vmatprep.subr.bf16.mxu0 %v5889
        %6186 = vmatpush1.bf16.msra.mxu0 %v5888
        %6187 = vmatprep.subr.bf16.mxu0 %v5893
        %6188 = vmatpush1.bf16.msra.mxu0 %v5892
        %6189 = vmatprep.subr.bf16.mxu0 %v5897
        %6190 = vmatpush1.bf16.msra.mxu0 %v5896
        %6191 = vmatprep.subr.bf16.mxu0 %v5901
        %6192 = vmatpush1.bf16.msra.mxu0 %v5900
        %6193 = vmatprep.subr.bf16.mxu0 %v5905
        %6194 = vmatpush1.bf16.msra.mxu0 %v5904
        %6195 = vmatprep.mubr.bf16.mxu0 %v3383
        %6196 = vmatmul.mubr.bf16.gmra.mrb[0].mxu0 %v3382
        %v6197 = vpop.f32.mrb[0].mxu0
        %v6198 = vadd.f32 %v6155, %v6197
        %v6199 = vpop.f32.mrb[0].mxu0
        %v6200 = vadd.f32 %v6157, %v6199
        %v6201 = vpop.f32.mrb[0].mxu0
        %v6202 = vadd.f32 %v6159, %v6201
        %v6203 = vpop.f32.mrb[0].mxu0
        %v6204 = vadd.f32 %v6161, %v6203
        %6205 = vdwg.mxu0
        %v6206 = vadd.f32 %v5171, %v6112
        %v6207 = vadd.f32 %v5173, %v6114
        %v6208 = vadd.f32 %v5257, %v6198
        %v6209 = vadd.f32 %v5259, %v6200
        %v6210 = vadd.f32 %v5175, %v6116
        %v6211 = vadd.f32 %v5177, %v6118
        %v6212 = vadd.f32 %v5261, %v6202
        %v6213 = vadd.f32 %v5263, %v6204
        %v6214 = vld [vmem:[#allocation10] sm:$0xf]
        %v6216 = vlaneseq
        %v6217 = vshrl.u32 %v6216, 7
        %v6218 = vsub.s32 0, %v6217
        %v6219 = vrot.slane %v6214, %v6218
        %v6220 = vlaneseq
        %v6221 = vshrl.u32 %v6220, 7
        %v6222 = vsub.s32 1, %v6221
        %v6223 = vrot.slane %v6214, %v6222
        %v6224 = vlaneseq
        %v6225 = vshrl.u32 %v6224, 7
        %v6226 = vsub.s32 2, %v6225
        %v6227 = vrot.slane %v6214, %v6226
        %v6228 = vlaneseq
        %v6229 = vshrl.u32 %v6228, 7
        %v6230 = vsub.s32 3, %v6229
        %v6231 = vrot.slane %v6214, %v6230
        %v6236 = vadd.f32 %v6206, %v6219
        %v6237 = vadd.f32 %v6207, %v6223
        %v6238 = vadd.f32 %v6208, %v6227
        %v6239 = vadd.f32 %v6209, %v6231
        %v6240 = vadd.f32 %v6210, %v6219
        %v6241 = vadd.f32 %v6211, %v6223
        %v6242 = vadd.f32 %v6212, %v6227
        %v6243 = vadd.f32 %v6213, %v6231
        %v6244 = vadd.f32 %v303, %v6236
        %v6245 = vadd.f32 %v304, %v6237
        %v6246 = vadd.f32 %v305, %v6238
        %v6247 = vadd.f32 %v306, %v6239
        %v6248 = vadd.f32 %v307, %v6240
        %v6249 = vadd.f32 %v308, %v6241
        %v6250 = vadd.f32 %v309, %v6242
        %v6251 = vadd.f32 %v310, %v6243
        %6252 = vst [vmem:[%s297] sm:$0xff] %v6244
        %6253 = vst [vmem:[%s297 + $0x8] sm:$0xff] %v6245
        %6254 = vst [vmem:[%s297 + $0x10] sm:$0xff] %v6246
        %6255 = vst [vmem:[%s297 + $0x18] sm:$0xff] %v6247
        %6256 = vst [vmem:[%s297 + $0x20] sm:$0xff] %v6248
        %6257 = vst [vmem:[%s297 + $0x28] sm:$0xff] %v6249
        %6258 = vst [vmem:[%s297 + $0x30] sm:$0xff] %v6250
        %6259 = vst [vmem:[%s297 + $0x38] sm:$0xff] %v6251
        %s6260 = sand.u32 %s142, 1
        %s6261 = scalar_lea.sflag [#allocation4], %s6260
        %s6262 = sand.u32 %s142, 1
        %s6263 = smul.addr %s6262, 64
        %s6264 = scalar_lea.vmem [#allocation11], %s6263
        // Predicated region
        $region61: #{tpu_custom_call.1} parent=39 // pred_check
          %p6265 = pneg %p152
        $region62: #{tpu_custom_call.1} parent=39 // pred_check_branch
          %6267 = sbr.rel (%p6265) target = $region64
        $region63: #{tpu_custom_call.1} parent=39 // pred_region
          %s6268 = smul.u32 2, %s24
          %s6270 = ssub.s32 1024, 1024
          %6271 = vsyncadd %s6261, %s6270
          %s6272 = smul.addr %s6268, 4
          %s6273 = smul.addr %s6272, 128
          %s6274 = scalar_lea.hbm %s5, %s6273
          %s6275 = sshll.u32 %s6264, 4
          %s6276 = int_to_ptr.vmem [resolvable:$true] %s6275
          %6281 = dma.vmem_to_hbm [thread:$0]  %s6276, 1024, %s6274, %s6261, 512, 512, 32
        $region64: #{tpu_custom_call.1} parent=39 // pred_fallthru
          _
      $region40: #{tpu_custom_call.1} parent=5 // pred_fallthru
        _
      %p6282 = scmp.le.s32.totalorder 2, %s19
      // Predicated region
      $region65: #{tpu_custom_call.1} parent=5 // pred_check
        %p6283 = pneg %p6282
      $region66: #{tpu_custom_call.1} parent=5 // pred_check_branch
        %6285 = sbr.rel (%p6283) target = $region68
      $region67: #{tpu_custom_call.1} parent=5 // pred_region
        %s6286 = ssub.s32 %s19, 2
        // Predicated region
        $region69: #{tpu_custom_call.1} parent=67 // pred_check
          %p6287 = pneg %p158
        $region70: #{tpu_custom_call.1} parent=67 // pred_check_branch
          %6289 = sbr.rel (%p6287) target = $region72
        $region71: #{tpu_custom_call.1} parent=67 // pred_region
          %s6290 = sand.u32 %s143, 1
          %s6291 = scalar_lea.sflag [#allocation4], %s6290
          %s6292 = sand.u32 %s143, 1
          %s6293 = smul.addr %s6292, 64
          %s6294 = scalar_lea.vmem [#allocation11], %s6293
          %6295 = dma.done %s6291, 1024
        $region72: #{tpu_custom_call.1} parent=67 // pred_fallthru
          _
      $region68: #{tpu_custom_call.1} parent=5 // pred_fallthru
        _
    $region6: #{tpu_custom_call.1} parent=1 // loop_footer
      %s23 = sadd.s32 1, %s19
    $region7: #{tpu_custom_call.1} parent=1 // loop_footer_branch
      %18 = sbr.rel target = $region3
    $region8: #{tpu_custom_call.1} parent=1 // loop_exit
      _
    %6296 = vsyncpa [#allocation3], 1
    %s6297 = scalar_lea.sflag [#allocation3], 1
    %6298 = vsyncpa %s6297, 1
    %6299 = vsyncpa [#allocation6], 1
    %6300 = vsyncpa [#allocation9], 1
    %6301 = vsyncpa [#allocation4], 1
    %s6302 = scalar_lea.sflag [#allocation4], 1
    %6303 = vsyncpa %s6302, 1

</llo_original>
